<compile_context>
chip_gen: v7x
topology: tpu7x:2x2x1
jax: 0.10.0
libtpu: 0.0.40
codegen_flags: <defaults>
</compile_context>

<pallas_src>
import functools

import jax
import jax.numpy as jnp
import numpy as np
from jax.experimental import pallas as pl
from jax.experimental.pallas import tpu as pltpu


# ---------------------------------------------------------------------------
# Fused whole-layer kernel (one grid step == one image)
# ---------------------------------------------------------------------------
def _csp_kernel(x_ref, w12_ref, b12_ref, wb1_ref, bb1_ref, wb2_ref, bb2_ref,
                w3a_ref, w3b_ref, b3_ref, o_ref, zp_ref, *, H, W, hidden):
    P = H * W
    bf16 = jnp.bfloat16

    def silu(v):                       # f32 epilogue; sigmoid goes to the EUP
        return v * jax.nn.sigmoid(v)

    x = x_ref[...]                                                    # (P, Cin) bf16

    # conv1 & conv2 fused into one matmul: output channels = [conv1 | conv2].
    x12 = silu(jnp.dot(x, w12_ref[...], preferred_element_type=jnp.float32)
               + b12_ref[...])                                        # (P, 2h) f32
    x1 = x12[:, :hidden]
    x2 = x12[:, hidden:]

    # Bottleneck conv1 (1x1).
    z = silu(jnp.dot(x1.astype(bf16), wb1_ref[...],
                     preferred_element_type=jnp.float32) + bb1_ref[...])  # (P, h) f32

    # Bottleneck conv2 (3x3, 'same', stride 1), entirely in VMEM:
    # z is stored into a zero-padded scratch at (row 1.., col 8..) so the store is
    # sublane-aligned; the 9 shifted windows are read back and accumulated with
    # small MXU matmuls (no im2col tensor in HBM).
    zp_ref[...] = jnp.zeros_like(zp_ref)
    zp_ref[pl.ds(1, H), pl.ds(8, W), :] = z.reshape(H, W, hidden)
    acc = jnp.zeros((P, hidden), jnp.float32)
    for k in range(9):
        kh, kw = divmod(k, 3)
        win = zp_ref[pl.ds(kh, H), pl.ds(7 + kw, W), :].reshape(P, hidden)
        acc = acc + jnp.dot(win.astype(bf16), wb2_ref[k],
                            preferred_element_type=jnp.float32)
    x1b = silu(acc + bb2_ref[...]) + x1          # Bottleneck residual (post-act)

    # conv3 with the channel concat fused: cat([x1b, x2]) @ W3 == x1b@W3a + x2@W3b.
    y3 = (jnp.dot(x1b.astype(bf16), w3a_ref[...], preferred_element_type=jnp.float32)
          + jnp.dot(x2.astype(bf16), w3b_ref[...], preferred_element_type=jnp.float32)
          + b3_ref[...])
    o_ref[...] = silu(y3)                                             # (P, Cout) f32


# ---------------------------------------------------------------------------
# Host-side glue: BN folding into weights
# ---------------------------------------------------------------------------
def fold_bn(gamma, beta, mean, var, eps=1e-3):
    scale = gamma / jnp.sqrt(var + eps)
    return scale, beta - mean * scale


def _fold_pw(p):
    """PyTorch [Cout,Cin,1,1] conv + BN -> ([Cin,Cout] weight with scale folded, bias)."""
    s, b = fold_bn(p["gamma"], p["beta"], p["mean"], p["var"])
    return p["w"][:, :, 0, 0].T * s[None, :], b


# ---------------------------------------------------------------------------
# CSPLayer forward (n=1, shortcut=True, expansion=0.5, depthwise=False, act=silu)
# ---------------------------------------------------------------------------
def csp_layer_forward(x_nchw, params):
    # TODO(synk): only the module defaults (n=1 bottleneck, shortcut, depthwise=False)
    #             are implemented.
    N, Cin, H, W = x_nchw.shape
    P = H * W
    hidden = params["conv1"]["w"].shape[0]
    Cout = params["conv3"]["w"].shape[0]
    bf16 = jnp.bfloat16

    # NCHW -> flattened-NHWC pixel matrix [N*H*W, Cin]; bf16 for the MXU path.
    xf = jnp.transpose(x_nchw, (0, 2, 3, 1)).reshape(N * P, Cin).astype(bf16)

    # --- weight prep: fold BN scale into columns, fuse conv1+conv2, split conv3 ---
    w1, b1 = _fold_pw(params["conv1"])
    w2, b2 = _fold_pw(params["conv2"])
    w12 = jnp.concatenate([w1, w2], axis=1).astype(bf16)              # (Cin, 2h)
    b12 = jnp.concatenate([b1, b2]).reshape(1, 2 * hidden).astype(jnp.float32)

    wb1, bb1 = _fold_pw(params["b_conv1"])
    wb1 = wb1.astype(bf16)
    bb1 = bb1.reshape(1, hidden).astype(jnp.float32)

    pb = params["b_conv2"]
    s, b = fold_bn(pb["gamma"], pb["beta"], pb["mean"], pb["var"])
    wb2 = jnp.transpose(pb["w"] * s[:, None, None, None], (2, 3, 1, 0))
    wb2 = wb2.reshape(9, hidden, hidden).astype(bf16)                 # (tap, Cin, Cout)
    bb2 = b.reshape(1, hidden).astype(jnp.float32)

    w3, b3 = _fold_pw(params["conv3"])                                # (2h, Cout)
    w3a = w3[:hidden].astype(bf16)
    w3b = w3[hidden:].astype(bf16)
    b3 = b3.reshape(1, Cout).astype(jnp.float32)

    # --- one fused pallas_call, gridded over images ------------------------------
    # TODO(synk): whole image per grid step; very large H*W would need H-row tiling
    #             with a 1-row halo instead.
    PADW = W + 16                      # z stored at col offset 8 -> aligned store
    kernel = functools.partial(_csp_kernel, H=H, W=W, hidden=hidden)
    full = lambda a: pl.BlockSpec(a.shape, lambda n: (0,) * a.ndim)

    flops = 2 * N * P * (Cin * 2 * hidden + 10 * hidden * hidden + 2 * hidden * Cout)
    transc = N * P * (4 * hidden + Cout)
    bytes_acc = int(xf.size * 2 + N * P * Cout * 4
                    + 2 * (w12.size + wb1.size + wb2.size + w3a.size + w3b.size)
                    + 4 * (b12.size + bb1.size + bb2.size + b3.size))

    out = pl.pallas_call(
        kernel,
        out_shape=jax.ShapeDtypeStruct((N * P, Cout), jnp.float32),
        grid_spec=pltpu.PrefetchScalarGridSpec(
            num_scalar_prefetch=0,
            grid=(N,),
            in_specs=[pl.BlockSpec((P, Cin), lambda n: (n, 0)),
                      full(w12), full(b12), full(wb1), full(bb1),
                      full(wb2), full(bb2), full(w3a), full(w3b), full(b3)],
            out_specs=pl.BlockSpec((P, Cout), lambda n: (n, 0)),
            scratch_shapes=[pltpu.VMEM((H + 2, PADW, hidden), jnp.float32)],
        ),
        compiler_params=pltpu.CompilerParams(dimension_semantics=("parallel",)),
        cost_estimate=pl.CostEstimate(flops=flops, transcendentals=transc,
                                      bytes_accessed=bytes_acc),
    )(xf, w12, b12, wb1, bb1, wb2, bb2, w3a, w3b, b3)

    return jnp.transpose(out.reshape(N, H, W, Cout), (0, 3, 1, 2))


# ---------------------------------------------------------------------------
# Pure-JAX reference (lax.conv) for the correctness check
# ---------------------------------------------------------------------------
def _conv_bn_silu_ref(x, p, ksize):
    pad = (ksize - 1) // 2
    y = jax.lax.conv_general_dilated(
        x, p["w"], window_strides=(1, 1),
        padding=[(pad, pad), (pad, pad)],
        dimension_numbers=("NCHW", "OIHW", "NCHW"))
    s, b = fold_bn(p["gamma"], p["beta"], p["mean"], p["var"])
    y = y * s[None, :, None, None] + b[None, :, None, None]
    return y * jax.nn.sigmoid(y)


def csp_layer_ref(x, params):
    x1 = _conv_bn_silu_ref(x, params["conv1"], 1)
    x2 = _conv_bn_silu_ref(x, params["conv2"], 1)
    z = _conv_bn_silu_ref(x1, params["b_conv1"], 1)
    z = _conv_bn_silu_ref(z, params["b_conv2"], 3)
    x1 = z + x1                     # Bottleneck residual (shortcut, in==out channels)
    cat = jnp.concatenate([x1, x2], axis=1)
    return _conv_bn_silu_ref(cat, params["conv3"], 1)


# ---------------------------------------------------------------------------
# Deterministic parameter construction (shapes from CSPLayer.__init__)
# ---------------------------------------------------------------------------
def make_conv_bn_params(key, cin, cout, ksize):
    kw, kg, kb, km, kv = jax.random.split(key, 5)
    return {
        "w": 0.1 * jax.random.normal(kw, (cout, cin, ksize, ksize), jnp.float32),
        "gamma": 0.5 + jax.random.uniform(kg, (cout,), jnp.float32),
        "beta": 0.1 * jax.random.normal(kb, (cout,), jnp.float32),
        "mean": 0.1 * jax.random.normal(km, (cout,), jnp.float32),
        "var": 0.5 + jax.random.uniform(kv, (cout,), jnp.float32),
    }


if __name__ == "__main__":
    key = jax.random.PRNGKey(0)
    k_x, k1, k2, k3, k4, k5 = jax.random.split(key, 6)

    # Small shapes consistent with the module: NCHW input, in=out=16, n=1.
    N, C_IN, C_OUT, H, W = 2, 16, 16, 16, 16
    hidden = int(C_OUT * 0.5)

    x = jax.random.normal(k_x, (N, C_IN, H, W), jnp.float32)

    params = {
        "conv1": make_conv_bn_params(k1, C_IN, hidden, 1),
        "conv2": make_conv_bn_params(k2, C_IN, hidden, 1),
        "b_conv1": make_conv_bn_params(k3, hidden, hidden, 1),
        "b_conv2": make_conv_bn_params(k4, hidden, hidden, 3),
        "conv3": make_conv_bn_params(k5, 2 * hidden, C_OUT, 1),
    }

    out = jax.block_until_ready(csp_layer_forward(x, params))
    ref = jax.block_until_ready(csp_layer_ref(x, params))

    assert out.shape == (N, C_OUT, H, W), out.shape
    np.testing.assert_allclose(np.asarray(out), np.asarray(ref),
                               rtol=5e-2, atol=5e-2)

    print("KERNEL_OK")
</pallas_src>

<mosaic_0001>
module attributes {stable_mosaic.version = 11 : i64} {
  func.func @_csp_kernel(%arg0: i32, %arg1: memref<256x16xbf16, #tpu.memory_space<vmem>>, %arg2: memref<16x16xbf16, #tpu.memory_space<vmem>>, %arg3: memref<1x16xf32, #tpu.memory_space<vmem>>, %arg4: memref<8x8xbf16, #tpu.memory_space<vmem>>, %arg5: memref<1x8xf32, #tpu.memory_space<vmem>>, %arg6: memref<9x8x8xbf16, #tpu.memory_space<vmem>>, %arg7: memref<1x8xf32, #tpu.memory_space<vmem>>, %arg8: memref<8x16xbf16, #tpu.memory_space<vmem>>, %arg9: memref<8x16xbf16, #tpu.memory_space<vmem>>, %arg10: memref<1x16xf32, #tpu.memory_space<vmem>>, %arg11: memref<256x16xf32, #tpu.memory_space<vmem>>, %arg12: memref<18x32x8xf32, #tpu.memory_space<vmem>>) attributes {dimension_semantics = [#tpu.dimension_semantics<parallel>], iteration_bounds = array<i64: 2>, scalar_prefetch = 0 : i64, scratch_operands = 1 : i64, tpu.core_type = #tpu.core_type<tc>, window_params = [{transform_indices = @transform_0, window_bounds = array<i64: 256, 16>}, {pipeline_mode = #tpu.pipeline_mode<synchronous>, transform_indices = @transform_1, window_bounds = array<i64: 16, 16>}, {pipeline_mode = #tpu.pipeline_mode<synchronous>, transform_indices = @transform_2, window_bounds = array<i64: 1, 16>}, {pipeline_mode = #tpu.pipeline_mode<synchronous>, transform_indices = @transform_3, window_bounds = array<i64: 8, 8>}, {pipeline_mode = #tpu.pipeline_mode<synchronous>, transform_indices = @transform_4, window_bounds = array<i64: 1, 8>}, {pipeline_mode = #tpu.pipeline_mode<synchronous>, transform_indices = @transform_5, window_bounds = array<i64: 9, 8, 8>}, {pipeline_mode = #tpu.pipeline_mode<synchronous>, transform_indices = @transform_6, window_bounds = array<i64: 1, 8>}, {pipeline_mode = #tpu.pipeline_mode<synchronous>, transform_indices = @transform_7, window_bounds = array<i64: 8, 16>}, {pipeline_mode = #tpu.pipeline_mode<synchronous>, transform_indices = @transform_8, window_bounds = array<i64: 8, 16>}, {pipeline_mode = #tpu.pipeline_mode<synchronous>, transform_indices = @transform_9, window_bounds = array<i64: 1, 16>}, {transform_indices = @transform_10, window_bounds = array<i64: 256, 16>}]} {
    %c0 = arith.constant 0 : index
    %c0_0 = arith.constant 0 : index
    %0 = vector.load %arg1[%c0, %c0_0] : memref<256x16xbf16, #tpu.memory_space<vmem>>, vector<256x16xbf16>
    %c0_1 = arith.constant 0 : index
    %c0_2 = arith.constant 0 : index
    %1 = vector.load %arg2[%c0_1, %c0_2] : memref<16x16xbf16, #tpu.memory_space<vmem>>, vector<16x16xbf16>
    %cst = arith.constant dense<0.000000e+00> : vector<256x16xf32>
    %2 = tpu.matmul %0, %1, %cst {dimension_numbers = #tpu.dot_dimension_numbers<[1], [0], [0], [1], [0, 0, 1, 1], [], []>} : vector<256x16xbf16>, vector<16x16xbf16>, vector<256x16xf32> -> vector<256x16xf32>
    %c0_3 = arith.constant 0 : index
    %c0_4 = arith.constant 0 : index
    %3 = vector.load %arg3[%c0_3, %c0_4] : memref<1x16xf32, #tpu.memory_space<vmem>>, vector<1x16xf32>
    %4 = vector.broadcast %3 : vector<1x16xf32> to vector<256x16xf32>
    %5 = arith.addf %2, %4 : vector<256x16xf32>
    %6 = arith.negf %5 : vector<256x16xf32>
    %7 = math.exp %6 : vector<256x16xf32>
    %cst_5 = arith.constant 1.000000e+00 : f32
    %8 = vector.broadcast %cst_5 : f32 to vector<256x16xf32>
    %9 = arith.addf %8, %7 : vector<256x16xf32>
    %10 = arith.divf %8, %9 : vector<256x16xf32>
    %11 = arith.mulf %5, %10 : vector<256x16xf32>
    %12 = vector.extract_strided_slice %11 {offsets = [0, 0], sizes = [256, 8], strides = [1, 1]} : vector<256x16xf32> to vector<256x8xf32>
    %13 = vector.extract_strided_slice %11 {offsets = [0, 8], sizes = [256, 8], strides = [1, 1]} : vector<256x16xf32> to vector<256x8xf32>
    %14 = arith.truncf %12 : vector<256x8xf32> to vector<256x8xbf16>
    %c0_6 = arith.constant 0 : index
    %c0_7 = arith.constant 0 : index
    %15 = vector.load %arg4[%c0_6, %c0_7] : memref<8x8xbf16, #tpu.memory_space<vmem>>, vector<8x8xbf16>
    %cst_8 = arith.constant dense<0.000000e+00> : vector<256x8xf32>
    %16 = tpu.matmul %14, %15, %cst_8 {dimension_numbers = #tpu.dot_dimension_numbers<[1], [0], [0], [1], [0, 0, 1, 1], [], []>} : vector<256x8xbf16>, vector<8x8xbf16>, vector<256x8xf32> -> vector<256x8xf32>
    %c0_9 = arith.constant 0 : index
    %c0_10 = arith.constant 0 : index
    %17 = vector.load %arg5[%c0_9, %c0_10] : memref<1x8xf32, #tpu.memory_space<vmem>>, vector<1x8xf32>
    %18 = vector.broadcast %17 : vector<1x8xf32> to vector<256x8xf32>
    %19 = arith.addf %16, %18 : vector<256x8xf32>
    %20 = arith.negf %19 : vector<256x8xf32>
    %21 = math.exp %20 : vector<256x8xf32>
    %cst_11 = arith.constant 1.000000e+00 : f32
    %22 = vector.broadcast %cst_11 : f32 to vector<256x8xf32>
    %23 = arith.addf %22, %21 : vector<256x8xf32>
    %24 = arith.divf %22, %23 : vector<256x8xf32>
    %25 = arith.mulf %19, %24 : vector<256x8xf32>
    %cst_12 = arith.constant 0.000000e+00 : f32
    %26 = vector.broadcast %cst_12 : f32 to vector<18x32x8xf32>
    %c0_13 = arith.constant 0 : index
    %c0_14 = arith.constant 0 : index
    %c0_15 = arith.constant 0 : index
    %27 = vector.load %arg12[%c0_13, %c0_14, %c0_15] : memref<18x32x8xf32, #tpu.memory_space<vmem>>, vector<18x32x8xf32>
    tpu.vector_store %arg12[%c0_13, %c0_14, %c0_15], %26 {strides = array<i32>} : memref<18x32x8xf32, #tpu.memory_space<vmem>>, vector<18x32x8xf32>,
    %28 = vector.shape_cast %25 : vector<256x8xf32> to vector<16x16x8xf32>
    %c1 = arith.constant 1 : index
    %c8 = arith.constant 8 : index
    %c0_16 = arith.constant 0 : index
    %29 = vector.load %arg12[%c1, %c8, %c0_16] : memref<18x32x8xf32, #tpu.memory_space<vmem>>, vector<16x16x8xf32>
    tpu.vector_store %arg12[%c1, %c8, %c0_16], %28 {strides = array<i32>} : memref<18x32x8xf32, #tpu.memory_space<vmem>>, vector<16x16x8xf32>,
    %cst_17 = arith.constant 0.000000e+00 : f32
    %30 = vector.broadcast %cst_17 : f32 to vector<256x8xf32>
    %c0_18 = arith.constant 0 : index
    %c7 = arith.constant 7 : index
    %c0_19 = arith.constant 0 : index
    %31 = vector.load %arg12[%c0_18, %c7, %c0_19] : memref<18x32x8xf32, #tpu.memory_space<vmem>>, vector<16x16x8xf32>
    %32 = vector.shape_cast %31 : vector<16x16x8xf32> to vector<256x8xf32>
    %33 = arith.truncf %32 : vector<256x8xf32> to vector<256x8xbf16>
    %c0_20 = arith.constant 0 : index
    %c0_21 = arith.constant 0 : index
    %c0_22 = arith.constant 0 : index
    %34 = vector.load %arg6[%c0_20, %c0_21, %c0_22] : memref<9x8x8xbf16, #tpu.memory_space<vmem>>, vector<1x8x8xbf16>
    %35 = vector.shape_cast %34 : vector<1x8x8xbf16> to vector<8x8xbf16>
    %cst_23 = arith.constant dense<0.000000e+00> : vector<256x8xf32>
    %36 = tpu.matmul %33, %35, %cst_23 {dimension_numbers = #tpu.dot_dimension_numbers<[1], [0], [0], [1], [0, 0, 1, 1], [], []>} : vector<256x8xbf16>, vector<8x8xbf16>, vector<256x8xf32> -> vector<256x8xf32>
    %37 = arith.addf %30, %36 : vector<256x8xf32>
    %c0_24 = arith.constant 0 : index
    %c8_25 = arith.constant 8 : index
    %c0_26 = arith.constant 0 : index
    %38 = vector.load %arg12[%c0_24, %c8_25, %c0_26] : memref<18x32x8xf32, #tpu.memory_space<vmem>>, vector<16x16x8xf32>
    %39 = vector.shape_cast %38 : vector<16x16x8xf32> to vector<256x8xf32>
    %40 = arith.truncf %39 : vector<256x8xf32> to vector<256x8xbf16>
    %c1_27 = arith.constant 1 : index
    %c0_28 = arith.constant 0 : index
    %c0_29 = arith.constant 0 : index
    %41 = vector.load %arg6[%c1_27, %c0_28, %c0_29] : memref<9x8x8xbf16, #tpu.memory_space<vmem>>, vector<1x8x8xbf16>
    %42 = vector.shape_cast %41 : vector<1x8x8xbf16> to vector<8x8xbf16>
    %cst_30 = arith.constant dense<0.000000e+00> : vector<256x8xf32>
    %43 = tpu.matmul %40, %42, %cst_30 {dimension_numbers = #tpu.dot_dimension_numbers<[1], [0], [0], [1], [0, 0, 1, 1], [], []>} : vector<256x8xbf16>, vector<8x8xbf16>, vector<256x8xf32> -> vector<256x8xf32>
    %44 = arith.addf %37, %43 : vector<256x8xf32>
    %c0_31 = arith.constant 0 : index
    %c9 = arith.constant 9 : index
    %c0_32 = arith.constant 0 : index
    %45 = vector.load %arg12[%c0_31, %c9, %c0_32] : memref<18x32x8xf32, #tpu.memory_space<vmem>>, vector<16x16x8xf32>
    %46 = vector.shape_cast %45 : vector<16x16x8xf32> to vector<256x8xf32>
    %47 = arith.truncf %46 : vector<256x8xf32> to vector<256x8xbf16>
    %c2 = arith.constant 2 : index
    %c0_33 = arith.constant 0 : index
    %c0_34 = arith.constant 0 : index
    %48 = vector.load %arg6[%c2, %c0_33, %c0_34] : memref<9x8x8xbf16, #tpu.memory_space<vmem>>, vector<1x8x8xbf16>
    %49 = vector.shape_cast %48 : vector<1x8x8xbf16> to vector<8x8xbf16>
    %cst_35 = arith.constant dense<0.000000e+00> : vector<256x8xf32>
    %50 = tpu.matmul %47, %49, %cst_35 {dimension_numbers = #tpu.dot_dimension_numbers<[1], [0], [0], [1], [0, 0, 1, 1], [], []>} : vector<256x8xbf16>, vector<8x8xbf16>, vector<256x8xf32> -> vector<256x8xf32>
    %51 = arith.addf %44, %50 : vector<256x8xf32>
    %c1_36 = arith.constant 1 : index
    %c7_37 = arith.constant 7 : index
    %c0_38 = arith.constant 0 : index
    %52 = vector.load %arg12[%c1_36, %c7_37, %c0_38] : memref<18x32x8xf32, #tpu.memory_space<vmem>>, vector<16x16x8xf32>
    %53 = vector.shape_cast %52 : vector<16x16x8xf32> to vector<256x8xf32>
    %54 = arith.truncf %53 : vector<256x8xf32> to vector<256x8xbf16>
    %c3 = arith.constant 3 : index
    %c0_39 = arith.constant 0 : index
    %c0_40 = arith.constant 0 : index
    %55 = vector.load %arg6[%c3, %c0_39, %c0_40] : memref<9x8x8xbf16, #tpu.memory_space<vmem>>, vector<1x8x8xbf16>
    %56 = vector.shape_cast %55 : vector<1x8x8xbf16> to vector<8x8xbf16>
    %cst_41 = arith.constant dense<0.000000e+00> : vector<256x8xf32>
    %57 = tpu.matmul %54, %56, %cst_41 {dimension_numbers = #tpu.dot_dimension_numbers<[1], [0], [0], [1], [0, 0, 1, 1], [], []>} : vector<256x8xbf16>, vector<8x8xbf16>, vector<256x8xf32> -> vector<256x8xf32>
    %58 = arith.addf %51, %57 : vector<256x8xf32>
    %c1_42 = arith.constant 1 : index
    %c8_43 = arith.constant 8 : index
    %c0_44 = arith.constant 0 : index
    %59 = vector.load %arg12[%c1_42, %c8_43, %c0_44] : memref<18x32x8xf32, #tpu.memory_space<vmem>>, vector<16x16x8xf32>
    %60 = vector.shape_cast %59 : vector<16x16x8xf32> to vector<256x8xf32>
    %61 = arith.truncf %60 : vector<256x8xf32> to vector<256x8xbf16>
    %c4 = arith.constant 4 : index
    %c0_45 = arith.constant 0 : index
    %c0_46 = arith.constant 0 : index
    %62 = vector.load %arg6[%c4, %c0_45, %c0_46] : memref<9x8x8xbf16, #tpu.memory_space<vmem>>, vector<1x8x8xbf16>
    %63 = vector.shape_cast %62 : vector<1x8x8xbf16> to vector<8x8xbf16>
    %cst_47 = arith.constant dense<0.000000e+00> : vector<256x8xf32>
    %64 = tpu.matmul %61, %63, %cst_47 {dimension_numbers = #tpu.dot_dimension_numbers<[1], [0], [0], [1], [0, 0, 1, 1], [], []>} : vector<256x8xbf16>, vector<8x8xbf16>, vector<256x8xf32> -> vector<256x8xf32>
    %65 = arith.addf %58, %64 : vector<256x8xf32>
    %c1_48 = arith.constant 1 : index
    %c9_49 = arith.constant 9 : index
    %c0_50 = arith.constant 0 : index
    %66 = vector.load %arg12[%c1_48, %c9_49, %c0_50] : memref<18x32x8xf32, #tpu.memory_space<vmem>>, vector<16x16x8xf32>
    %67 = vector.shape_cast %66 : vector<16x16x8xf32> to vector<256x8xf32>
    %68 = arith.truncf %67 : vector<256x8xf32> to vector<256x8xbf16>
    %c5 = arith.constant 5 : index
    %c0_51 = arith.constant 0 : index
    %c0_52 = arith.constant 0 : index
    %69 = vector.load %arg6[%c5, %c0_51, %c0_52] : memref<9x8x8xbf16, #tpu.memory_space<vmem>>, vector<1x8x8xbf16>
    %70 = vector.shape_cast %69 : vector<1x8x8xbf16> to vector<8x8xbf16>
    %cst_53 = arith.constant dense<0.000000e+00> : vector<256x8xf32>
    %71 = tpu.matmul %68, %70, %cst_53 {dimension_numbers = #tpu.dot_dimension_numbers<[1], [0], [0], [1], [0, 0, 1, 1], [], []>} : vector<256x8xbf16>, vector<8x8xbf16>, vector<256x8xf32> -> vector<256x8xf32>
    %72 = arith.addf %65, %71 : vector<256x8xf32>
    %c2_54 = arith.constant 2 : index
    %c7_55 = arith.constant 7 : index
    %c0_56 = arith.constant 0 : index
    %73 = vector.load %arg12[%c2_54, %c7_55, %c0_56] : memref<18x32x8xf32, #tpu.memory_space<vmem>>, vector<16x16x8xf32>
    %74 = vector.shape_cast %73 : vector<16x16x8xf32> to vector<256x8xf32>
    %75 = arith.truncf %74 : vector<256x8xf32> to vector<256x8xbf16>
    %c6 = arith.constant 6 : index
    %c0_57 = arith.constant 0 : index
    %c0_58 = arith.constant 0 : index
    %76 = vector.load %arg6[%c6, %c0_57, %c0_58] : memref<9x8x8xbf16, #tpu.memory_space<vmem>>, vector<1x8x8xbf16>
    %77 = vector.shape_cast %76 : vector<1x8x8xbf16> to vector<8x8xbf16>
    %cst_59 = arith.constant dense<0.000000e+00> : vector<256x8xf32>
    %78 = tpu.matmul %75, %77, %cst_59 {dimension_numbers = #tpu.dot_dimension_numbers<[1], [0], [0], [1], [0, 0, 1, 1], [], []>} : vector<256x8xbf16>, vector<8x8xbf16>, vector<256x8xf32> -> vector<256x8xf32>
    %79 = arith.addf %72, %78 : vector<256x8xf32>
    %c2_60 = arith.constant 2 : index
    %c8_61 = arith.constant 8 : index
    %c0_62 = arith.constant 0 : index
    %80 = vector.load %arg12[%c2_60, %c8_61, %c0_62] : memref<18x32x8xf32, #tpu.memory_space<vmem>>, vector<16x16x8xf32>
    %81 = vector.shape_cast %80 : vector<16x16x8xf32> to vector<256x8xf32>
    %82 = arith.truncf %81 : vector<256x8xf32> to vector<256x8xbf16>
    %c7_63 = arith.constant 7 : index
    %c0_64 = arith.constant 0 : index
    %c0_65 = arith.constant 0 : index
    %83 = vector.load %arg6[%c7_63, %c0_64, %c0_65] : memref<9x8x8xbf16, #tpu.memory_space<vmem>>, vector<1x8x8xbf16>
    %84 = vector.shape_cast %83 : vector<1x8x8xbf16> to vector<8x8xbf16>
    %cst_66 = arith.constant dense<0.000000e+00> : vector<256x8xf32>
    %85 = tpu.matmul %82, %84, %cst_66 {dimension_numbers = #tpu.dot_dimension_numbers<[1], [0], [0], [1], [0, 0, 1, 1], [], []>} : vector<256x8xbf16>, vector<8x8xbf16>, vector<256x8xf32> -> vector<256x8xf32>
    %86 = arith.addf %79, %85 : vector<256x8xf32>
    %c2_67 = arith.constant 2 : index
    %c9_68 = arith.constant 9 : index
    %c0_69 = arith.constant 0 : index
    %87 = vector.load %arg12[%c2_67, %c9_68, %c0_69] : memref<18x32x8xf32, #tpu.memory_space<vmem>>, vector<16x16x8xf32>
    %88 = vector.shape_cast %87 : vector<16x16x8xf32> to vector<256x8xf32>
    %89 = arith.truncf %88 : vector<256x8xf32> to vector<256x8xbf16>
    %c8_70 = arith.constant 8 : index
    %c0_71 = arith.constant 0 : index
    %c0_72 = arith.constant 0 : index
    %90 = vector.load %arg6[%c8_70, %c0_71, %c0_72] : memref<9x8x8xbf16, #tpu.memory_space<vmem>>, vector<1x8x8xbf16>
    %91 = vector.shape_cast %90 : vector<1x8x8xbf16> to vector<8x8xbf16>
    %cst_73 = arith.constant dense<0.000000e+00> : vector<256x8xf32>
    %92 = tpu.matmul %89, %91, %cst_73 {dimension_numbers = #tpu.dot_dimension_numbers<[1], [0], [0], [1], [0, 0, 1, 1], [], []>} : vector<256x8xbf16>, vector<8x8xbf16>, vector<256x8xf32> -> vector<256x8xf32>
    %93 = arith.addf %86, %92 : vector<256x8xf32>
    %c0_74 = arith.constant 0 : index
    %c0_75 = arith.constant 0 : index
    %94 = vector.load %arg7[%c0_74, %c0_75] : memref<1x8xf32, #tpu.memory_space<vmem>>, vector<1x8xf32>
    %95 = vector.broadcast %94 : vector<1x8xf32> to vector<256x8xf32>
    %96 = arith.addf %93, %95 : vector<256x8xf32>
    %97 = arith.negf %96 : vector<256x8xf32>
    %98 = math.exp %97 : vector<256x8xf32>
    %cst_76 = arith.constant 1.000000e+00 : f32
    %99 = vector.broadcast %cst_76 : f32 to vector<256x8xf32>
    %100 = arith.addf %99, %98 : vector<256x8xf32>
    %101 = arith.divf %99, %100 : vector<256x8xf32>
    %102 = arith.mulf %96, %101 : vector<256x8xf32>
    %103 = arith.addf %102, %12 : vector<256x8xf32>
    %104 = arith.truncf %103 : vector<256x8xf32> to vector<256x8xbf16>
    %c0_77 = arith.constant 0 : index
    %c0_78 = arith.constant 0 : index
    %105 = vector.load %arg8[%c0_77, %c0_78] : memref<8x16xbf16, #tpu.memory_space<vmem>>, vector<8x16xbf16>
    %cst_79 = arith.constant dense<0.000000e+00> : vector<256x16xf32>
    %106 = tpu.matmul %104, %105, %cst_79 {dimension_numbers = #tpu.dot_dimension_numbers<[1], [0], [0], [1], [0, 0, 1, 1], [], []>} : vector<256x8xbf16>, vector<8x16xbf16>, vector<256x16xf32> -> vector<256x16xf32>
    %107 = arith.truncf %13 : vector<256x8xf32> to vector<256x8xbf16>
    %c0_80 = arith.constant 0 : index
    %c0_81 = arith.constant 0 : index
    %108 = vector.load %arg9[%c0_80, %c0_81] : memref<8x16xbf16, #tpu.memory_space<vmem>>, vector<8x16xbf16>
    %cst_82 = arith.constant dense<0.000000e+00> : vector<256x16xf32>
    %109 = tpu.matmul %107, %108, %cst_82 {dimension_numbers = #tpu.dot_dimension_numbers<[1], [0], [0], [1], [0, 0, 1, 1], [], []>} : vector<256x8xbf16>, vector<8x16xbf16>, vector<256x16xf32> -> vector<256x16xf32>
    %110 = arith.addf %106, %109 : vector<256x16xf32>
    %c0_83 = arith.constant 0 : index
    %c0_84 = arith.constant 0 : index
    %111 = vector.load %arg10[%c0_83, %c0_84] : memref<1x16xf32, #tpu.memory_space<vmem>>, vector<1x16xf32>
    %112 = vector.broadcast %111 : vector<1x16xf32> to vector<256x16xf32>
    %113 = arith.addf %110, %112 : vector<256x16xf32>
    %114 = arith.negf %113 : vector<256x16xf32>
    %115 = math.exp %114 : vector<256x16xf32>
    %cst_85 = arith.constant 1.000000e+00 : f32
    %116 = vector.broadcast %cst_85 : f32 to vector<256x16xf32>
    %117 = arith.addf %116, %115 : vector<256x16xf32>
    %118 = arith.divf %116, %117 : vector<256x16xf32>
    %119 = arith.mulf %113, %118 : vector<256x16xf32>
    %c0_86 = arith.constant 0 : index
    %c0_87 = arith.constant 0 : index
    %120 = vector.load %arg11[%c0_86, %c0_87] : memref<256x16xf32, #tpu.memory_space<vmem>>, vector<256x16xf32>
    tpu.vector_store %arg11[%c0_86, %c0_87], %119 {strides = array<i32>} : memref<256x16xf32, #tpu.memory_space<vmem>>, vector<256x16xf32>,
    return
  }
  func.func @transform_0(%arg0: i32) -> (i32, i32) {
    %c0_i32 = arith.constant 0 : i32
    %c0_i32_0 = arith.constant 0 : i32
    return %arg0, %c0_i32 : i32, i32
  }
  func.func @transform_1(%arg0: i32) -> (i32, i32) {
    %c0_i32 = arith.constant 0 : i32
    %c0_i32_0 = arith.constant 0 : i32
    %c0_i32_1 = arith.constant 0 : i32
    return %c0_i32, %c0_i32_0 : i32, i32
  }
  func.func @transform_2(%arg0: i32) -> (i32, i32) {
    %c0_i32 = arith.constant 0 : i32
    %c0_i32_0 = arith.constant 0 : i32
    %c0_i32_1 = arith.constant 0 : i32
    return %c0_i32, %c0_i32_0 : i32, i32
  }
  func.func @transform_3(%arg0: i32) -> (i32, i32) {
    %c0_i32 = arith.constant 0 : i32
    %c0_i32_0 = arith.constant 0 : i32
    %c0_i32_1 = arith.constant 0 : i32
    return %c0_i32, %c0_i32_0 : i32, i32
  }
  func.func @transform_4(%arg0: i32) -> (i32, i32) {
    %c0_i32 = arith.constant 0 : i32
    %c0_i32_0 = arith.constant 0 : i32
    %c0_i32_1 = arith.constant 0 : i32
    return %c0_i32, %c0_i32_0 : i32, i32
  }
  func.func @transform_5(%arg0: i32) -> (i32, i32, i32) {
    %c0_i32 = arith.constant 0 : i32
    %c0_i32_0 = arith.constant 0 : i32
    %c0_i32_1 = arith.constant 0 : i32
    %c0_i32_2 = arith.constant 0 : i32
    return %c0_i32, %c0_i32_0, %c0_i32_1 : i32, i32, i32
  }
  func.func @transform_6(%arg0: i32) -> (i32, i32) {
    %c0_i32 = arith.constant 0 : i32
    %c0_i32_0 = arith.constant 0 : i32
    %c0_i32_1 = arith.constant 0 : i32
    return %c0_i32, %c0_i32_0 : i32, i32
  }
  func.func @transform_7(%arg0: i32) -> (i32, i32) {
    %c0_i32 = arith.constant 0 : i32
    %c0_i32_0 = arith.constant 0 : i32
    %c0_i32_1 = arith.constant 0 : i32
    return %c0_i32, %c0_i32_0 : i32, i32
  }
  func.func @transform_8(%arg0: i32) -> (i32, i32) {
    %c0_i32 = arith.constant 0 : i32
    %c0_i32_0 = arith.constant 0 : i32
    %c0_i32_1 = arith.constant 0 : i32
    return %c0_i32, %c0_i32_0 : i32, i32
  }
  func.func @transform_9(%arg0: i32) -> (i32, i32) {
    %c0_i32 = arith.constant 0 : i32
    %c0_i32_0 = arith.constant 0 : i32
    %c0_i32_1 = arith.constant 0 : i32
    return %c0_i32, %c0_i32_0 : i32, i32
  }
  func.func @transform_10(%arg0: i32) -> (i32, i32) {
    %c0_i32 = arith.constant 0 : i32
    %c0_i32_0 = arith.constant 0 : i32
    return %arg0, %c0_i32 : i32, i32
  }
}

</mosaic_0001>

<llo_original>
// kernel: tpu_custom_call.1
$region0: #{tpu_custom_call.1}
  #allocation0 [shape = 'u32[]', space=smem, size = 0x4, offset = 0x4, fixed_abs, tag = 'smem constant byte address 0x4 - core index']
  #allocation1 [shape = 'u32[144,128]{1,0:T(1,128)}', space=vmem, size = 0x12000, scoped, tag = 'internal scratch']
  #allocation2 [shape = 'f32[18,32,8]{2,1,0:T(8,128)}', space=vmem, size = 0x48000, scoped, tag = 'scratch operand']
  %s0 = inlined_call_operand.vmem [shape: bf16[512,16], index: 0, kind: input, shape index: {}]
  %s1 = inlined_call_operand.vmem [shape: bf16[16,16], index: 1, kind: input, shape index: {}]
  %s2 = inlined_call_operand.vmem [shape: f32[1,16], index: 2, kind: input, shape index: {}]
  %s3 = inlined_call_operand.vmem [shape: bf16[8,8], index: 3, kind: input, shape index: {}]
  %s4 = inlined_call_operand.vmem [shape: f32[1,8], index: 4, kind: input, shape index: {}]
  %s5 = inlined_call_operand.vmem [shape: bf16[9,8,8], index: 5, kind: input, shape index: {}]
  %s6 = inlined_call_operand.vmem [shape: f32[1,8], index: 6, kind: input, shape index: {}]
  %s7 = inlined_call_operand.vmem [shape: bf16[8,16], index: 7, kind: input, shape index: {}]
  %s8 = inlined_call_operand.vmem [shape: bf16[8,16], index: 8, kind: input, shape index: {}]
  %s9 = inlined_call_operand.vmem [shape: f32[1,16], index: 9, kind: input, shape index: {}]
  %s10 = inlined_call_operand.vmem [shape: f32[512,16], index: 10, kind: output, shape index: {}]
  %s11 = sld [smem:[#allocation0]]
  $region73: #{tpu_custom_call.1} parent=0
    _
  %s13 = ssub.s32 1, %s11
  %s14 = scalar_select 0, %s13, %s11
  loop: start=0, step=1, limit=4
  $region2: #{tpu_custom_call.1} parent=0 // loop_pre_header
    _
  $region3: #{tpu_custom_call.1} parent=0 // loop_header
    %s16 = sphi 0, %s20
    %p17 = scmp.ge.s32.totalorder %s16, 4
    %s26 = sphi 0, %s28
    %s29 = sphi 0, %s26
    %s30 = sphi 0, %s29
    %s46 = sphi 0, %s30
    %s50 = sphi 0, %s50
    %s52 = sphi 0, %s50
    %s53 = sphi 0, %s52
    %s67 = sphi 0, %s53
    %s71 = sphi 0, %s71
    %s73 = sphi 0, %s71
    %s74 = sphi 0, %s73
    %s88 = sphi 0, %s74
    %s92 = sphi 0, %s92
    %s94 = sphi 0, %s92
    %s95 = sphi 0, %s94
    %s109 = sphi 0, %s95
    %s113 = sphi 0, %s113
    %s115 = sphi 0, %s113
    %s116 = sphi 0, %s115
    %s130 = sphi 0, %s116
    %s134 = sphi 0, %s134
    %s136 = sphi 0, %s134
    %s137 = sphi 0, %s136
    %s151 = sphi 0, %s137
    %s155 = sphi 0, %s155
    %s157 = sphi 0, %s155
    %s158 = sphi 0, %s157
    %s172 = sphi 0, %s158
    %s176 = sphi 0, %s176
    %s178 = sphi 0, %s176
    %s179 = sphi 0, %s178
    %s193 = sphi 0, %s179
    %s197 = sphi 0, %s197
    %s199 = sphi 0, %s197
    %s200 = sphi 0, %s199
    %s214 = sphi 0, %s200
    %s218 = sphi 0, %s218
    %s220 = sphi 0, %s218
    %s221 = sphi 0, %s220
    %s235 = sphi 0, %s221
    %s241 = sphi 0, %s243
    %s244 = sphi 0, %s241
    %s245 = sphi 0, %s244
    %s261 = sphi 0, %s245
  $region4: #{tpu_custom_call.1} parent=0 // loop_header_branch
    %19 = sbr.rel (%p17) target = $region8
  $region5: #{tpu_custom_call.1} parent=0 // loop_body
    %s21 = ssub.s32 %s16, 1
    %s22 = ssub.s32 %s16, 2
    %s23 = sadd.s32 %s16, 1
    %s24 = ssub.s32 %s16, %s23
    %p25 = scmp.eq.s32.totalorder %s24, 0
    %s27 = sadd.s32 %s26, 1
    %s28 = scalar_select %p25, %s26, %s27
    %p31 = pneg %p25
    %p32 = scmp.eq.s32.totalorder %s16, 1
    %p33 = por %p31, %p32
    %p34 = scmp.ne.s32.totalorder %s26, %s29
    %p35 = scmp.eq.s32.totalorder %s16, 0
    %p36 = por %p34, %p35
    %p37 = scmp.ne.s32.totalorder %s26, %s29
    %p38 = scmp.eq.s32.totalorder %s21, 1
    %p39 = por %p37, %p38
    %p40 = scmp.ne.s32.totalorder %s29, %s30
    %p41 = scmp.eq.s32.totalorder %s21, 0
    %p42 = por %p40, %p41
    %p43 = scmp.ne.s32.totalorder %s29, %s30
    %p44 = scmp.eq.s32.totalorder %s22, 1
    %p45 = por %p43, %p44
    %p47 = scmp.ne.s32.totalorder %s30, %s46
    %p48 = scmp.eq.s32.totalorder %s22, 0
    %p49 = por %p47, %p48
    %s51 = sadd.s32 %s50, 1
    %p54 = scmp.eq.s32.totalorder %s16, 1
    %p55 = scmp.ne.s32.totalorder %s50, %s52
    %p56 = scmp.eq.s32.totalorder %s16, 0
    %p57 = por %p55, %p56
    %p58 = scmp.ne.s32.totalorder %s50, %s52
    %p59 = scmp.eq.s32.totalorder %s21, 1
    %p60 = por %p58, %p59
    %p61 = scmp.ne.s32.totalorder %s52, %s53
    %p62 = scmp.eq.s32.totalorder %s21, 0
    %p63 = por %p61, %p62
    %p64 = scmp.ne.s32.totalorder %s52, %s53
    %p65 = scmp.eq.s32.totalorder %s22, 1
    %p66 = por %p64, %p65
    %p68 = scmp.ne.s32.totalorder %s53, %s67
    %p69 = scmp.eq.s32.totalorder %s22, 0
    %p70 = por %p68, %p69
    %s72 = sadd.s32 %s71, 1
    %p75 = scmp.eq.s32.totalorder %s16, 1
    %p76 = scmp.ne.s32.totalorder %s71, %s73
    %p77 = scmp.eq.s32.totalorder %s16, 0
    %p78 = por %p76, %p77
    %p79 = scmp.ne.s32.totalorder %s71, %s73
    %p80 = scmp.eq.s32.totalorder %s21, 1
    %p81 = por %p79, %p80
    %p82 = scmp.ne.s32.totalorder %s73, %s74
    %p83 = scmp.eq.s32.totalorder %s21, 0
    %p84 = por %p82, %p83
    %p85 = scmp.ne.s32.totalorder %s73, %s74
    %p86 = scmp.eq.s32.totalorder %s22, 1
    %p87 = por %p85, %p86
    %p89 = scmp.ne.s32.totalorder %s74, %s88
    %p90 = scmp.eq.s32.totalorder %s22, 0
    %p91 = por %p89, %p90
    %s93 = sadd.s32 %s92, 1
    %p96 = scmp.eq.s32.totalorder %s16, 1
    %p97 = scmp.ne.s32.totalorder %s92, %s94
    %p98 = scmp.eq.s32.totalorder %s16, 0
    %p99 = por %p97, %p98
    %p100 = scmp.ne.s32.totalorder %s92, %s94
    %p101 = scmp.eq.s32.totalorder %s21, 1
    %p102 = por %p100, %p101
    %p103 = scmp.ne.s32.totalorder %s94, %s95
    %p104 = scmp.eq.s32.totalorder %s21, 0
    %p105 = por %p103, %p104
    %p106 = scmp.ne.s32.totalorder %s94, %s95
    %p107 = scmp.eq.s32.totalorder %s22, 1
    %p108 = por %p106, %p107
    %p110 = scmp.ne.s32.totalorder %s95, %s109
    %p111 = scmp.eq.s32.totalorder %s22, 0
    %p112 = por %p110, %p111
    %s114 = sadd.s32 %s113, 1
    %p117 = scmp.eq.s32.totalorder %s16, 1
    %p118 = scmp.ne.s32.totalorder %s113, %s115
    %p119 = scmp.eq.s32.totalorder %s16, 0
    %p120 = por %p118, %p119
    %p121 = scmp.ne.s32.totalorder %s113, %s115
    %p122 = scmp.eq.s32.totalorder %s21, 1
    %p123 = por %p121, %p122
    %p124 = scmp.ne.s32.totalorder %s115, %s116
    %p125 = scmp.eq.s32.totalorder %s21, 0
    %p126 = por %p124, %p125
    %p127 = scmp.ne.s32.totalorder %s115, %s116
    %p128 = scmp.eq.s32.totalorder %s22, 1
    %p129 = por %p127, %p128
    %p131 = scmp.ne.s32.totalorder %s116, %s130
    %p132 = scmp.eq.s32.totalorder %s22, 0
    %p133 = por %p131, %p132
    %s135 = sadd.s32 %s134, 1
    %p138 = scmp.eq.s32.totalorder %s16, 1
    %p139 = scmp.ne.s32.totalorder %s134, %s136
    %p140 = scmp.eq.s32.totalorder %s16, 0
    %p141 = por %p139, %p140
    %p142 = scmp.ne.s32.totalorder %s134, %s136
    %p143 = scmp.eq.s32.totalorder %s21, 1
    %p144 = por %p142, %p143
    %p145 = scmp.ne.s32.totalorder %s136, %s137
    %p146 = scmp.eq.s32.totalorder %s21, 0
    %p147 = por %p145, %p146
    %p148 = scmp.ne.s32.totalorder %s136, %s137
    %p149 = scmp.eq.s32.totalorder %s22, 1
    %p150 = por %p148, %p149
    %p152 = scmp.ne.s32.totalorder %s137, %s151
    %p153 = scmp.eq.s32.totalorder %s22, 0
    %p154 = por %p152, %p153
    %s156 = sadd.s32 %s155, 1
    %p159 = scmp.eq.s32.totalorder %s16, 1
    %p160 = scmp.ne.s32.totalorder %s155, %s157
    %p161 = scmp.eq.s32.totalorder %s16, 0
    %p162 = por %p160, %p161
    %p163 = scmp.ne.s32.totalorder %s155, %s157
    %p164 = scmp.eq.s32.totalorder %s21, 1
    %p165 = por %p163, %p164
    %p166 = scmp.ne.s32.totalorder %s157, %s158
    %p167 = scmp.eq.s32.totalorder %s21, 0
    %p168 = por %p166, %p167
    %p169 = scmp.ne.s32.totalorder %s157, %s158
    %p170 = scmp.eq.s32.totalorder %s22, 1
    %p171 = por %p169, %p170
    %p173 = scmp.ne.s32.totalorder %s158, %s172
    %p174 = scmp.eq.s32.totalorder %s22, 0
    %p175 = por %p173, %p174
    %s177 = sadd.s32 %s176, 1
    %p180 = scmp.eq.s32.totalorder %s16, 1
    %p181 = scmp.ne.s32.totalorder %s176, %s178
    %p182 = scmp.eq.s32.totalorder %s16, 0
    %p183 = por %p181, %p182
    %p184 = scmp.ne.s32.totalorder %s176, %s178
    %p185 = scmp.eq.s32.totalorder %s21, 1
    %p186 = por %p184, %p185
    %p187 = scmp.ne.s32.totalorder %s178, %s179
    %p188 = scmp.eq.s32.totalorder %s21, 0
    %p189 = por %p187, %p188
    %p190 = scmp.ne.s32.totalorder %s178, %s179
    %p191 = scmp.eq.s32.totalorder %s22, 1
    %p192 = por %p190, %p191
    %p194 = scmp.ne.s32.totalorder %s179, %s193
    %p195 = scmp.eq.s32.totalorder %s22, 0
    %p196 = por %p194, %p195
    %s198 = sadd.s32 %s197, 1
    %p201 = scmp.eq.s32.totalorder %s16, 1
    %p202 = scmp.ne.s32.totalorder %s197, %s199
    %p203 = scmp.eq.s32.totalorder %s16, 0
    %p204 = por %p202, %p203
    %p205 = scmp.ne.s32.totalorder %s197, %s199
    %p206 = scmp.eq.s32.totalorder %s21, 1
    %p207 = por %p205, %p206
    %p208 = scmp.ne.s32.totalorder %s199, %s200
    %p209 = scmp.eq.s32.totalorder %s21, 0
    %p210 = por %p208, %p209
    %p211 = scmp.ne.s32.totalorder %s199, %s200
    %p212 = scmp.eq.s32.totalorder %s22, 1
    %p213 = por %p211, %p212
    %p215 = scmp.ne.s32.totalorder %s200, %s214
    %p216 = scmp.eq.s32.totalorder %s22, 0
    %p217 = por %p215, %p216
    %s219 = sadd.s32 %s218, 1
    %p222 = scmp.eq.s32.totalorder %s16, 1
    %p223 = scmp.ne.s32.totalorder %s218, %s220
    %p224 = scmp.eq.s32.totalorder %s16, 0
    %p225 = por %p223, %p224
    %p226 = scmp.ne.s32.totalorder %s218, %s220
    %p227 = scmp.eq.s32.totalorder %s21, 1
    %p228 = por %p226, %p227
    %p229 = scmp.ne.s32.totalorder %s220, %s221
    %p230 = scmp.eq.s32.totalorder %s21, 0
    %p231 = por %p229, %p230
    %p232 = scmp.ne.s32.totalorder %s220, %s221
    %p233 = scmp.eq.s32.totalorder %s22, 1
    %p234 = por %p232, %p233
    %p236 = scmp.ne.s32.totalorder %s221, %s235
    %p237 = scmp.eq.s32.totalorder %s22, 0
    %p238 = por %p236, %p237
    %s239 = ssub.s32 %s16, %s23
    %p240 = scmp.eq.s32.totalorder %s239, 0
    %s242 = sadd.s32 %s241, 1
    %s243 = scalar_select %p240, %s241, %s242
    %p246 = pneg %p240
    %p247 = scmp.eq.s32.totalorder %s16, 1
    %p248 = por %p246, %p247
    %p249 = scmp.ne.s32.totalorder %s241, %s244
    %p250 = scmp.eq.s32.totalorder %s16, 0
    %p251 = por %p249, %p250
    %p252 = scmp.ne.s32.totalorder %s241, %s244
    %p253 = scmp.eq.s32.totalorder %s21, 1
    %p254 = por %p252, %p253
    %p255 = scmp.ne.s32.totalorder %s244, %s245
    %p256 = scmp.eq.s32.totalorder %s21, 0
    %p257 = por %p255, %p256
    %p258 = scmp.ne.s32.totalorder %s244, %s245
    %p259 = scmp.eq.s32.totalorder %s22, 1
    %p260 = por %p258, %p259
    %p262 = scmp.ne.s32.totalorder %s245, %s261
    %p263 = scmp.eq.s32.totalorder %s22, 0
    %p264 = por %p262, %p263
    %p265 = scmp.le.s32.totalorder 1, %s16
    %p266 = scmp.lt.s32.totalorder %s16, 3
    %p267 = pnand %p265, %p266
    %p268 = pneg %p267
    // Predicated region
    $region9: #{tpu_custom_call.1} parent=5 // pred_check
      _
    $region10: #{tpu_custom_call.1} parent=5 // pred_check_branch
      %270 = sbr.rel (%p267) target = $region12
    $region11: #{tpu_custom_call.1} parent=5 // pred_region
      %s271 = ssub.s32 %s16, 1
      // Predicated region
      $region13: #{tpu_custom_call.1} parent=11 // pred_check
        %p272 = pneg %p63
      $region14: #{tpu_custom_call.1} parent=11 // pred_check_branch
        %274 = sbr.rel (%p272) target = $region16
      $region15: #{tpu_custom_call.1} parent=11 // pred_region
        _
      $region16: #{tpu_custom_call.1} parent=11 // pred_fallthru
        _
      // Predicated region
      $region17: #{tpu_custom_call.1} parent=11 // pred_check
        %p275 = pneg %p84
      $region18: #{tpu_custom_call.1} parent=11 // pred_check_branch
        %277 = sbr.rel (%p275) target = $region20
      $region19: #{tpu_custom_call.1} parent=11 // pred_region
        _
      $region20: #{tpu_custom_call.1} parent=11 // pred_fallthru
        _
      // Predicated region
      $region21: #{tpu_custom_call.1} parent=11 // pred_check
        %p278 = pneg %p105
      $region22: #{tpu_custom_call.1} parent=11 // pred_check_branch
        %280 = sbr.rel (%p278) target = $region24
      $region23: #{tpu_custom_call.1} parent=11 // pred_region
        _
      $region24: #{tpu_custom_call.1} parent=11 // pred_fallthru
        _
      // Predicated region
      $region25: #{tpu_custom_call.1} parent=11 // pred_check
        %p281 = pneg %p126
      $region26: #{tpu_custom_call.1} parent=11 // pred_check_branch
        %283 = sbr.rel (%p281) target = $region28
      $region27: #{tpu_custom_call.1} parent=11 // pred_region
        _
      $region28: #{tpu_custom_call.1} parent=11 // pred_fallthru
        _
      // Predicated region
      $region29: #{tpu_custom_call.1} parent=11 // pred_check
        %p284 = pneg %p147
      $region30: #{tpu_custom_call.1} parent=11 // pred_check_branch
        %286 = sbr.rel (%p284) target = $region32
      $region31: #{tpu_custom_call.1} parent=11 // pred_region
        _
      $region32: #{tpu_custom_call.1} parent=11 // pred_fallthru
        _
      // Predicated region
      $region33: #{tpu_custom_call.1} parent=11 // pred_check
        %p287 = pneg %p168
      $region34: #{tpu_custom_call.1} parent=11 // pred_check_branch
        %289 = sbr.rel (%p287) target = $region36
      $region35: #{tpu_custom_call.1} parent=11 // pred_region
        _
      $region36: #{tpu_custom_call.1} parent=11 // pred_fallthru
        _
      // Predicated region
      $region37: #{tpu_custom_call.1} parent=11 // pred_check
        %p290 = pneg %p189
      $region38: #{tpu_custom_call.1} parent=11 // pred_check_branch
        %292 = sbr.rel (%p290) target = $region40
      $region39: #{tpu_custom_call.1} parent=11 // pred_region
        _
      $region40: #{tpu_custom_call.1} parent=11 // pred_fallthru
        _
      // Predicated region
      $region41: #{tpu_custom_call.1} parent=11 // pred_check
        %p293 = pneg %p210
      $region42: #{tpu_custom_call.1} parent=11 // pred_check_branch
        %295 = sbr.rel (%p293) target = $region44
      $region43: #{tpu_custom_call.1} parent=11 // pred_region
        _
      $region44: #{tpu_custom_call.1} parent=11 // pred_fallthru
        _
      // Predicated region
      $region45: #{tpu_custom_call.1} parent=11 // pred_check
        %p296 = pneg %p231
      $region46: #{tpu_custom_call.1} parent=11 // pred_check_branch
        %298 = sbr.rel (%p296) target = $region48
      $region47: #{tpu_custom_call.1} parent=11 // pred_region
        _
      $region48: #{tpu_custom_call.1} parent=11 // pred_fallthru
        _
    $region12: #{tpu_custom_call.1} parent=5 // pred_fallthru
      _
    %p299 = scmp.lt.s32.totalorder %s16, 2
    // Predicated region
    $region49: #{tpu_custom_call.1} parent=5 // pred_check
      %p300 = pneg %p299
    $region50: #{tpu_custom_call.1} parent=5 // pred_check_branch
      %302 = sbr.rel (%p300) target = $region52
    $region51: #{tpu_custom_call.1} parent=5 // pred_region
      // Predicated region
      $region53: #{tpu_custom_call.1} parent=51 // pred_check
        %p303 = pneg %p36
      $region54: #{tpu_custom_call.1} parent=51 // pred_check_branch
        %305 = sbr.rel (%p303) target = $region56
      $region55: #{tpu_custom_call.1} parent=51 // pred_region
        %s306 = smul.u32 32, %s16
        %p307 = scmp.lt.s32.totalorder %s306, 63
        %s308 = scalar_select %p307, %s306, 63
        %s309 = smul.addr %s308, 4
        %s310 = scalar_lea.vmem %s0, %s309
        %s311 = smul.u32 32, %s16
      $region56: #{tpu_custom_call.1} parent=51 // pred_fallthru
        _
    $region52: #{tpu_custom_call.1} parent=5 // pred_fallthru
      _
    %p312 = scmp.le.s32.totalorder 1, %s16
    %p313 = scmp.lt.s32.totalorder %s16, 3
    %p314 = pnand %p312, %p313
    %p315 = pneg %p314
    // Predicated region
    $region57: #{tpu_custom_call.1} parent=5 // pred_check
      _
    $region58: #{tpu_custom_call.1} parent=5 // pred_check_branch
      %317 = sbr.rel (%p314) target = $region60
    $region59: #{tpu_custom_call.1} parent=5 // pred_region
      %s318 = ssub.s32 %s16, 1
      %s319 = smul.u32 32, %s21
      %p320 = scmp.lt.s32.totalorder %s319, 63
      %s321 = scalar_select %p320, %s319, 63
      %s322 = smul.addr %s321, 4
      %s323 = scalar_lea.vmem %s0, %s322
      %p324 = pneg %p42
      %p325 = pneg %p39
      %p326 = pneg %p63
      %p327 = pneg %p60
      %p328 = pneg %p84
      %p329 = pneg %p81
      %p330 = pneg %p105
      %p331 = pneg %p102
      %p332 = pneg %p126
      %p333 = pneg %p123
      %p334 = pneg %p147
      %p335 = pneg %p144
      %p336 = pneg %p168
      %p337 = pneg %p165
      %p338 = pneg %p189
      %p339 = pneg %p186
      %p340 = pneg %p210
      %p341 = pneg %p207
      %p342 = pneg %p231
      %p343 = pneg %p228
      %p344 = pneg %p257
      %p345 = pneg %p254
      %s346 = smul.u32 32, %s21
      %p347 = scmp.lt.s32.totalorder %s346, 63
      %s348 = scalar_select %p347, %s346, 63
      %s349 = smul.addr %s348, 8
      %s350 = scalar_lea.vmem %s10, %s349
      %s351 = smul.u32 32, %s21
      %p352 = scmp.lt.s32.totalorder %s351, 63
      %s353 = scalar_select %p352, %s351, 63
      %s354 = smul.addr %s353, 4
      %s355 = scalar_lea.vmem %s0, %s354
      %s356 = smul.u32 32, %s21
      %s357 = smul.u32 32, %s21
      %p358 = scmp.lt.s32.totalorder %s357, 63
      %s359 = scalar_select %p358, %s357, 63
      %s360 = smul.addr %s359, 8
      %s361 = scalar_lea.vmem %s10, %s360
      %s362 = smul.u32 32, %s21
      %v364 = vld [vmem:[%s355] sm:$0xf]
      %v365 = vld [vmem:[%s355 + $0x4] sm:$0xf]
      %v366 = vld [vmem:[%s355 + $0x8] sm:$0xf]
      %v367 = vld [vmem:[%s355 + $0xc] sm:$0xf]
      %v368 = vld [vmem:[%s355 + $0x10] sm:$0xf]
      %v369 = vld [vmem:[%s355 + $0x14] sm:$0xf]
      %v370 = vld [vmem:[%s355 + $0x18] sm:$0xf]
      %v371 = vld [vmem:[%s355 + $0x1c] sm:$0xf]
      %v372 = vld [vmem:[%s355 + $0x20] sm:$0xf]
      %v373 = vld [vmem:[%s355 + $0x24] sm:$0xf]
      %v374 = vld [vmem:[%s355 + $0x28] sm:$0xf]
      %v375 = vld [vmem:[%s355 + $0x2c] sm:$0xf]
      %v376 = vld [vmem:[%s355 + $0x30] sm:$0xf]
      %v377 = vld [vmem:[%s355 + $0x34] sm:$0xf]
      %v378 = vld [vmem:[%s355 + $0x38] sm:$0xf]
      %v379 = vld [vmem:[%s355 + $0x3c] sm:$0xf]
      %v380 = vld [vmem:[%s355 + $0x40] sm:$0xf]
      %v381 = vld [vmem:[%s355 + $0x44] sm:$0xf]
      %v382 = vld [vmem:[%s355 + $0x48] sm:$0xf]
      %v383 = vld [vmem:[%s355 + $0x4c] sm:$0xf]
      %v384 = vld [vmem:[%s355 + $0x50] sm:$0xf]
      %v385 = vld [vmem:[%s355 + $0x54] sm:$0xf]
      %v386 = vld [vmem:[%s355 + $0x58] sm:$0xf]
      %v387 = vld [vmem:[%s355 + $0x5c] sm:$0xf]
      %v388 = vld [vmem:[%s355 + $0x60] sm:$0xf]
      %v389 = vld [vmem:[%s355 + $0x64] sm:$0xf]
      %v390 = vld [vmem:[%s355 + $0x68] sm:$0xf]
      %v391 = vld [vmem:[%s355 + $0x6c] sm:$0xf]
      %v392 = vld [vmem:[%s355 + $0x70] sm:$0xf]
      %v393 = vld [vmem:[%s355 + $0x74] sm:$0xf]
      %v394 = vld [vmem:[%s355 + $0x78] sm:$0xf]
      %v395 = vld [vmem:[%s355 + $0x7c] sm:$0xf]
      %v396 = vld [vmem:[%s1] sm:$0xf]
      %v397 = vld [vmem:[%s1 + $0x4] sm:$0xf]
      %v398 = vld [vmem:[%s2] sm:$0x1]
      %v400 = vlaneseq
      %v401 = vshrl.u32 %v400, 7
      %v402 = vsub.s32 0, %v401
      %v403 = vrot.slane %v398, %v402
      %v437 = vunpack.c.l.b16 %v364
      %v438 = vunpack.c.l.b16 %v365
      %v439 = vunpack.c.l.b16 %v366
      %v440 = vunpack.c.l.b16 %v367
      %v441 = vunpack.c.l.b16 %v368
      %v442 = vunpack.c.l.b16 %v369
      %v443 = vunpack.c.l.b16 %v370
      %v444 = vunpack.c.l.b16 %v371
      %v445 = vunpack.c.l.b16 %v372
      %v446 = vunpack.c.l.b16 %v373
      %v447 = vunpack.c.l.b16 %v374
      %v448 = vunpack.c.l.b16 %v375
      %v449 = vunpack.c.l.b16 %v376
      %v450 = vunpack.c.l.b16 %v377
      %v451 = vunpack.c.l.b16 %v378
      %v452 = vunpack.c.l.b16 %v379
      %v453 = vunpack.c.l.b16 %v380
      %v454 = vunpack.c.l.b16 %v381
      %v455 = vunpack.c.l.b16 %v382
      %v456 = vunpack.c.l.b16 %v383
      %v457 = vunpack.c.l.b16 %v384
      %v458 = vunpack.c.l.b16 %v385
      %v459 = vunpack.c.l.b16 %v386
      %v460 = vunpack.c.l.b16 %v387
      %v461 = vunpack.c.l.b16 %v388
      %v462 = vunpack.c.l.b16 %v389
      %v463 = vunpack.c.l.b16 %v390
      %v464 = vunpack.c.l.b16 %v391
      %v465 = vunpack.c.l.b16 %v392
      %v466 = vunpack.c.l.b16 %v393
      %v467 = vunpack.c.l.b16 %v394
      %v468 = vunpack.c.l.b16 %v395
      %v469 = vpack.c.b16 %v438, %v437
      %v470 = vpack.c.b16 %v440, %v439
      %v471 = vpack.c.b16 %v442, %v441
      %v472 = vpack.c.b16 %v444, %v443
      %v473 = vpack.c.b16 %v446, %v445
      %v474 = vpack.c.b16 %v448, %v447
      %v475 = vpack.c.b16 %v450, %v449
      %v476 = vpack.c.b16 %v452, %v451
      %v477 = vpack.c.b16 %v454, %v453
      %v478 = vpack.c.b16 %v456, %v455
      %v479 = vpack.c.b16 %v458, %v457
      %v480 = vpack.c.b16 %v460, %v459
      %v481 = vpack.c.b16 %v462, %v461
      %v482 = vpack.c.b16 %v464, %v463
      %v483 = vpack.c.b16 %v466, %v465
      %v484 = vpack.c.b16 %v468, %v467
      %v487 = vunpack.c.l.b16 %v396
      %v488 = vunpack.c.l.b16 %v397
      %v489 = vpack.c.b16 %v488, %v487
      %vm491 = vcmask 130048
      %v493 = vsel %vm491, %v469, 0
      %v496 = vsel %vm491, %v470, 0
      %v499 = vsel %vm491, %v471, 0
      %v502 = vsel %vm491, %v472, 0
      %v505 = vsel %vm491, %v473, 0
      %v508 = vsel %vm491, %v474, 0
      %v511 = vsel %vm491, %v475, 0
      %v514 = vsel %vm491, %v476, 0
      %v517 = vsel %vm491, %v477, 0
      %v520 = vsel %vm491, %v478, 0
      %v523 = vsel %vm491, %v479, 0
      %v526 = vsel %vm491, %v480, 0
      %v529 = vsel %vm491, %v481, 0
      %v532 = vsel %vm491, %v482, 0
      %v535 = vsel %vm491, %v483, 0
      %v538 = vsel %vm491, %v484, 0
      %540 = vmatprep.subr.bf16.mxu0 0
      %541 = vmatpush1.bf16.msra.mxu0 %v489
      %542 = vmatprep.subr.bf16.mxu0 0
      %543 = vmatpush1.bf16.msra.mxu0 0
      %544 = vmatprep.subr.bf16.mxu0 0
      %545 = vmatpush1.bf16.msra.mxu0 0
      %546 = vmatprep.subr.bf16.mxu0 0
      %547 = vmatpush1.bf16.msra.mxu0 0
      %548 = vmatprep.subr.bf16.mxu0 0
      %549 = vmatpush1.bf16.msra.mxu0 0
      %550 = vmatprep.subr.bf16.mxu0 0
      %551 = vmatpush1.bf16.msra.mxu0 0
      %552 = vmatprep.subr.bf16.mxu0 0
      %553 = vmatpush1.bf16.msra.mxu0 0
      %554 = vmatprep.subr.bf16.mxu0 0
      %555 = vmatpush1.bf16.msra.mxu0 0
      %556 = vmatprep.subr.bf16.mxu0 0
      %557 = vmatpush1.bf16.msra.mxu0 0
      %558 = vmatprep.subr.bf16.mxu0 0
      %559 = vmatpush1.bf16.msra.mxu0 0
      %560 = vmatprep.subr.bf16.mxu0 0
      %561 = vmatpush1.bf16.msra.mxu0 0
      %562 = vmatprep.subr.bf16.mxu0 0
      %563 = vmatpush1.bf16.msra.mxu0 0
      %564 = vmatprep.subr.bf16.mxu0 0
      %565 = vmatpush1.bf16.msra.mxu0 0
      %566 = vmatprep.subr.bf16.mxu0 0
      %567 = vmatpush1.bf16.msra.mxu0 0
      %568 = vmatprep.subr.bf16.mxu0 0
      %569 = vmatpush1.bf16.msra.mxu0 0
      %570 = vmatprep.subr.bf16.mxu0 0
      %571 = vmatpush1.bf16.msra.mxu0 0
      %572 = vmatprep.mubr.bf16.mxu0 0
      %573 = vmatmul.mubr.bf16.gmra.mrb[0].mxu0 %v493
      %v574 = vpop.f32.mrb[0].mxu0
      %v575 = vadd.f32 %v403, %v574
      %v576 = vpop.f32.mrb[0].mxu0
      %v577 = vpop.f32.mrb[0].mxu0
      %v578 = vadd.f32 %v403, %v577
      %v579 = vpop.f32.mrb[0].mxu0
      %580 = vmatprep.mubr.bf16.mxu0 0
      %581 = vmatmul.mubr.bf16.gmra.mrb[0].mxu0 %v496
      %v582 = vpop.f32.mrb[0].mxu0
      %v583 = vadd.f32 %v403, %v582
      %v584 = vpop.f32.mrb[0].mxu0
      %v585 = vpop.f32.mrb[0].mxu0
      %v586 = vadd.f32 %v403, %v585
      %v587 = vpop.f32.mrb[0].mxu0
      %588 = vmatprep.mubr.bf16.mxu0 0
      %589 = vmatmul.mubr.bf16.gmra.mrb[0].mxu0 %v499
      %v590 = vpop.f32.mrb[0].mxu0
      %v591 = vadd.f32 %v403, %v590
      %v592 = vpop.f32.mrb[0].mxu0
      %v593 = vpop.f32.mrb[0].mxu0
      %v594 = vadd.f32 %v403, %v593
      %v595 = vpop.f32.mrb[0].mxu0
      %596 = vmatprep.mubr.bf16.mxu0 0
      %597 = vmatmul.mubr.bf16.gmra.mrb[0].mxu0 %v502
      %v598 = vpop.f32.mrb[0].mxu0
      %v599 = vadd.f32 %v403, %v598
      %v600 = vpop.f32.mrb[0].mxu0
      %v601 = vpop.f32.mrb[0].mxu0
      %v602 = vadd.f32 %v403, %v601
      %v603 = vpop.f32.mrb[0].mxu0
      %604 = vmatprep.mubr.bf16.mxu0 0
      %605 = vmatmul.mubr.bf16.gmra.mrb[0].mxu0 %v505
      %v606 = vpop.f32.mrb[0].mxu0
      %v607 = vadd.f32 %v403, %v606
      %v608 = vpop.f32.mrb[0].mxu0
      %v609 = vpop.f32.mrb[0].mxu0
      %v610 = vadd.f32 %v403, %v609
      %v611 = vpop.f32.mrb[0].mxu0
      %612 = vmatprep.mubr.bf16.mxu0 0
      %613 = vmatmul.mubr.bf16.gmra.mrb[0].mxu0 %v508
      %v614 = vpop.f32.mrb[0].mxu0
      %v615 = vadd.f32 %v403, %v614
      %v616 = vpop.f32.mrb[0].mxu0
      %v617 = vpop.f32.mrb[0].mxu0
      %v618 = vadd.f32 %v403, %v617
      %v619 = vpop.f32.mrb[0].mxu0
      %620 = vmatprep.mubr.bf16.mxu0 0
      %621 = vmatmul.mubr.bf16.gmra.mrb[0].mxu0 %v511
      %v622 = vpop.f32.mrb[0].mxu0
      %v623 = vadd.f32 %v403, %v622
      %v624 = vpop.f32.mrb[0].mxu0
      %v625 = vpop.f32.mrb[0].mxu0
      %v626 = vadd.f32 %v403, %v625
      %v627 = vpop.f32.mrb[0].mxu0
      %628 = vmatprep.mubr.bf16.mxu0 0
      %629 = vmatmul.mubr.bf16.gmra.mrb[0].mxu0 %v514
      %v630 = vpop.f32.mrb[0].mxu0
      %v631 = vadd.f32 %v403, %v630
      %v632 = vpop.f32.mrb[0].mxu0
      %v633 = vpop.f32.mrb[0].mxu0
      %v634 = vadd.f32 %v403, %v633
      %v635 = vpop.f32.mrb[0].mxu0
      %636 = vmatprep.mubr.bf16.mxu0 0
      %637 = vmatmul.mubr.bf16.gmra.mrb[0].mxu0 %v517
      %v638 = vpop.f32.mrb[0].mxu0
      %v639 = vadd.f32 %v403, %v638
      %v640 = vpop.f32.mrb[0].mxu0
      %v641 = vpop.f32.mrb[0].mxu0
      %v642 = vadd.f32 %v403, %v641
      %v643 = vpop.f32.mrb[0].mxu0
      %644 = vmatprep.mubr.bf16.mxu0 0
      %645 = vmatmul.mubr.bf16.gmra.mrb[0].mxu0 %v520
      %v646 = vpop.f32.mrb[0].mxu0
      %v647 = vadd.f32 %v403, %v646
      %v648 = vpop.f32.mrb[0].mxu0
      %v649 = vpop.f32.mrb[0].mxu0
      %v650 = vadd.f32 %v403, %v649
      %v651 = vpop.f32.mrb[0].mxu0
      %652 = vmatprep.mubr.bf16.mxu0 0
      %653 = vmatmul.mubr.bf16.gmra.mrb[0].mxu0 %v523
      %v654 = vpop.f32.mrb[0].mxu0
      %v655 = vadd.f32 %v403, %v654
      %v656 = vpop.f32.mrb[0].mxu0
      %v657 = vpop.f32.mrb[0].mxu0
      %v658 = vadd.f32 %v403, %v657
      %v659 = vpop.f32.mrb[0].mxu0
      %660 = vmatprep.mubr.bf16.mxu0 0
      %661 = vmatmul.mubr.bf16.gmra.mrb[0].mxu0 %v526
      %v662 = vpop.f32.mrb[0].mxu0
      %v663 = vadd.f32 %v403, %v662
      %v664 = vpop.f32.mrb[0].mxu0
      %v665 = vpop.f32.mrb[0].mxu0
      %v666 = vadd.f32 %v403, %v665
      %v667 = vpop.f32.mrb[0].mxu0
      %668 = vmatprep.mubr.bf16.mxu0 0
      %669 = vmatmul.mubr.bf16.gmra.mrb[0].mxu0 %v529
      %v670 = vpop.f32.mrb[0].mxu0
      %v671 = vadd.f32 %v403, %v670
      %v672 = vpop.f32.mrb[0].mxu0
      %v673 = vpop.f32.mrb[0].mxu0
      %v674 = vadd.f32 %v403, %v673
      %v675 = vpop.f32.mrb[0].mxu0
      %676 = vmatprep.mubr.bf16.mxu0 0
      %677 = vmatmul.mubr.bf16.gmra.mrb[0].mxu0 %v532
      %v678 = vpop.f32.mrb[0].mxu0
      %v679 = vadd.f32 %v403, %v678
      %v680 = vpop.f32.mrb[0].mxu0
      %v681 = vpop.f32.mrb[0].mxu0
      %v682 = vadd.f32 %v403, %v681
      %v683 = vpop.f32.mrb[0].mxu0
      %684 = vmatprep.mubr.bf16.mxu0 0
      %685 = vmatmul.mubr.bf16.gmra.mrb[0].mxu0 %v535
      %v686 = vpop.f32.mrb[0].mxu0
      %v687 = vadd.f32 %v403, %v686
      %v688 = vpop.f32.mrb[0].mxu0
      %v689 = vpop.f32.mrb[0].mxu0
      %v690 = vadd.f32 %v403, %v689
      %v691 = vpop.f32.mrb[0].mxu0
      %692 = vmatprep.mubr.bf16.mxu0 0
      %693 = vmatmul.mubr.bf16.gmra.mrb[0].mxu0 %v538
      %v694 = vpop.f32.mrb[0].mxu0
      %v695 = vadd.f32 %v403, %v694
      %v696 = vpop.f32.mrb[0].mxu0
      %v697 = vpop.f32.mrb[0].mxu0
      %v698 = vadd.f32 %v403, %v697
      %v699 = vpop.f32.mrb[0].mxu0
      %700 = vdwg.mxu0
      %v701 = vxor.u32 %v575, 2147483648
      %v702 = vxor.u32 %v578, 2147483648
      %v703 = vxor.u32 %v583, 2147483648
      %v704 = vxor.u32 %v586, 2147483648
      %v705 = vxor.u32 %v591, 2147483648
      %v706 = vxor.u32 %v594, 2147483648
      %v707 = vxor.u32 %v599, 2147483648
      %v708 = vxor.u32 %v602, 2147483648
      %v709 = vxor.u32 %v607, 2147483648
      %v710 = vxor.u32 %v610, 2147483648
      %v711 = vxor.u32 %v615, 2147483648
      %v712 = vxor.u32 %v618, 2147483648
      %v713 = vxor.u32 %v623, 2147483648
      %v714 = vxor.u32 %v626, 2147483648
      %v715 = vxor.u32 %v631, 2147483648
      %v716 = vxor.u32 %v634, 2147483648
      %v717 = vxor.u32 %v639, 2147483648
      %v718 = vxor.u32 %v642, 2147483648
      %v719 = vxor.u32 %v647, 2147483648
      %v720 = vxor.u32 %v650, 2147483648
      %v721 = vxor.u32 %v655, 2147483648
      %v722 = vxor.u32 %v658, 2147483648
      %v723 = vxor.u32 %v663, 2147483648
      %v724 = vxor.u32 %v666, 2147483648
      %v725 = vxor.u32 %v671, 2147483648
      %v726 = vxor.u32 %v674, 2147483648
      %v727 = vxor.u32 %v679, 2147483648
      %v728 = vxor.u32 %v682, 2147483648
      %v729 = vxor.u32 %v687, 2147483648
      %v730 = vxor.u32 %v690, 2147483648
      %v731 = vxor.u32 %v695, 2147483648
      %v732 = vxor.u32 %v698, 2147483648
      %v733 = vmul.f32 %v701, 1.442695
      %v734 = vpow.pop %v733
      %v735 = vmul.f32 %v702, 1.442695
      %v736 = vpow.pop %v735
      %v737 = vmul.f32 %v703, 1.442695
      %v738 = vpow.pop %v737
      %v739 = vmul.f32 %v704, 1.442695
      %v740 = vpow.pop %v739
      %v741 = vmul.f32 %v705, 1.442695
      %v742 = vpow.pop %v741
      %v743 = vmul.f32 %v706, 1.442695
      %v744 = vpow.pop %v743
      %v745 = vmul.f32 %v707, 1.442695
      %v746 = vpow.pop %v745
      %v747 = vmul.f32 %v708, 1.442695
      %v748 = vpow.pop %v747
      %v749 = vmul.f32 %v709, 1.442695
      %v750 = vpow.pop %v749
      %v751 = vmul.f32 %v710, 1.442695
      %v752 = vpow.pop %v751
      %v753 = vmul.f32 %v711, 1.442695
      %v754 = vpow.pop %v753
      %v755 = vmul.f32 %v712, 1.442695
      %v756 = vpow.pop %v755
      %v757 = vmul.f32 %v713, 1.442695
      %v758 = vpow.pop %v757
      %v759 = vmul.f32 %v714, 1.442695
      %v760 = vpow.pop %v759
      %v761 = vmul.f32 %v715, 1.442695
      %v762 = vpow.pop %v761
      %v763 = vmul.f32 %v716, 1.442695
      %v764 = vpow.pop %v763
      %v765 = vmul.f32 %v717, 1.442695
      %v766 = vpow.pop %v765
      %v767 = vmul.f32 %v718, 1.442695
      %v768 = vpow.pop %v767
      %v769 = vmul.f32 %v719, 1.442695
      %v770 = vpow.pop %v769
      %v771 = vmul.f32 %v720, 1.442695
      %v772 = vpow.pop %v771
      %v773 = vmul.f32 %v721, 1.442695
      %v774 = vpow.pop %v773
      %v775 = vmul.f32 %v722, 1.442695
      %v776 = vpow.pop %v775
      %v777 = vmul.f32 %v723, 1.442695
      %v778 = vpow.pop %v777
      %v779 = vmul.f32 %v724, 1.442695
      %v780 = vpow.pop %v779
      %v781 = vmul.f32 %v725, 1.442695
      %v782 = vpow.pop %v781
      %v783 = vmul.f32 %v726, 1.442695
      %v784 = vpow.pop %v783
      %v785 = vmul.f32 %v727, 1.442695
      %v786 = vpow.pop %v785
      %v787 = vmul.f32 %v728, 1.442695
      %v788 = vpow.pop %v787
      %v789 = vmul.f32 %v729, 1.442695
      %v790 = vpow.pop %v789
      %v791 = vmul.f32 %v730, 1.442695
      %v792 = vpow.pop %v791
      %v793 = vmul.f32 %v731, 1.442695
      %v794 = vpow.pop %v793
      %v795 = vmul.f32 %v732, 1.442695
      %v796 = vpow.pop %v795
      %v797 = vadd.f32 %v734, 1.0
      %v798 = vadd.f32 %v736, 1.0
      %v799 = vadd.f32 %v738, 1.0
      %v800 = vadd.f32 %v740, 1.0
      %v801 = vadd.f32 %v742, 1.0
      %v802 = vadd.f32 %v744, 1.0
      %v803 = vadd.f32 %v746, 1.0
      %v804 = vadd.f32 %v748, 1.0
      %v805 = vadd.f32 %v750, 1.0
      %v806 = vadd.f32 %v752, 1.0
      %v807 = vadd.f32 %v754, 1.0
      %v808 = vadd.f32 %v756, 1.0
      %v809 = vadd.f32 %v758, 1.0
      %v810 = vadd.f32 %v760, 1.0
      %v811 = vadd.f32 %v762, 1.0
      %v812 = vadd.f32 %v764, 1.0
      %v813 = vadd.f32 %v766, 1.0
      %v814 = vadd.f32 %v768, 1.0
      %v815 = vadd.f32 %v770, 1.0
      %v816 = vadd.f32 %v772, 1.0
      %v817 = vadd.f32 %v774, 1.0
      %v818 = vadd.f32 %v776, 1.0
      %v819 = vadd.f32 %v778, 1.0
      %v820 = vadd.f32 %v780, 1.0
      %v821 = vadd.f32 %v782, 1.0
      %v822 = vadd.f32 %v784, 1.0
      %v823 = vadd.f32 %v786, 1.0
      %v824 = vadd.f32 %v788, 1.0
      %v825 = vadd.f32 %v790, 1.0
      %v826 = vadd.f32 %v792, 1.0
      %v827 = vadd.f32 %v794, 1.0
      %v828 = vadd.f32 %v796, 1.0
      %v829 = vrcp.pop %v797
      %v830 = vmul.f32 1.0, %v829
      %v831 = vrcp.pop %v798
      %v832 = vmul.f32 1.0, %v831
      %v833 = vrcp.pop %v799
      %v834 = vmul.f32 1.0, %v833
      %v835 = vrcp.pop %v800
      %v836 = vmul.f32 1.0, %v835
      %v837 = vrcp.pop %v801
      %v838 = vmul.f32 1.0, %v837
      %v839 = vrcp.pop %v802
      %v840 = vmul.f32 1.0, %v839
      %v841 = vrcp.pop %v803
      %v842 = vmul.f32 1.0, %v841
      %v843 = vrcp.pop %v804
      %v844 = vmul.f32 1.0, %v843
      %v845 = vrcp.pop %v805
      %v846 = vmul.f32 1.0, %v845
      %v847 = vrcp.pop %v806
      %v848 = vmul.f32 1.0, %v847
      %v849 = vrcp.pop %v807
      %v850 = vmul.f32 1.0, %v849
      %v851 = vrcp.pop %v808
      %v852 = vmul.f32 1.0, %v851
      %v853 = vrcp.pop %v809
      %v854 = vmul.f32 1.0, %v853
      %v855 = vrcp.pop %v810
      %v856 = vmul.f32 1.0, %v855
      %v857 = vrcp.pop %v811
      %v858 = vmul.f32 1.0, %v857
      %v859 = vrcp.pop %v812
      %v860 = vmul.f32 1.0, %v859
      %v861 = vrcp.pop %v813
      %v862 = vmul.f32 1.0, %v861
      %v863 = vrcp.pop %v814
      %v864 = vmul.f32 1.0, %v863
      %v865 = vrcp.pop %v815
      %v866 = vmul.f32 1.0, %v865
      %v867 = vrcp.pop %v816
      %v868 = vmul.f32 1.0, %v867
      %v869 = vrcp.pop %v817
      %v870 = vmul.f32 1.0, %v869
      %v871 = vrcp.pop %v818
      %v872 = vmul.f32 1.0, %v871
      %v873 = vrcp.pop %v819
      %v874 = vmul.f32 1.0, %v873
      %v875 = vrcp.pop %v820
      %v876 = vmul.f32 1.0, %v875
      %v877 = vrcp.pop %v821
      %v878 = vmul.f32 1.0, %v877
      %v879 = vrcp.pop %v822
      %v880 = vmul.f32 1.0, %v879
      %v881 = vrcp.pop %v823
      %v882 = vmul.f32 1.0, %v881
      %v883 = vrcp.pop %v824
      %v884 = vmul.f32 1.0, %v883
      %v885 = vrcp.pop %v825
      %v886 = vmul.f32 1.0, %v885
      %v887 = vrcp.pop %v826
      %v888 = vmul.f32 1.0, %v887
      %v889 = vrcp.pop %v827
      %v890 = vmul.f32 1.0, %v889
      %v891 = vrcp.pop %v828
      %v892 = vmul.f32 1.0, %v891
      %v893 = vmul.f32 %v575, %v830
      %v894 = vmul.f32 %v578, %v832
      %v895 = vmul.f32 %v583, %v834
      %v896 = vmul.f32 %v586, %v836
      %v897 = vmul.f32 %v591, %v838
      %v898 = vmul.f32 %v594, %v840
      %v899 = vmul.f32 %v599, %v842
      %v900 = vmul.f32 %v602, %v844
      %v901 = vmul.f32 %v607, %v846
      %v902 = vmul.f32 %v610, %v848
      %v903 = vmul.f32 %v615, %v850
      %v904 = vmul.f32 %v618, %v852
      %v905 = vmul.f32 %v623, %v854
      %v906 = vmul.f32 %v626, %v856
      %v907 = vmul.f32 %v631, %v858
      %v908 = vmul.f32 %v634, %v860
      %v909 = vmul.f32 %v639, %v862
      %v910 = vmul.f32 %v642, %v864
      %v911 = vmul.f32 %v647, %v866
      %v912 = vmul.f32 %v650, %v868
      %v913 = vmul.f32 %v655, %v870
      %v914 = vmul.f32 %v658, %v872
      %v915 = vmul.f32 %v663, %v874
      %v916 = vmul.f32 %v666, %v876
      %v917 = vmul.f32 %v671, %v878
      %v918 = vmul.f32 %v674, %v880
      %v919 = vmul.f32 %v679, %v882
      %v920 = vmul.f32 %v682, %v884
      %v921 = vmul.f32 %v687, %v886
      %v922 = vmul.f32 %v690, %v888
      %v923 = vmul.f32 %v695, %v890
      %v924 = vmul.f32 %v698, %v892
      %v925 = vpack.c.bf16 %v894, %v893
      %v926 = vpack.c.bf16 %v896, %v895
      %v927 = vpack.c.bf16 %v898, %v897
      %v928 = vpack.c.bf16 %v900, %v899
      %v929 = vpack.c.bf16 %v902, %v901
      %v930 = vpack.c.bf16 %v904, %v903
      %v931 = vpack.c.bf16 %v906, %v905
      %v932 = vpack.c.bf16 %v908, %v907
      %v933 = vpack.c.bf16 %v910, %v909
      %v934 = vpack.c.bf16 %v912, %v911
      %v935 = vpack.c.bf16 %v914, %v913
      %v936 = vpack.c.bf16 %v916, %v915
      %v937 = vpack.c.bf16 %v918, %v917
      %v938 = vpack.c.bf16 %v920, %v919
      %v939 = vpack.c.bf16 %v922, %v921
      %v940 = vpack.c.bf16 %v924, %v923
      %v941 = vld [vmem:[%s3] sm:$0xf]
      %v942 = vld [vmem:[%s4] sm:$0x1]
      %v944 = vlaneseq
      %v945 = vshrl.u32 %v944, 7
      %v946 = vsub.s32 0, %v945
      %v947 = vrot.slane %v942, %v946
      %vm949 = vcmask 64512
      %v951 = vsel %vm949, %v925, 0
      %v954 = vsel %vm949, %v926, 0
      %v957 = vsel %vm949, %v927, 0
      %v960 = vsel %vm949, %v928, 0
      %v963 = vsel %vm949, %v929, 0
      %v966 = vsel %vm949, %v930, 0
      %v969 = vsel %vm949, %v931, 0
      %v972 = vsel %vm949, %v932, 0
      %v975 = vsel %vm949, %v933, 0
      %v978 = vsel %vm949, %v934, 0
      %v981 = vsel %vm949, %v935, 0
      %v984 = vsel %vm949, %v936, 0
      %v987 = vsel %vm949, %v937, 0
      %v990 = vsel %vm949, %v938, 0
      %v993 = vsel %vm949, %v939, 0
      %v996 = vsel %vm949, %v940, 0
      %vm998 = vcmask 1043456
      %v1000 = vsel %vm998, %v941, 0
      %1002 = vmatprep.subr.bf16.mxu0 0
      %1003 = vmatpush1.bf16.msra.mxu0 %v1000
      %1004 = vmatprep.subr.bf16.mxu0 0
      %1005 = vmatpush1.bf16.msra.mxu0 0
      %1006 = vmatprep.subr.bf16.mxu0 0
      %1007 = vmatpush1.bf16.msra.mxu0 0
      %1008 = vmatprep.subr.bf16.mxu0 0
      %1009 = vmatpush1.bf16.msra.mxu0 0
      %1010 = vmatprep.subr.bf16.mxu0 0
      %1011 = vmatpush1.bf16.msra.mxu0 0
      %1012 = vmatprep.subr.bf16.mxu0 0
      %1013 = vmatpush1.bf16.msra.mxu0 0
      %1014 = vmatprep.subr.bf16.mxu0 0
      %1015 = vmatpush1.bf16.msra.mxu0 0
      %1016 = vmatprep.subr.bf16.mxu0 0
      %1017 = vmatpush1.bf16.msra.mxu0 0
      %1018 = vmatprep.subr.bf16.mxu0 0
      %1019 = vmatpush1.bf16.msra.mxu0 0
      %1020 = vmatprep.subr.bf16.mxu0 0
      %1021 = vmatpush1.bf16.msra.mxu0 0
      %1022 = vmatprep.subr.bf16.mxu0 0
      %1023 = vmatpush1.bf16.msra.mxu0 0
      %1024 = vmatprep.subr.bf16.mxu0 0
      %1025 = vmatpush1.bf16.msra.mxu0 0
      %1026 = vmatprep.subr.bf16.mxu0 0
      %1027 = vmatpush1.bf16.msra.mxu0 0
      %1028 = vmatprep.subr.bf16.mxu0 0
      %1029 = vmatpush1.bf16.msra.mxu0 0
      %1030 = vmatprep.subr.bf16.mxu0 0
      %1031 = vmatpush1.bf16.msra.mxu0 0
      %1032 = vmatprep.subr.bf16.mxu0 0
      %1033 = vmatpush1.bf16.msra.mxu0 0
      %1034 = vmatprep.mubr.bf16.mxu0 0
      %1035 = vmatmul.mubr.bf16.gmra.mrb[0].mxu0 %v951
      %v1036 = vpop.f32.mrb[0].mxu0
      %v1037 = vadd.f32 %v947, %v1036
      %v1038 = vpop.f32.mrb[0].mxu0
      %v1039 = vpop.f32.mrb[0].mxu0
      %v1040 = vadd.f32 %v947, %v1039
      %v1041 = vpop.f32.mrb[0].mxu0
      %1042 = vmatprep.mubr.bf16.mxu0 0
      %1043 = vmatmul.mubr.bf16.gmra.mrb[0].mxu0 %v954
      %v1044 = vpop.f32.mrb[0].mxu0
      %v1045 = vadd.f32 %v947, %v1044
      %v1046 = vpop.f32.mrb[0].mxu0
      %v1047 = vpop.f32.mrb[0].mxu0
      %v1048 = vadd.f32 %v947, %v1047
      %v1049 = vpop.f32.mrb[0].mxu0
      %1050 = vmatprep.mubr.bf16.mxu0 0
      %1051 = vmatmul.mubr.bf16.gmra.mrb[0].mxu0 %v957
      %v1052 = vpop.f32.mrb[0].mxu0
      %v1053 = vadd.f32 %v947, %v1052
      %v1054 = vpop.f32.mrb[0].mxu0
      %v1055 = vpop.f32.mrb[0].mxu0
      %v1056 = vadd.f32 %v947, %v1055
      %v1057 = vpop.f32.mrb[0].mxu0
      %1058 = vmatprep.mubr.bf16.mxu0 0
      %1059 = vmatmul.mubr.bf16.gmra.mrb[0].mxu0 %v960
      %v1060 = vpop.f32.mrb[0].mxu0
      %v1061 = vadd.f32 %v947, %v1060
      %v1062 = vpop.f32.mrb[0].mxu0
      %v1063 = vpop.f32.mrb[0].mxu0
      %v1064 = vadd.f32 %v947, %v1063
      %v1065 = vpop.f32.mrb[0].mxu0
      %1066 = vmatprep.mubr.bf16.mxu0 0
      %1067 = vmatmul.mubr.bf16.gmra.mrb[0].mxu0 %v963
      %v1068 = vpop.f32.mrb[0].mxu0
      %v1069 = vadd.f32 %v947, %v1068
      %v1070 = vpop.f32.mrb[0].mxu0
      %v1071 = vpop.f32.mrb[0].mxu0
      %v1072 = vadd.f32 %v947, %v1071
      %v1073 = vpop.f32.mrb[0].mxu0
      %1074 = vmatprep.mubr.bf16.mxu0 0
      %1075 = vmatmul.mubr.bf16.gmra.mrb[0].mxu0 %v966
      %v1076 = vpop.f32.mrb[0].mxu0
      %v1077 = vadd.f32 %v947, %v1076
      %v1078 = vpop.f32.mrb[0].mxu0
      %v1079 = vpop.f32.mrb[0].mxu0
      %v1080 = vadd.f32 %v947, %v1079
      %v1081 = vpop.f32.mrb[0].mxu0
      %1082 = vmatprep.mubr.bf16.mxu0 0
      %1083 = vmatmul.mubr.bf16.gmra.mrb[0].mxu0 %v969
      %v1084 = vpop.f32.mrb[0].mxu0
      %v1085 = vadd.f32 %v947, %v1084
      %v1086 = vpop.f32.mrb[0].mxu0
      %v1087 = vpop.f32.mrb[0].mxu0
      %v1088 = vadd.f32 %v947, %v1087
      %v1089 = vpop.f32.mrb[0].mxu0
      %1090 = vmatprep.mubr.bf16.mxu0 0
      %1091 = vmatmul.mubr.bf16.gmra.mrb[0].mxu0 %v972
      %v1092 = vpop.f32.mrb[0].mxu0
      %v1093 = vadd.f32 %v947, %v1092
      %v1094 = vpop.f32.mrb[0].mxu0
      %v1095 = vpop.f32.mrb[0].mxu0
      %v1096 = vadd.f32 %v947, %v1095
      %v1097 = vpop.f32.mrb[0].mxu0
      %1098 = vmatprep.mubr.bf16.mxu0 0
      %1099 = vmatmul.mubr.bf16.gmra.mrb[0].mxu0 %v975
      %v1100 = vpop.f32.mrb[0].mxu0
      %v1101 = vadd.f32 %v947, %v1100
      %v1102 = vpop.f32.mrb[0].mxu0
      %v1103 = vpop.f32.mrb[0].mxu0
      %v1104 = vadd.f32 %v947, %v1103
      %v1105 = vpop.f32.mrb[0].mxu0
      %1106 = vmatprep.mubr.bf16.mxu0 0
      %1107 = vmatmul.mubr.bf16.gmra.mrb[0].mxu0 %v978
      %v1108 = vpop.f32.mrb[0].mxu0
      %v1109 = vadd.f32 %v947, %v1108
      %v1110 = vpop.f32.mrb[0].mxu0
      %v1111 = vpop.f32.mrb[0].mxu0
      %v1112 = vadd.f32 %v947, %v1111
      %v1113 = vpop.f32.mrb[0].mxu0
      %1114 = vmatprep.mubr.bf16.mxu0 0
      %1115 = vmatmul.mubr.bf16.gmra.mrb[0].mxu0 %v981
      %v1116 = vpop.f32.mrb[0].mxu0
      %v1117 = vadd.f32 %v947, %v1116
      %v1118 = vpop.f32.mrb[0].mxu0
      %v1119 = vpop.f32.mrb[0].mxu0
      %v1120 = vadd.f32 %v947, %v1119
      %v1121 = vpop.f32.mrb[0].mxu0
      %1122 = vmatprep.mubr.bf16.mxu0 0
      %1123 = vmatmul.mubr.bf16.gmra.mrb[0].mxu0 %v984
      %v1124 = vpop.f32.mrb[0].mxu0
      %v1125 = vadd.f32 %v947, %v1124
      %v1126 = vpop.f32.mrb[0].mxu0
      %v1127 = vpop.f32.mrb[0].mxu0
      %v1128 = vadd.f32 %v947, %v1127
      %v1129 = vpop.f32.mrb[0].mxu0
      %1130 = vmatprep.mubr.bf16.mxu0 0
      %1131 = vmatmul.mubr.bf16.gmra.mrb[0].mxu0 %v987
      %v1132 = vpop.f32.mrb[0].mxu0
      %v1133 = vadd.f32 %v947, %v1132
      %v1134 = vpop.f32.mrb[0].mxu0
      %v1135 = vpop.f32.mrb[0].mxu0
      %v1136 = vadd.f32 %v947, %v1135
      %v1137 = vpop.f32.mrb[0].mxu0
      %1138 = vmatprep.mubr.bf16.mxu0 0
      %1139 = vmatmul.mubr.bf16.gmra.mrb[0].mxu0 %v990
      %v1140 = vpop.f32.mrb[0].mxu0
      %v1141 = vadd.f32 %v947, %v1140
      %v1142 = vpop.f32.mrb[0].mxu0
      %v1143 = vpop.f32.mrb[0].mxu0
      %v1144 = vadd.f32 %v947, %v1143
      %v1145 = vpop.f32.mrb[0].mxu0
      %1146 = vmatprep.mubr.bf16.mxu0 0
      %1147 = vmatmul.mubr.bf16.gmra.mrb[0].mxu0 %v993
      %v1148 = vpop.f32.mrb[0].mxu0
      %v1149 = vadd.f32 %v947, %v1148
      %v1150 = vpop.f32.mrb[0].mxu0
      %v1151 = vpop.f32.mrb[0].mxu0
      %v1152 = vadd.f32 %v947, %v1151
      %v1153 = vpop.f32.mrb[0].mxu0
      %1154 = vmatprep.mubr.bf16.mxu0 0
      %1155 = vmatmul.mubr.bf16.gmra.mrb[0].mxu0 %v996
      %v1156 = vpop.f32.mrb[0].mxu0
      %v1157 = vadd.f32 %v947, %v1156
      %v1158 = vpop.f32.mrb[0].mxu0
      %v1159 = vpop.f32.mrb[0].mxu0
      %v1160 = vadd.f32 %v947, %v1159
      %v1161 = vpop.f32.mrb[0].mxu0
      %1162 = vdwg.mxu0
      %v1163 = vxor.u32 %v1037, 2147483648
      %v1164 = vxor.u32 %v1040, 2147483648
      %v1165 = vxor.u32 %v1045, 2147483648
      %v1166 = vxor.u32 %v1048, 2147483648
      %v1167 = vxor.u32 %v1053, 2147483648
      %v1168 = vxor.u32 %v1056, 2147483648
      %v1169 = vxor.u32 %v1061, 2147483648
      %v1170 = vxor.u32 %v1064, 2147483648
      %v1171 = vxor.u32 %v1069, 2147483648
      %v1172 = vxor.u32 %v1072, 2147483648
      %v1173 = vxor.u32 %v1077, 2147483648
      %v1174 = vxor.u32 %v1080, 2147483648
      %v1175 = vxor.u32 %v1085, 2147483648
      %v1176 = vxor.u32 %v1088, 2147483648
      %v1177 = vxor.u32 %v1093, 2147483648
      %v1178 = vxor.u32 %v1096, 2147483648
      %v1179 = vxor.u32 %v1101, 2147483648
      %v1180 = vxor.u32 %v1104, 2147483648
      %v1181 = vxor.u32 %v1109, 2147483648
      %v1182 = vxor.u32 %v1112, 2147483648
      %v1183 = vxor.u32 %v1117, 2147483648
      %v1184 = vxor.u32 %v1120, 2147483648
      %v1185 = vxor.u32 %v1125, 2147483648
      %v1186 = vxor.u32 %v1128, 2147483648
      %v1187 = vxor.u32 %v1133, 2147483648
      %v1188 = vxor.u32 %v1136, 2147483648
      %v1189 = vxor.u32 %v1141, 2147483648
      %v1190 = vxor.u32 %v1144, 2147483648
      %v1191 = vxor.u32 %v1149, 2147483648
      %v1192 = vxor.u32 %v1152, 2147483648
      %v1193 = vxor.u32 %v1157, 2147483648
      %v1194 = vxor.u32 %v1160, 2147483648
      %v1195 = vmul.f32 %v1163, 1.442695
      %v1196 = vpow.pop %v1195
      %v1197 = vmul.f32 %v1164, 1.442695
      %v1198 = vpow.pop %v1197
      %v1199 = vmul.f32 %v1165, 1.442695
      %v1200 = vpow.pop %v1199
      %v1201 = vmul.f32 %v1166, 1.442695
      %v1202 = vpow.pop %v1201
      %v1203 = vmul.f32 %v1167, 1.442695
      %v1204 = vpow.pop %v1203
      %v1205 = vmul.f32 %v1168, 1.442695
      %v1206 = vpow.pop %v1205
      %v1207 = vmul.f32 %v1169, 1.442695
      %v1208 = vpow.pop %v1207
      %v1209 = vmul.f32 %v1170, 1.442695
      %v1210 = vpow.pop %v1209
      %v1211 = vmul.f32 %v1171, 1.442695
      %v1212 = vpow.pop %v1211
      %v1213 = vmul.f32 %v1172, 1.442695
      %v1214 = vpow.pop %v1213
      %v1215 = vmul.f32 %v1173, 1.442695
      %v1216 = vpow.pop %v1215
      %v1217 = vmul.f32 %v1174, 1.442695
      %v1218 = vpow.pop %v1217
      %v1219 = vmul.f32 %v1175, 1.442695
      %v1220 = vpow.pop %v1219
      %v1221 = vmul.f32 %v1176, 1.442695
      %v1222 = vpow.pop %v1221
      %v1223 = vmul.f32 %v1177, 1.442695
      %v1224 = vpow.pop %v1223
      %v1225 = vmul.f32 %v1178, 1.442695
      %v1226 = vpow.pop %v1225
      %v1227 = vmul.f32 %v1179, 1.442695
      %v1228 = vpow.pop %v1227
      %v1229 = vmul.f32 %v1180, 1.442695
      %v1230 = vpow.pop %v1229
      %v1231 = vmul.f32 %v1181, 1.442695
      %v1232 = vpow.pop %v1231
      %v1233 = vmul.f32 %v1182, 1.442695
      %v1234 = vpow.pop %v1233
      %v1235 = vmul.f32 %v1183, 1.442695
      %v1236 = vpow.pop %v1235
      %v1237 = vmul.f32 %v1184, 1.442695
      %v1238 = vpow.pop %v1237
      %v1239 = vmul.f32 %v1185, 1.442695
      %v1240 = vpow.pop %v1239
      %v1241 = vmul.f32 %v1186, 1.442695
      %v1242 = vpow.pop %v1241
      %v1243 = vmul.f32 %v1187, 1.442695
      %v1244 = vpow.pop %v1243
      %v1245 = vmul.f32 %v1188, 1.442695
      %v1246 = vpow.pop %v1245
      %v1247 = vmul.f32 %v1189, 1.442695
      %v1248 = vpow.pop %v1247
      %v1249 = vmul.f32 %v1190, 1.442695
      %v1250 = vpow.pop %v1249
      %v1251 = vmul.f32 %v1191, 1.442695
      %v1252 = vpow.pop %v1251
      %v1253 = vmul.f32 %v1192, 1.442695
      %v1254 = vpow.pop %v1253
      %v1255 = vmul.f32 %v1193, 1.442695
      %v1256 = vpow.pop %v1255
      %v1257 = vmul.f32 %v1194, 1.442695
      %v1258 = vpow.pop %v1257
      %v1259 = vadd.f32 %v1196, 1.0
      %v1260 = vadd.f32 %v1198, 1.0
      %v1261 = vadd.f32 %v1200, 1.0
      %v1262 = vadd.f32 %v1202, 1.0
      %v1263 = vadd.f32 %v1204, 1.0
      %v1264 = vadd.f32 %v1206, 1.0
      %v1265 = vadd.f32 %v1208, 1.0
      %v1266 = vadd.f32 %v1210, 1.0
      %v1267 = vadd.f32 %v1212, 1.0
      %v1268 = vadd.f32 %v1214, 1.0
      %v1269 = vadd.f32 %v1216, 1.0
      %v1270 = vadd.f32 %v1218, 1.0
      %v1271 = vadd.f32 %v1220, 1.0
      %v1272 = vadd.f32 %v1222, 1.0
      %v1273 = vadd.f32 %v1224, 1.0
      %v1274 = vadd.f32 %v1226, 1.0
      %v1275 = vadd.f32 %v1228, 1.0
      %v1276 = vadd.f32 %v1230, 1.0
      %v1277 = vadd.f32 %v1232, 1.0
      %v1278 = vadd.f32 %v1234, 1.0
      %v1279 = vadd.f32 %v1236, 1.0
      %v1280 = vadd.f32 %v1238, 1.0
      %v1281 = vadd.f32 %v1240, 1.0
      %v1282 = vadd.f32 %v1242, 1.0
      %v1283 = vadd.f32 %v1244, 1.0
      %v1284 = vadd.f32 %v1246, 1.0
      %v1285 = vadd.f32 %v1248, 1.0
      %v1286 = vadd.f32 %v1250, 1.0
      %v1287 = vadd.f32 %v1252, 1.0
      %v1288 = vadd.f32 %v1254, 1.0
      %v1289 = vadd.f32 %v1256, 1.0
      %v1290 = vadd.f32 %v1258, 1.0
      %v1291 = vrcp.pop %v1259
      %v1292 = vmul.f32 1.0, %v1291
      %v1293 = vrcp.pop %v1260
      %v1294 = vmul.f32 1.0, %v1293
      %v1295 = vrcp.pop %v1261
      %v1296 = vmul.f32 1.0, %v1295
      %v1297 = vrcp.pop %v1262
      %v1298 = vmul.f32 1.0, %v1297
      %v1299 = vrcp.pop %v1263
      %v1300 = vmul.f32 1.0, %v1299
      %v1301 = vrcp.pop %v1264
      %v1302 = vmul.f32 1.0, %v1301
      %v1303 = vrcp.pop %v1265
      %v1304 = vmul.f32 1.0, %v1303
      %v1305 = vrcp.pop %v1266
      %v1306 = vmul.f32 1.0, %v1305
      %v1307 = vrcp.pop %v1267
      %v1308 = vmul.f32 1.0, %v1307
      %v1309 = vrcp.pop %v1268
      %v1310 = vmul.f32 1.0, %v1309
      %v1311 = vrcp.pop %v1269
      %v1312 = vmul.f32 1.0, %v1311
      %v1313 = vrcp.pop %v1270
      %v1314 = vmul.f32 1.0, %v1313
      %v1315 = vrcp.pop %v1271
      %v1316 = vmul.f32 1.0, %v1315
      %v1317 = vrcp.pop %v1272
      %v1318 = vmul.f32 1.0, %v1317
      %v1319 = vrcp.pop %v1273
      %v1320 = vmul.f32 1.0, %v1319
      %v1321 = vrcp.pop %v1274
      %v1322 = vmul.f32 1.0, %v1321
      %v1323 = vrcp.pop %v1275
      %v1324 = vmul.f32 1.0, %v1323
      %v1325 = vrcp.pop %v1276
      %v1326 = vmul.f32 1.0, %v1325
      %v1327 = vrcp.pop %v1277
      %v1328 = vmul.f32 1.0, %v1327
      %v1329 = vrcp.pop %v1278
      %v1330 = vmul.f32 1.0, %v1329
      %v1331 = vrcp.pop %v1279
      %v1332 = vmul.f32 1.0, %v1331
      %v1333 = vrcp.pop %v1280
      %v1334 = vmul.f32 1.0, %v1333
      %v1335 = vrcp.pop %v1281
      %v1336 = vmul.f32 1.0, %v1335
      %v1337 = vrcp.pop %v1282
      %v1338 = vmul.f32 1.0, %v1337
      %v1339 = vrcp.pop %v1283
      %v1340 = vmul.f32 1.0, %v1339
      %v1341 = vrcp.pop %v1284
      %v1342 = vmul.f32 1.0, %v1341
      %v1343 = vrcp.pop %v1285
      %v1344 = vmul.f32 1.0, %v1343
      %v1345 = vrcp.pop %v1286
      %v1346 = vmul.f32 1.0, %v1345
      %v1347 = vrcp.pop %v1287
      %v1348 = vmul.f32 1.0, %v1347
      %v1349 = vrcp.pop %v1288
      %v1350 = vmul.f32 1.0, %v1349
      %v1351 = vrcp.pop %v1289
      %v1352 = vmul.f32 1.0, %v1351
      %v1353 = vrcp.pop %v1290
      %v1354 = vmul.f32 1.0, %v1353
      %v1355 = vmul.f32 %v1037, %v1292
      %v1356 = vmul.f32 %v1040, %v1294
      %v1357 = vmul.f32 %v1045, %v1296
      %v1358 = vmul.f32 %v1048, %v1298
      %v1359 = vmul.f32 %v1053, %v1300
      %v1360 = vmul.f32 %v1056, %v1302
      %v1361 = vmul.f32 %v1061, %v1304
      %v1362 = vmul.f32 %v1064, %v1306
      %v1363 = vmul.f32 %v1069, %v1308
      %v1364 = vmul.f32 %v1072, %v1310
      %v1365 = vmul.f32 %v1077, %v1312
      %v1366 = vmul.f32 %v1080, %v1314
      %v1367 = vmul.f32 %v1085, %v1316
      %v1368 = vmul.f32 %v1088, %v1318
      %v1369 = vmul.f32 %v1093, %v1320
      %v1370 = vmul.f32 %v1096, %v1322
      %v1371 = vmul.f32 %v1101, %v1324
      %v1372 = vmul.f32 %v1104, %v1326
      %v1373 = vmul.f32 %v1109, %v1328
      %v1374 = vmul.f32 %v1112, %v1330
      %v1375 = vmul.f32 %v1117, %v1332
      %v1376 = vmul.f32 %v1120, %v1334
      %v1377 = vmul.f32 %v1125, %v1336
      %v1378 = vmul.f32 %v1128, %v1338
      %v1379 = vmul.f32 %v1133, %v1340
      %v1380 = vmul.f32 %v1136, %v1342
      %v1381 = vmul.f32 %v1141, %v1344
      %v1382 = vmul.f32 %v1144, %v1346
      %v1383 = vmul.f32 %v1149, %v1348
      %v1384 = vmul.f32 %v1152, %v1350
      %v1385 = vmul.f32 %v1157, %v1352
      %v1386 = vmul.f32 %v1160, %v1354
      %1387 = vst.msk [vmem:[#allocation2] sm:$0xff] %vm949, 0.0
      %1388 = vst.msk [vmem:[#allocation2 + $0x8] sm:$0xff] %vm949, 0.0
      %1389 = vst.msk [vmem:[#allocation2 + $0x10] sm:$0xff] %vm949, 0.0
      %1390 = vst.msk [vmem:[#allocation2 + $0x18] sm:$0xff] %vm949, 0.0
      %1391 = vst.msk [vmem:[#allocation2 + $0x20] sm:$0xff] %vm949, 0.0
      %1392 = vst.msk [vmem:[#allocation2 + $0x28] sm:$0xff] %vm949, 0.0
      %1393 = vst.msk [vmem:[#allocation2 + $0x30] sm:$0xff] %vm949, 0.0
      %1394 = vst.msk [vmem:[#allocation2 + $0x38] sm:$0xff] %vm949, 0.0
      %1395 = vst.msk [vmem:[#allocation2 + $0x40] sm:$0xff] %vm949, 0.0
      %1396 = vst.msk [vmem:[#allocation2 + $0x48] sm:$0xff] %vm949, 0.0
      %1397 = vst.msk [vmem:[#allocation2 + $0x50] sm:$0xff] %vm949, 0.0
      %1398 = vst.msk [vmem:[#allocation2 + $0x58] sm:$0xff] %vm949, 0.0
      %1399 = vst.msk [vmem:[#allocation2 + $0x60] sm:$0xff] %vm949, 0.0
      %1400 = vst.msk [vmem:[#allocation2 + $0x68] sm:$0xff] %vm949, 0.0
      %1401 = vst.msk [vmem:[#allocation2 + $0x70] sm:$0xff] %vm949, 0.0
      %1402 = vst.msk [vmem:[#allocation2 + $0x78] sm:$0xff] %vm949, 0.0
      %1403 = vst.msk [vmem:[#allocation2 + $0x80] sm:$0xff] %vm949, 0.0
      %1404 = vst.msk [vmem:[#allocation2 + $0x88] sm:$0xff] %vm949, 0.0
      %1405 = vst.msk [vmem:[#allocation2 + $0x90] sm:$0xff] %vm949, 0.0
      %1406 = vst.msk [vmem:[#allocation2 + $0x98] sm:$0xff] %vm949, 0.0
      %1407 = vst.msk [vmem:[#allocation2 + $0xa0] sm:$0xff] %vm949, 0.0
      %1408 = vst.msk [vmem:[#allocation2 + $0xa8] sm:$0xff] %vm949, 0.0
      %1409 = vst.msk [vmem:[#allocation2 + $0xb0] sm:$0xff] %vm949, 0.0
      %1410 = vst.msk [vmem:[#allocation2 + $0xb8] sm:$0xff] %vm949, 0.0
      %1411 = vst.msk [vmem:[#allocation2 + $0xc0] sm:$0xff] %vm949, 0.0
      %1412 = vst.msk [vmem:[#allocation2 + $0xc8] sm:$0xff] %vm949, 0.0
      %1413 = vst.msk [vmem:[#allocation2 + $0xd0] sm:$0xff] %vm949, 0.0
      %1414 = vst.msk [vmem:[#allocation2 + $0xd8] sm:$0xff] %vm949, 0.0
      %1415 = vst.msk [vmem:[#allocation2 + $0xe0] sm:$0xff] %vm949, 0.0
      %1416 = vst.msk [vmem:[#allocation2 + $0xe8] sm:$0xff] %vm949, 0.0
      %1417 = vst.msk [vmem:[#allocation2 + $0xf0] sm:$0xff] %vm949, 0.0
      %1418 = vst.msk [vmem:[#allocation2 + $0xf8] sm:$0xff] %vm949, 0.0
      %1419 = vst.msk [vmem:[#allocation2 + $0x100] sm:$0xff] %vm949, 0.0
      %1420 = vst.msk [vmem:[#allocation2 + $0x108] sm:$0xff] %vm949, 0.0
      %1421 = vst.msk [vmem:[#allocation2 + $0x110] sm:$0xff] %vm949, 0.0
      %1422 = vst.msk [vmem:[#allocation2 + $0x118] sm:$0xff] %vm949, 0.0
      %1423 = vst.msk [vmem:[#allocation2 + $0x120] sm:$0xff] %vm949, 0.0
      %1424 = vst.msk [vmem:[#allocation2 + $0x128] sm:$0xff] %vm949, 0.0
      %1425 = vst.msk [vmem:[#allocation2 + $0x130] sm:$0xff] %vm949, 0.0
      %1426 = vst.msk [vmem:[#allocation2 + $0x138] sm:$0xff] %vm949, 0.0
      %1427 = vst.msk [vmem:[#allocation2 + $0x140] sm:$0xff] %vm949, 0.0
      %1428 = vst.msk [vmem:[#allocation2 + $0x148] sm:$0xff] %vm949, 0.0
      %1429 = vst.msk [vmem:[#allocation2 + $0x150] sm:$0xff] %vm949, 0.0
      %1430 = vst.msk [vmem:[#allocation2 + $0x158] sm:$0xff] %vm949, 0.0
      %1431 = vst.msk [vmem:[#allocation2 + $0x160] sm:$0xff] %vm949, 0.0
      %1432 = vst.msk [vmem:[#allocation2 + $0x168] sm:$0xff] %vm949, 0.0
      %1433 = vst.msk [vmem:[#allocation2 + $0x170] sm:$0xff] %vm949, 0.0
      %1434 = vst.msk [vmem:[#allocation2 + $0x178] sm:$0xff] %vm949, 0.0
      %1435 = vst.msk [vmem:[#allocation2 + $0x180] sm:$0xff] %vm949, 0.0
      %1436 = vst.msk [vmem:[#allocation2 + $0x188] sm:$0xff] %vm949, 0.0
      %1437 = vst.msk [vmem:[#allocation2 + $0x190] sm:$0xff] %vm949, 0.0
      %1438 = vst.msk [vmem:[#allocation2 + $0x198] sm:$0xff] %vm949, 0.0
      %1439 = vst.msk [vmem:[#allocation2 + $0x1a0] sm:$0xff] %vm949, 0.0
      %1440 = vst.msk [vmem:[#allocation2 + $0x1a8] sm:$0xff] %vm949, 0.0
      %1441 = vst.msk [vmem:[#allocation2 + $0x1b0] sm:$0xff] %vm949, 0.0
      %1442 = vst.msk [vmem:[#allocation2 + $0x1b8] sm:$0xff] %vm949, 0.0
      %1443 = vst.msk [vmem:[#allocation2 + $0x1c0] sm:$0xff] %vm949, 0.0
      %1444 = vst.msk [vmem:[#allocation2 + $0x1c8] sm:$0xff] %vm949, 0.0
      %1445 = vst.msk [vmem:[#allocation2 + $0x1d0] sm:$0xff] %vm949, 0.0
      %1446 = vst.msk [vmem:[#allocation2 + $0x1d8] sm:$0xff] %vm949, 0.0
      %1447 = vst.msk [vmem:[#allocation2 + $0x1e0] sm:$0xff] %vm949, 0.0
      %1448 = vst.msk [vmem:[#allocation2 + $0x1e8] sm:$0xff] %vm949, 0.0
      %1449 = vst.msk [vmem:[#allocation2 + $0x1f0] sm:$0xff] %vm949, 0.0
      %1450 = vst.msk [vmem:[#allocation2 + $0x1f8] sm:$0xff] %vm949, 0.0
      %1451 = vst.msk [vmem:[#allocation2 + $0x200] sm:$0xff] %vm949, 0.0
      %1452 = vst.msk [vmem:[#allocation2 + $0x208] sm:$0xff] %vm949, 0.0
      %1453 = vst.msk [vmem:[#allocation2 + $0x210] sm:$0xff] %vm949, 0.0
      %1454 = vst.msk [vmem:[#allocation2 + $0x218] sm:$0xff] %vm949, 0.0
      %1455 = vst.msk [vmem:[#allocation2 + $0x220] sm:$0xff] %vm949, 0.0
      %1456 = vst.msk [vmem:[#allocation2 + $0x228] sm:$0xff] %vm949, 0.0
      %1457 = vst.msk [vmem:[#allocation2 + $0x230] sm:$0xff] %vm949, 0.0
      %1458 = vst.msk [vmem:[#allocation2 + $0x238] sm:$0xff] %vm949, 0.0
      %s1459 = scalar_lea.vmem [#allocation2], 32
      %1460 = vst.msk [vmem:[%s1459 + $0x8] sm:$0xff] %vm949, %v1355
      %1461 = vst.msk [vmem:[%s1459 + $0x10] sm:$0xff] %vm949, %v1356
      %1462 = vst.msk [vmem:[%s1459 + $0x28] sm:$0xff] %vm949, %v1357
      %1463 = vst.msk [vmem:[%s1459 + $0x30] sm:$0xff] %vm949, %v1358
      %1464 = vst.msk [vmem:[%s1459 + $0x48] sm:$0xff] %vm949, %v1359
      %1465 = vst.msk [vmem:[%s1459 + $0x50] sm:$0xff] %vm949, %v1360
      %1466 = vst.msk [vmem:[%s1459 + $0x68] sm:$0xff] %vm949, %v1361
      %1467 = vst.msk [vmem:[%s1459 + $0x70] sm:$0xff] %vm949, %v1362
      %1468 = vst.msk [vmem:[%s1459 + $0x88] sm:$0xff] %vm949, %v1363
      %1469 = vst.msk [vmem:[%s1459 + $0x90] sm:$0xff] %vm949, %v1364
      %1470 = vst.msk [vmem:[%s1459 + $0xa8] sm:$0xff] %vm949, %v1365
      %1471 = vst.msk [vmem:[%s1459 + $0xb0] sm:$0xff] %vm949, %v1366
      %1472 = vst.msk [vmem:[%s1459 + $0xc8] sm:$0xff] %vm949, %v1367
      %1473 = vst.msk [vmem:[%s1459 + $0xd0] sm:$0xff] %vm949, %v1368
      %1474 = vst.msk [vmem:[%s1459 + $0xe8] sm:$0xff] %vm949, %v1369
      %1475 = vst.msk [vmem:[%s1459 + $0xf0] sm:$0xff] %vm949, %v1370
      %1476 = vst.msk [vmem:[%s1459 + $0x108] sm:$0xff] %vm949, %v1371
      %1477 = vst.msk [vmem:[%s1459 + $0x110] sm:$0xff] %vm949, %v1372
      %1478 = vst.msk [vmem:[%s1459 + $0x128] sm:$0xff] %vm949, %v1373
      %1479 = vst.msk [vmem:[%s1459 + $0x130] sm:$0xff] %vm949, %v1374
      %1480 = vst.msk [vmem:[%s1459 + $0x148] sm:$0xff] %vm949, %v1375
      %1481 = vst.msk [vmem:[%s1459 + $0x150] sm:$0xff] %vm949, %v1376
      %1482 = vst.msk [vmem:[%s1459 + $0x168] sm:$0xff] %vm949, %v1377
      %1483 = vst.msk [vmem:[%s1459 + $0x170] sm:$0xff] %vm949, %v1378
      %1484 = vst.msk [vmem:[%s1459 + $0x188] sm:$0xff] %vm949, %v1379
      %1485 = vst.msk [vmem:[%s1459 + $0x190] sm:$0xff] %vm949, %v1380
      %1486 = vst.msk [vmem:[%s1459 + $0x1a8] sm:$0xff] %vm949, %v1381
      %1487 = vst.msk [vmem:[%s1459 + $0x1b0] sm:$0xff] %vm949, %v1382
      %1488 = vst.msk [vmem:[%s1459 + $0x1c8] sm:$0xff] %vm949, %v1383
      %1489 = vst.msk [vmem:[%s1459 + $0x1d0] sm:$0xff] %vm949, %v1384
      %1490 = vst.msk [vmem:[%s1459 + $0x1e8] sm:$0xff] %vm949, %v1385
      %1491 = vst.msk [vmem:[%s1459 + $0x1f0] sm:$0xff] %vm949, %v1386
      %v1492 = vld [vmem:[#allocation2 + $0x7] sm:$0xff]
      %v1493 = vld [vmem:[#allocation2 + $0xf] sm:$0xff]
      %v1494 = vld [vmem:[#allocation2 + $0x27] sm:$0xff]
      %v1495 = vld [vmem:[#allocation2 + $0x2f] sm:$0xff]
      %v1496 = vld [vmem:[#allocation2 + $0x47] sm:$0xff]
      %v1497 = vld [vmem:[#allocation2 + $0x4f] sm:$0xff]
      %v1498 = vld [vmem:[#allocation2 + $0x67] sm:$0xff]
      %v1499 = vld [vmem:[#allocation2 + $0x6f] sm:$0xff]
      %v1500 = vld [vmem:[#allocation2 + $0x87] sm:$0xff]
      %v1501 = vld [vmem:[#allocation2 + $0x8f] sm:$0xff]
      %v1502 = vld [vmem:[#allocation2 + $0xa7] sm:$0xff]
      %v1503 = vld [vmem:[#allocation2 + $0xaf] sm:$0xff]
      %v1504 = vld [vmem:[#allocation2 + $0xc7] sm:$0xff]
      %v1505 = vld [vmem:[#allocation2 + $0xcf] sm:$0xff]
      %v1506 = vld [vmem:[#allocation2 + $0xe7] sm:$0xff]
      %v1507 = vld [vmem:[#allocation2 + $0xef] sm:$0xff]
      %v1508 = vld [vmem:[#allocation2 + $0x107] sm:$0xff]
      %v1509 = vld [vmem:[#allocation2 + $0x10f] sm:$0xff]
      %v1510 = vld [vmem:[#allocation2 + $0x127] sm:$0xff]
      %v1511 = vld [vmem:[#allocation2 + $0x12f] sm:$0xff]
      %v1512 = vld [vmem:[#allocation2 + $0x147] sm:$0xff]
      %v1513 = vld [vmem:[#allocation2 + $0x14f] sm:$0xff]
      %v1514 = vld [vmem:[#allocation2 + $0x167] sm:$0xff]
      %v1515 = vld [vmem:[#allocation2 + $0x16f] sm:$0xff]
      %v1516 = vld [vmem:[#allocation2 + $0x187] sm:$0xff]
      %v1517 = vld [vmem:[#allocation2 + $0x18f] sm:$0xff]
      %v1518 = vld [vmem:[#allocation2 + $0x1a7] sm:$0xff]
      %v1519 = vld [vmem:[#allocation2 + $0x1af] sm:$0xff]
      %v1520 = vld [vmem:[#allocation2 + $0x1c7] sm:$0xff]
      %v1521 = vld [vmem:[#allocation2 + $0x1cf] sm:$0xff]
      %v1522 = vld [vmem:[#allocation2 + $0x1e7] sm:$0xff]
      %v1523 = vld [vmem:[#allocation2 + $0x1ef] sm:$0xff]
      %v1524 = vpack.c.bf16 %v1493, %v1492
      %v1525 = vpack.c.bf16 %v1495, %v1494
      %v1526 = vpack.c.bf16 %v1497, %v1496
      %v1527 = vpack.c.bf16 %v1499, %v1498
      %v1528 = vpack.c.bf16 %v1501, %v1500
      %v1529 = vpack.c.bf16 %v1503, %v1502
      %v1530 = vpack.c.bf16 %v1505, %v1504
      %v1531 = vpack.c.bf16 %v1507, %v1506
      %v1532 = vpack.c.bf16 %v1509, %v1508
      %v1533 = vpack.c.bf16 %v1511, %v1510
      %v1534 = vpack.c.bf16 %v1513, %v1512
      %v1535 = vpack.c.bf16 %v1515, %v1514
      %v1536 = vpack.c.bf16 %v1517, %v1516
      %v1537 = vpack.c.bf16 %v1519, %v1518
      %v1538 = vpack.c.bf16 %v1521, %v1520
      %v1539 = vpack.c.bf16 %v1523, %v1522
      %v1540 = vld [vmem:[%s5] sm:$0xf]
      %v1541 = vld [vmem:[#allocation2 + $0x8] sm:$0xff]
      %v1542 = vld [vmem:[#allocation2 + $0x10] sm:$0xff]
      %v1543 = vld [vmem:[#allocation2 + $0x28] sm:$0xff]
      %v1544 = vld [vmem:[#allocation2 + $0x30] sm:$0xff]
      %v1545 = vld [vmem:[#allocation2 + $0x48] sm:$0xff]
      %v1546 = vld [vmem:[#allocation2 + $0x50] sm:$0xff]
      %v1547 = vld [vmem:[#allocation2 + $0x68] sm:$0xff]
      %v1548 = vld [vmem:[#allocation2 + $0x70] sm:$0xff]
      %v1549 = vld [vmem:[#allocation2 + $0x88] sm:$0xff]
      %v1550 = vld [vmem:[#allocation2 + $0x90] sm:$0xff]
      %v1551 = vld [vmem:[#allocation2 + $0xa8] sm:$0xff]
      %v1552 = vld [vmem:[#allocation2 + $0xb0] sm:$0xff]
      %v1553 = vld [vmem:[#allocation2 + $0xc8] sm:$0xff]
      %v1554 = vld [vmem:[#allocation2 + $0xd0] sm:$0xff]
      %v1555 = vld [vmem:[#allocation2 + $0xe8] sm:$0xff]
      %v1556 = vld [vmem:[#allocation2 + $0xf0] sm:$0xff]
      %v1557 = vld [vmem:[#allocation2 + $0x108] sm:$0xff]
      %v1558 = vld [vmem:[#allocation2 + $0x110] sm:$0xff]
      %v1559 = vld [vmem:[#allocation2 + $0x128] sm:$0xff]
      %v1560 = vld [vmem:[#allocation2 + $0x130] sm:$0xff]
      %v1561 = vld [vmem:[#allocation2 + $0x148] sm:$0xff]
      %v1562 = vld [vmem:[#allocation2 + $0x150] sm:$0xff]
      %v1563 = vld [vmem:[#allocation2 + $0x168] sm:$0xff]
      %v1564 = vld [vmem:[#allocation2 + $0x170] sm:$0xff]
      %v1565 = vld [vmem:[#allocation2 + $0x188] sm:$0xff]
      %v1566 = vld [vmem:[#allocation2 + $0x190] sm:$0xff]
      %v1567 = vld [vmem:[#allocation2 + $0x1a8] sm:$0xff]
      %v1568 = vld [vmem:[#allocation2 + $0x1b0] sm:$0xff]
      %v1569 = vld [vmem:[#allocation2 + $0x1c8] sm:$0xff]
      %v1570 = vld [vmem:[#allocation2 + $0x1d0] sm:$0xff]
      %v1571 = vld [vmem:[#allocation2 + $0x1e8] sm:$0xff]
      %v1572 = vld [vmem:[#allocation2 + $0x1f0] sm:$0xff]
      %v1573 = vpack.c.bf16 %v1542, %v1541
      %v1574 = vpack.c.bf16 %v1544, %v1543
      %v1575 = vpack.c.bf16 %v1546, %v1545
      %v1576 = vpack.c.bf16 %v1548, %v1547
      %v1577 = vpack.c.bf16 %v1550, %v1549
      %v1578 = vpack.c.bf16 %v1552, %v1551
      %v1579 = vpack.c.bf16 %v1554, %v1553
      %v1580 = vpack.c.bf16 %v1556, %v1555
      %v1581 = vpack.c.bf16 %v1558, %v1557
      %v1582 = vpack.c.bf16 %v1560, %v1559
      %v1583 = vpack.c.bf16 %v1562, %v1561
      %v1584 = vpack.c.bf16 %v1564, %v1563
      %v1585 = vpack.c.bf16 %v1566, %v1565
      %v1586 = vpack.c.bf16 %v1568, %v1567
      %v1587 = vpack.c.bf16 %v1570, %v1569
      %v1588 = vpack.c.bf16 %v1572, %v1571
      %s1589 = scalar_lea.vmem %s5, 4
      %v1590 = vld [vmem:[%s1589] sm:$0xf]
      %v1592 = vsel %vm949, %v1573, 0
      %v1595 = vsel %vm949, %v1574, 0
      %v1598 = vsel %vm949, %v1575, 0
      %v1601 = vsel %vm949, %v1576, 0
      %v1604 = vsel %vm949, %v1577, 0
      %v1607 = vsel %vm949, %v1578, 0
      %v1610 = vsel %vm949, %v1579, 0
      %v1613 = vsel %vm949, %v1580, 0
      %v1616 = vsel %vm949, %v1581, 0
      %v1619 = vsel %vm949, %v1582, 0
      %v1622 = vsel %vm949, %v1583, 0
      %v1625 = vsel %vm949, %v1584, 0
      %v1628 = vsel %vm949, %v1585, 0
      %v1631 = vsel %vm949, %v1586, 0
      %v1634 = vsel %vm949, %v1587, 0
      %v1637 = vsel %vm949, %v1588, 0
      %v1640 = vsel %vm998, %v1590, 0
      %1642 = vmatprep.subr.bf16.mxu0 0
      %1643 = vmatpush1.bf16.msra.mxu0 %v1640
      %1644 = vmatprep.subr.bf16.mxu0 0
      %1645 = vmatpush1.bf16.msra.mxu0 0
      %1646 = vmatprep.subr.bf16.mxu0 0
      %1647 = vmatpush1.bf16.msra.mxu0 0
      %1648 = vmatprep.subr.bf16.mxu0 0
      %1649 = vmatpush1.bf16.msra.mxu0 0
      %1650 = vmatprep.subr.bf16.mxu0 0
      %1651 = vmatpush1.bf16.msra.mxu0 0
      %1652 = vmatprep.subr.bf16.mxu0 0
      %1653 = vmatpush1.bf16.msra.mxu0 0
      %1654 = vmatprep.subr.bf16.mxu0 0
      %1655 = vmatpush1.bf16.msra.mxu0 0
      %1656 = vmatprep.subr.bf16.mxu0 0
      %1657 = vmatpush1.bf16.msra.mxu0 0
      %1658 = vmatprep.subr.bf16.mxu0 0
      %1659 = vmatpush1.bf16.msra.mxu0 0
      %1660 = vmatprep.subr.bf16.mxu0 0
      %1661 = vmatpush1.bf16.msra.mxu0 0
      %1662 = vmatprep.subr.bf16.mxu0 0
      %1663 = vmatpush1.bf16.msra.mxu0 0
      %1664 = vmatprep.subr.bf16.mxu0 0
      %1665 = vmatpush1.bf16.msra.mxu0 0
      %1666 = vmatprep.subr.bf16.mxu0 0
      %1667 = vmatpush1.bf16.msra.mxu0 0
      %1668 = vmatprep.subr.bf16.mxu0 0
      %1669 = vmatpush1.bf16.msra.mxu0 0
      %1670 = vmatprep.subr.bf16.mxu0 0
      %1671 = vmatpush1.bf16.msra.mxu0 0
      %1672 = vmatprep.subr.bf16.mxu0 0
      %1673 = vmatpush1.bf16.msra.mxu0 0
      %1674 = vmatprep.mubr.bf16.mxu0 0
      %1675 = vmatmul.mubr.bf16.gmra.mrb[0].mxu0 %v1592
      %v1676 = vpop.f32.mrb[0].mxu0
      %v1677 = vadd.f32 0.0, %v1676
      %v1678 = vpop.f32.mrb[0].mxu0
      %v1679 = vpop.f32.mrb[0].mxu0
      %v1680 = vadd.f32 0.0, %v1679
      %v1681 = vpop.f32.mrb[0].mxu0
      %1682 = vmatprep.mubr.bf16.mxu0 0
      %1683 = vmatmul.mubr.bf16.gmra.mrb[0].mxu0 %v1595
      %v1684 = vpop.f32.mrb[0].mxu0
      %v1685 = vadd.f32 0.0, %v1684
      %v1686 = vpop.f32.mrb[0].mxu0
      %v1687 = vpop.f32.mrb[0].mxu0
      %v1688 = vadd.f32 0.0, %v1687
      %v1689 = vpop.f32.mrb[0].mxu0
      %1690 = vmatprep.mubr.bf16.mxu0 0
      %1691 = vmatmul.mubr.bf16.gmra.mrb[0].mxu0 %v1598
      %v1692 = vpop.f32.mrb[0].mxu0
      %v1693 = vadd.f32 0.0, %v1692
      %v1694 = vpop.f32.mrb[0].mxu0
      %v1695 = vpop.f32.mrb[0].mxu0
      %v1696 = vadd.f32 0.0, %v1695
      %v1697 = vpop.f32.mrb[0].mxu0
      %1698 = vmatprep.mubr.bf16.mxu0 0
      %1699 = vmatmul.mubr.bf16.gmra.mrb[0].mxu0 %v1601
      %v1700 = vpop.f32.mrb[0].mxu0
      %v1701 = vadd.f32 0.0, %v1700
      %v1702 = vpop.f32.mrb[0].mxu0
      %v1703 = vpop.f32.mrb[0].mxu0
      %v1704 = vadd.f32 0.0, %v1703
      %v1705 = vpop.f32.mrb[0].mxu0
      %1706 = vmatprep.mubr.bf16.mxu0 0
      %1707 = vmatmul.mubr.bf16.gmra.mrb[0].mxu0 %v1604
      %v1708 = vpop.f32.mrb[0].mxu0
      %v1709 = vadd.f32 0.0, %v1708
      %v1710 = vpop.f32.mrb[0].mxu0
      %v1711 = vpop.f32.mrb[0].mxu0
      %v1712 = vadd.f32 0.0, %v1711
      %v1713 = vpop.f32.mrb[0].mxu0
      %1714 = vmatprep.mubr.bf16.mxu0 0
      %1715 = vmatmul.mubr.bf16.gmra.mrb[0].mxu0 %v1607
      %v1716 = vpop.f32.mrb[0].mxu0
      %v1717 = vadd.f32 0.0, %v1716
      %v1718 = vpop.f32.mrb[0].mxu0
      %v1719 = vpop.f32.mrb[0].mxu0
      %v1720 = vadd.f32 0.0, %v1719
      %v1721 = vpop.f32.mrb[0].mxu0
      %1722 = vmatprep.mubr.bf16.mxu0 0
      %1723 = vmatmul.mubr.bf16.gmra.mrb[0].mxu0 %v1610
      %v1724 = vpop.f32.mrb[0].mxu0
      %v1725 = vadd.f32 0.0, %v1724
      %v1726 = vpop.f32.mrb[0].mxu0
      %v1727 = vpop.f32.mrb[0].mxu0
      %v1728 = vadd.f32 0.0, %v1727
      %v1729 = vpop.f32.mrb[0].mxu0
      %1730 = vmatprep.mubr.bf16.mxu0 0
      %1731 = vmatmul.mubr.bf16.gmra.mrb[0].mxu0 %v1613
      %v1732 = vpop.f32.mrb[0].mxu0
      %v1733 = vadd.f32 0.0, %v1732
      %v1734 = vpop.f32.mrb[0].mxu0
      %v1735 = vpop.f32.mrb[0].mxu0
      %v1736 = vadd.f32 0.0, %v1735
      %v1737 = vpop.f32.mrb[0].mxu0
      %1738 = vmatprep.mubr.bf16.mxu0 0
      %1739 = vmatmul.mubr.bf16.gmra.mrb[0].mxu0 %v1616
      %v1740 = vpop.f32.mrb[0].mxu0
      %v1741 = vadd.f32 0.0, %v1740
      %v1742 = vpop.f32.mrb[0].mxu0
      %v1743 = vpop.f32.mrb[0].mxu0
      %v1744 = vadd.f32 0.0, %v1743
      %v1745 = vpop.f32.mrb[0].mxu0
      %1746 = vmatprep.mubr.bf16.mxu0 0
      %1747 = vmatmul.mubr.bf16.gmra.mrb[0].mxu0 %v1619
      %v1748 = vpop.f32.mrb[0].mxu0
      %v1749 = vadd.f32 0.0, %v1748
      %v1750 = vpop.f32.mrb[0].mxu0
      %v1751 = vpop.f32.mrb[0].mxu0
      %v1752 = vadd.f32 0.0, %v1751
      %v1753 = vpop.f32.mrb[0].mxu0
      %1754 = vmatprep.mubr.bf16.mxu0 0
      %1755 = vmatmul.mubr.bf16.gmra.mrb[0].mxu0 %v1622
      %v1756 = vpop.f32.mrb[0].mxu0
      %v1757 = vadd.f32 0.0, %v1756
      %v1758 = vpop.f32.mrb[0].mxu0
      %v1759 = vpop.f32.mrb[0].mxu0
      %v1760 = vadd.f32 0.0, %v1759
      %v1761 = vpop.f32.mrb[0].mxu0
      %1762 = vmatprep.mubr.bf16.mxu0 0
      %1763 = vmatmul.mubr.bf16.gmra.mrb[0].mxu0 %v1625
      %v1764 = vpop.f32.mrb[0].mxu0
      %v1765 = vadd.f32 0.0, %v1764
      %v1766 = vpop.f32.mrb[0].mxu0
      %v1767 = vpop.f32.mrb[0].mxu0
      %v1768 = vadd.f32 0.0, %v1767
      %v1769 = vpop.f32.mrb[0].mxu0
      %1770 = vmatprep.mubr.bf16.mxu0 0
      %1771 = vmatmul.mubr.bf16.gmra.mrb[0].mxu0 %v1628
      %v1772 = vpop.f32.mrb[0].mxu0
      %v1773 = vadd.f32 0.0, %v1772
      %v1774 = vpop.f32.mrb[0].mxu0
      %v1775 = vpop.f32.mrb[0].mxu0
      %v1776 = vadd.f32 0.0, %v1775
      %v1777 = vpop.f32.mrb[0].mxu0
      %1778 = vmatprep.mubr.bf16.mxu0 0
      %1779 = vmatmul.mubr.bf16.gmra.mrb[0].mxu0 %v1631
      %v1780 = vpop.f32.mrb[0].mxu0
      %v1781 = vadd.f32 0.0, %v1780
      %v1782 = vpop.f32.mrb[0].mxu0
      %v1783 = vpop.f32.mrb[0].mxu0
      %v1784 = vadd.f32 0.0, %v1783
      %v1785 = vpop.f32.mrb[0].mxu0
      %1786 = vmatprep.mubr.bf16.mxu0 0
      %1787 = vmatmul.mubr.bf16.gmra.mrb[0].mxu0 %v1634
      %v1788 = vpop.f32.mrb[0].mxu0
      %v1789 = vadd.f32 0.0, %v1788
      %v1790 = vpop.f32.mrb[0].mxu0
      %v1791 = vpop.f32.mrb[0].mxu0
      %v1792 = vadd.f32 0.0, %v1791
      %v1793 = vpop.f32.mrb[0].mxu0
      %1794 = vmatprep.mubr.bf16.mxu0 0
      %1795 = vmatmul.mubr.bf16.gmra.mrb[0].mxu0 %v1637
      %v1796 = vpop.f32.mrb[0].mxu0
      %v1797 = vadd.f32 0.0, %v1796
      %v1798 = vpop.f32.mrb[0].mxu0
      %v1799 = vpop.f32.mrb[0].mxu0
      %v1800 = vadd.f32 0.0, %v1799
      %v1801 = vpop.f32.mrb[0].mxu0
      %1802 = vdwg.mxu0
      %v1804 = vsel %vm949, %v1524, 0
      %v1807 = vsel %vm949, %v1525, 0
      %v1810 = vsel %vm949, %v1526, 0
      %v1813 = vsel %vm949, %v1527, 0
      %v1816 = vsel %vm949, %v1528, 0
      %v1819 = vsel %vm949, %v1529, 0
      %v1822 = vsel %vm949, %v1530, 0
      %v1825 = vsel %vm949, %v1531, 0
      %v1828 = vsel %vm949, %v1532, 0
      %v1831 = vsel %vm949, %v1533, 0
      %v1834 = vsel %vm949, %v1534, 0
      %v1837 = vsel %vm949, %v1535, 0
      %v1840 = vsel %vm949, %v1536, 0
      %v1843 = vsel %vm949, %v1537, 0
      %v1846 = vsel %vm949, %v1538, 0
      %v1849 = vsel %vm949, %v1539, 0
      %v1852 = vsel %vm998, %v1540, 0
      %1854 = vmatprep.subr.bf16.mxu0 0
      %1855 = vmatpush1.bf16.msra.mxu0 %v1852
      %1856 = vmatprep.subr.bf16.mxu0 0
      %1857 = vmatpush1.bf16.msra.mxu0 0
      %1858 = vmatprep.subr.bf16.mxu0 0
      %1859 = vmatpush1.bf16.msra.mxu0 0
      %1860 = vmatprep.subr.bf16.mxu0 0
      %1861 = vmatpush1.bf16.msra.mxu0 0
      %1862 = vmatprep.subr.bf16.mxu0 0
      %1863 = vmatpush1.bf16.msra.mxu0 0
      %1864 = vmatprep.subr.bf16.mxu0 0
      %1865 = vmatpush1.bf16.msra.mxu0 0
      %1866 = vmatprep.subr.bf16.mxu0 0
      %1867 = vmatpush1.bf16.msra.mxu0 0
      %1868 = vmatprep.subr.bf16.mxu0 0
      %1869 = vmatpush1.bf16.msra.mxu0 0
      %1870 = vmatprep.subr.bf16.mxu0 0
      %1871 = vmatpush1.bf16.msra.mxu0 0
      %1872 = vmatprep.subr.bf16.mxu0 0
      %1873 = vmatpush1.bf16.msra.mxu0 0
      %1874 = vmatprep.subr.bf16.mxu0 0
      %1875 = vmatpush1.bf16.msra.mxu0 0
      %1876 = vmatprep.subr.bf16.mxu0 0
      %1877 = vmatpush1.bf16.msra.mxu0 0
      %1878 = vmatprep.subr.bf16.mxu0 0
      %1879 = vmatpush1.bf16.msra.mxu0 0
      %1880 = vmatprep.subr.bf16.mxu0 0
      %1881 = vmatpush1.bf16.msra.mxu0 0
      %1882 = vmatprep.subr.bf16.mxu0 0
      %1883 = vmatpush1.bf16.msra.mxu0 0
      %1884 = vmatprep.subr.bf16.mxu0 0
      %1885 = vmatpush1.bf16.msra.mxu0 0
      %1886 = vmatprep.mubr.bf16.mxu0 0
      %1887 = vmatmul.mubr.bf16.gmra.mrb[0].mxu0 %v1804
      %v1888 = vpop.f32.mrb[0].mxu0
      %v1889 = vadd.f32 %v1677, %v1888
      %v1890 = vpop.f32.mrb[0].mxu0
      %v1891 = vpop.f32.mrb[0].mxu0
      %v1892 = vadd.f32 %v1680, %v1891
      %v1893 = vpop.f32.mrb[0].mxu0
      %1894 = vmatprep.mubr.bf16.mxu0 0
      %1895 = vmatmul.mubr.bf16.gmra.mrb[0].mxu0 %v1807
      %v1896 = vpop.f32.mrb[0].mxu0
      %v1897 = vadd.f32 %v1685, %v1896
      %v1898 = vpop.f32.mrb[0].mxu0
      %v1899 = vpop.f32.mrb[0].mxu0
      %v1900 = vadd.f32 %v1688, %v1899
      %v1901 = vpop.f32.mrb[0].mxu0
      %1902 = vmatprep.mubr.bf16.mxu0 0
      %1903 = vmatmul.mubr.bf16.gmra.mrb[0].mxu0 %v1810
      %v1904 = vpop.f32.mrb[0].mxu0
      %v1905 = vadd.f32 %v1693, %v1904
      %v1906 = vpop.f32.mrb[0].mxu0
      %v1907 = vpop.f32.mrb[0].mxu0
      %v1908 = vadd.f32 %v1696, %v1907
      %v1909 = vpop.f32.mrb[0].mxu0
      %1910 = vmatprep.mubr.bf16.mxu0 0
      %1911 = vmatmul.mubr.bf16.gmra.mrb[0].mxu0 %v1813
      %v1912 = vpop.f32.mrb[0].mxu0
      %v1913 = vadd.f32 %v1701, %v1912
      %v1914 = vpop.f32.mrb[0].mxu0
      %v1915 = vpop.f32.mrb[0].mxu0
      %v1916 = vadd.f32 %v1704, %v1915
      %v1917 = vpop.f32.mrb[0].mxu0
      %1918 = vmatprep.mubr.bf16.mxu0 0
      %1919 = vmatmul.mubr.bf16.gmra.mrb[0].mxu0 %v1816
      %v1920 = vpop.f32.mrb[0].mxu0
      %v1921 = vadd.f32 %v1709, %v1920
      %v1922 = vpop.f32.mrb[0].mxu0
      %v1923 = vpop.f32.mrb[0].mxu0
      %v1924 = vadd.f32 %v1712, %v1923
      %v1925 = vpop.f32.mrb[0].mxu0
      %1926 = vmatprep.mubr.bf16.mxu0 0
      %1927 = vmatmul.mubr.bf16.gmra.mrb[0].mxu0 %v1819
      %v1928 = vpop.f32.mrb[0].mxu0
      %v1929 = vadd.f32 %v1717, %v1928
      %v1930 = vpop.f32.mrb[0].mxu0
      %v1931 = vpop.f32.mrb[0].mxu0
      %v1932 = vadd.f32 %v1720, %v1931
      %v1933 = vpop.f32.mrb[0].mxu0
      %1934 = vmatprep.mubr.bf16.mxu0 0
      %1935 = vmatmul.mubr.bf16.gmra.mrb[0].mxu0 %v1822
      %v1936 = vpop.f32.mrb[0].mxu0
      %v1937 = vadd.f32 %v1725, %v1936
      %v1938 = vpop.f32.mrb[0].mxu0
      %v1939 = vpop.f32.mrb[0].mxu0
      %v1940 = vadd.f32 %v1728, %v1939
      %v1941 = vpop.f32.mrb[0].mxu0
      %1942 = vmatprep.mubr.bf16.mxu0 0
      %1943 = vmatmul.mubr.bf16.gmra.mrb[0].mxu0 %v1825
      %v1944 = vpop.f32.mrb[0].mxu0
      %v1945 = vadd.f32 %v1733, %v1944
      %v1946 = vpop.f32.mrb[0].mxu0
      %v1947 = vpop.f32.mrb[0].mxu0
      %v1948 = vadd.f32 %v1736, %v1947
      %v1949 = vpop.f32.mrb[0].mxu0
      %1950 = vmatprep.mubr.bf16.mxu0 0
      %1951 = vmatmul.mubr.bf16.gmra.mrb[0].mxu0 %v1828
      %v1952 = vpop.f32.mrb[0].mxu0
      %v1953 = vadd.f32 %v1741, %v1952
      %v1954 = vpop.f32.mrb[0].mxu0
      %v1955 = vpop.f32.mrb[0].mxu0
      %v1956 = vadd.f32 %v1744, %v1955
      %v1957 = vpop.f32.mrb[0].mxu0
      %1958 = vmatprep.mubr.bf16.mxu0 0
      %1959 = vmatmul.mubr.bf16.gmra.mrb[0].mxu0 %v1831
      %v1960 = vpop.f32.mrb[0].mxu0
      %v1961 = vadd.f32 %v1749, %v1960
      %v1962 = vpop.f32.mrb[0].mxu0
      %v1963 = vpop.f32.mrb[0].mxu0
      %v1964 = vadd.f32 %v1752, %v1963
      %v1965 = vpop.f32.mrb[0].mxu0
      %1966 = vmatprep.mubr.bf16.mxu0 0
      %1967 = vmatmul.mubr.bf16.gmra.mrb[0].mxu0 %v1834
      %v1968 = vpop.f32.mrb[0].mxu0
      %v1969 = vadd.f32 %v1757, %v1968
      %v1970 = vpop.f32.mrb[0].mxu0
      %v1971 = vpop.f32.mrb[0].mxu0
      %v1972 = vadd.f32 %v1760, %v1971
      %v1973 = vpop.f32.mrb[0].mxu0
      %1974 = vmatprep.mubr.bf16.mxu0 0
      %1975 = vmatmul.mubr.bf16.gmra.mrb[0].mxu0 %v1837
      %v1976 = vpop.f32.mrb[0].mxu0
      %v1977 = vadd.f32 %v1765, %v1976
      %v1978 = vpop.f32.mrb[0].mxu0
      %v1979 = vpop.f32.mrb[0].mxu0
      %v1980 = vadd.f32 %v1768, %v1979
      %v1981 = vpop.f32.mrb[0].mxu0
      %1982 = vmatprep.mubr.bf16.mxu0 0
      %1983 = vmatmul.mubr.bf16.gmra.mrb[0].mxu0 %v1840
      %v1984 = vpop.f32.mrb[0].mxu0
      %v1985 = vadd.f32 %v1773, %v1984
      %v1986 = vpop.f32.mrb[0].mxu0
      %v1987 = vpop.f32.mrb[0].mxu0
      %v1988 = vadd.f32 %v1776, %v1987
      %v1989 = vpop.f32.mrb[0].mxu0
      %1990 = vmatprep.mubr.bf16.mxu0 0
      %1991 = vmatmul.mubr.bf16.gmra.mrb[0].mxu0 %v1843
      %v1992 = vpop.f32.mrb[0].mxu0
      %v1993 = vadd.f32 %v1781, %v1992
      %v1994 = vpop.f32.mrb[0].mxu0
      %v1995 = vpop.f32.mrb[0].mxu0
      %v1996 = vadd.f32 %v1784, %v1995
      %v1997 = vpop.f32.mrb[0].mxu0
      %1998 = vmatprep.mubr.bf16.mxu0 0
      %1999 = vmatmul.mubr.bf16.gmra.mrb[0].mxu0 %v1846
      %v2000 = vpop.f32.mrb[0].mxu0
      %v2001 = vadd.f32 %v1789, %v2000
      %v2002 = vpop.f32.mrb[0].mxu0
      %v2003 = vpop.f32.mrb[0].mxu0
      %v2004 = vadd.f32 %v1792, %v2003
      %v2005 = vpop.f32.mrb[0].mxu0
      %2006 = vmatprep.mubr.bf16.mxu0 0
      %2007 = vmatmul.mubr.bf16.gmra.mrb[0].mxu0 %v1849
      %v2008 = vpop.f32.mrb[0].mxu0
      %v2009 = vadd.f32 %v1797, %v2008
      %v2010 = vpop.f32.mrb[0].mxu0
      %v2011 = vpop.f32.mrb[0].mxu0
      %v2012 = vadd.f32 %v1800, %v2011
      %v2013 = vpop.f32.mrb[0].mxu0
      %2014 = vdwg.mxu0
      %v2015 = vld [vmem:[#allocation2 + $0x9] sm:$0xff]
      %v2016 = vld [vmem:[#allocation2 + $0x11] sm:$0xff]
      %v2017 = vld [vmem:[#allocation2 + $0x29] sm:$0xff]
      %v2018 = vld [vmem:[#allocation2 + $0x31] sm:$0xff]
      %v2019 = vld [vmem:[#allocation2 + $0x49] sm:$0xff]
      %v2020 = vld [vmem:[#allocation2 + $0x51] sm:$0xff]
      %v2021 = vld [vmem:[#allocation2 + $0x69] sm:$0xff]
      %v2022 = vld [vmem:[#allocation2 + $0x71] sm:$0xff]
      %v2023 = vld [vmem:[#allocation2 + $0x89] sm:$0xff]
      %v2024 = vld [vmem:[#allocation2 + $0x91] sm:$0xff]
      %v2025 = vld [vmem:[#allocation2 + $0xa9] sm:$0xff]
      %v2026 = vld [vmem:[#allocation2 + $0xb1] sm:$0xff]
      %v2027 = vld [vmem:[#allocation2 + $0xc9] sm:$0xff]
      %v2028 = vld [vmem:[#allocation2 + $0xd1] sm:$0xff]
      %v2029 = vld [vmem:[#allocation2 + $0xe9] sm:$0xff]
      %v2030 = vld [vmem:[#allocation2 + $0xf1] sm:$0xff]
      %v2031 = vld [vmem:[#allocation2 + $0x109] sm:$0xff]
      %v2032 = vld [vmem:[#allocation2 + $0x111] sm:$0xff]
      %v2033 = vld [vmem:[#allocation2 + $0x129] sm:$0xff]
      %v2034 = vld [vmem:[#allocation2 + $0x131] sm:$0xff]
      %v2035 = vld [vmem:[#allocation2 + $0x149] sm:$0xff]
      %v2036 = vld [vmem:[#allocation2 + $0x151] sm:$0xff]
      %v2037 = vld [vmem:[#allocation2 + $0x169] sm:$0xff]
      %v2038 = vld [vmem:[#allocation2 + $0x171] sm:$0xff]
      %v2039 = vld [vmem:[#allocation2 + $0x189] sm:$0xff]
      %v2040 = vld [vmem:[#allocation2 + $0x191] sm:$0xff]
      %v2041 = vld [vmem:[#allocation2 + $0x1a9] sm:$0xff]
      %v2042 = vld [vmem:[#allocation2 + $0x1b1] sm:$0xff]
      %v2043 = vld [vmem:[#allocation2 + $0x1c9] sm:$0xff]
      %v2044 = vld [vmem:[#allocation2 + $0x1d1] sm:$0xff]
      %v2045 = vld [vmem:[#allocation2 + $0x1e9] sm:$0xff]
      %v2046 = vld [vmem:[#allocation2 + $0x1f1] sm:$0xff]
      %v2047 = vpack.c.bf16 %v2016, %v2015
      %v2048 = vpack.c.bf16 %v2018, %v2017
      %v2049 = vpack.c.bf16 %v2020, %v2019
      %v2050 = vpack.c.bf16 %v2022, %v2021
      %v2051 = vpack.c.bf16 %v2024, %v2023
      %v2052 = vpack.c.bf16 %v2026, %v2025
      %v2053 = vpack.c.bf16 %v2028, %v2027
      %v2054 = vpack.c.bf16 %v2030, %v2029
      %v2055 = vpack.c.bf16 %v2032, %v2031
      %v2056 = vpack.c.bf16 %v2034, %v2033
      %v2057 = vpack.c.bf16 %v2036, %v2035
      %v2058 = vpack.c.bf16 %v2038, %v2037
      %v2059 = vpack.c.bf16 %v2040, %v2039
      %v2060 = vpack.c.bf16 %v2042, %v2041
      %v2061 = vpack.c.bf16 %v2044, %v2043
      %v2062 = vpack.c.bf16 %v2046, %v2045
      %s2063 = scalar_lea.vmem %s5, 8
      %v2064 = vld [vmem:[%s2063] sm:$0xf]
      %v2066 = vsel %vm949, %v2047, 0
      %v2069 = vsel %vm949, %v2048, 0
      %v2072 = vsel %vm949, %v2049, 0
      %v2075 = vsel %vm949, %v2050, 0
      %v2078 = vsel %vm949, %v2051, 0
      %v2081 = vsel %vm949, %v2052, 0
      %v2084 = vsel %vm949, %v2053, 0
      %v2087 = vsel %vm949, %v2054, 0
      %v2090 = vsel %vm949, %v2055, 0
      %v2093 = vsel %vm949, %v2056, 0
      %v2096 = vsel %vm949, %v2057, 0
      %v2099 = vsel %vm949, %v2058, 0
      %v2102 = vsel %vm949, %v2059, 0
      %v2105 = vsel %vm949, %v2060, 0
      %v2108 = vsel %vm949, %v2061, 0
      %v2111 = vsel %vm949, %v2062, 0
      %v2114 = vsel %vm998, %v2064, 0
      %2116 = vmatprep.subr.bf16.mxu0 0
      %2117 = vmatpush1.bf16.msra.mxu0 %v2114
      %2118 = vmatprep.subr.bf16.mxu0 0
      %2119 = vmatpush1.bf16.msra.mxu0 0
      %2120 = vmatprep.subr.bf16.mxu0 0
      %2121 = vmatpush1.bf16.msra.mxu0 0
      %2122 = vmatprep.subr.bf16.mxu0 0
      %2123 = vmatpush1.bf16.msra.mxu0 0
      %2124 = vmatprep.subr.bf16.mxu0 0
      %2125 = vmatpush1.bf16.msra.mxu0 0
      %2126 = vmatprep.subr.bf16.mxu0 0
      %2127 = vmatpush1.bf16.msra.mxu0 0
      %2128 = vmatprep.subr.bf16.mxu0 0
      %2129 = vmatpush1.bf16.msra.mxu0 0
      %2130 = vmatprep.subr.bf16.mxu0 0
      %2131 = vmatpush1.bf16.msra.mxu0 0
      %2132 = vmatprep.subr.bf16.mxu0 0
      %2133 = vmatpush1.bf16.msra.mxu0 0
      %2134 = vmatprep.subr.bf16.mxu0 0
      %2135 = vmatpush1.bf16.msra.mxu0 0
      %2136 = vmatprep.subr.bf16.mxu0 0
      %2137 = vmatpush1.bf16.msra.mxu0 0
      %2138 = vmatprep.subr.bf16.mxu0 0
      %2139 = vmatpush1.bf16.msra.mxu0 0
      %2140 = vmatprep.subr.bf16.mxu0 0
      %2141 = vmatpush1.bf16.msra.mxu0 0
      %2142 = vmatprep.subr.bf16.mxu0 0
      %2143 = vmatpush1.bf16.msra.mxu0 0
      %2144 = vmatprep.subr.bf16.mxu0 0
      %2145 = vmatpush1.bf16.msra.mxu0 0
      %2146 = vmatprep.subr.bf16.mxu0 0
      %2147 = vmatpush1.bf16.msra.mxu0 0
      %2148 = vmatprep.mubr.bf16.mxu0 0
      %2149 = vmatmul.mubr.bf16.gmra.mrb[0].mxu0 %v2066
      %v2150 = vpop.f32.mrb[0].mxu0
      %v2151 = vadd.f32 0.0, %v2150
      %v2152 = vpop.f32.mrb[0].mxu0
      %v2153 = vpop.f32.mrb[0].mxu0
      %v2154 = vadd.f32 0.0, %v2153
      %v2155 = vpop.f32.mrb[0].mxu0
      %2156 = vmatprep.mubr.bf16.mxu0 0
      %2157 = vmatmul.mubr.bf16.gmra.mrb[0].mxu0 %v2069
      %v2158 = vpop.f32.mrb[0].mxu0
      %v2159 = vadd.f32 0.0, %v2158
      %v2160 = vpop.f32.mrb[0].mxu0
      %v2161 = vpop.f32.mrb[0].mxu0
      %v2162 = vadd.f32 0.0, %v2161
      %v2163 = vpop.f32.mrb[0].mxu0
      %2164 = vmatprep.mubr.bf16.mxu0 0
      %2165 = vmatmul.mubr.bf16.gmra.mrb[0].mxu0 %v2072
      %v2166 = vpop.f32.mrb[0].mxu0
      %v2167 = vadd.f32 0.0, %v2166
      %v2168 = vpop.f32.mrb[0].mxu0
      %v2169 = vpop.f32.mrb[0].mxu0
      %v2170 = vadd.f32 0.0, %v2169
      %v2171 = vpop.f32.mrb[0].mxu0
      %2172 = vmatprep.mubr.bf16.mxu0 0
      %2173 = vmatmul.mubr.bf16.gmra.mrb[0].mxu0 %v2075
      %v2174 = vpop.f32.mrb[0].mxu0
      %v2175 = vadd.f32 0.0, %v2174
      %v2176 = vpop.f32.mrb[0].mxu0
      %v2177 = vpop.f32.mrb[0].mxu0
      %v2178 = vadd.f32 0.0, %v2177
      %v2179 = vpop.f32.mrb[0].mxu0
      %2180 = vmatprep.mubr.bf16.mxu0 0
      %2181 = vmatmul.mubr.bf16.gmra.mrb[0].mxu0 %v2078
      %v2182 = vpop.f32.mrb[0].mxu0
      %v2183 = vadd.f32 0.0, %v2182
      %v2184 = vpop.f32.mrb[0].mxu0
      %v2185 = vpop.f32.mrb[0].mxu0
      %v2186 = vadd.f32 0.0, %v2185
      %v2187 = vpop.f32.mrb[0].mxu0
      %2188 = vmatprep.mubr.bf16.mxu0 0
      %2189 = vmatmul.mubr.bf16.gmra.mrb[0].mxu0 %v2081
      %v2190 = vpop.f32.mrb[0].mxu0
      %v2191 = vadd.f32 0.0, %v2190
      %v2192 = vpop.f32.mrb[0].mxu0
      %v2193 = vpop.f32.mrb[0].mxu0
      %v2194 = vadd.f32 0.0, %v2193
      %v2195 = vpop.f32.mrb[0].mxu0
      %2196 = vmatprep.mubr.bf16.mxu0 0
      %2197 = vmatmul.mubr.bf16.gmra.mrb[0].mxu0 %v2084
      %v2198 = vpop.f32.mrb[0].mxu0
      %v2199 = vadd.f32 0.0, %v2198
      %v2200 = vpop.f32.mrb[0].mxu0
      %v2201 = vpop.f32.mrb[0].mxu0
      %v2202 = vadd.f32 0.0, %v2201
      %v2203 = vpop.f32.mrb[0].mxu0
      %2204 = vmatprep.mubr.bf16.mxu0 0
      %2205 = vmatmul.mubr.bf16.gmra.mrb[0].mxu0 %v2087
      %v2206 = vpop.f32.mrb[0].mxu0
      %v2207 = vadd.f32 0.0, %v2206
      %v2208 = vpop.f32.mrb[0].mxu0
      %v2209 = vpop.f32.mrb[0].mxu0
      %v2210 = vadd.f32 0.0, %v2209
      %v2211 = vpop.f32.mrb[0].mxu0
      %2212 = vmatprep.mubr.bf16.mxu0 0
      %2213 = vmatmul.mubr.bf16.gmra.mrb[0].mxu0 %v2090
      %v2214 = vpop.f32.mrb[0].mxu0
      %v2215 = vadd.f32 0.0, %v2214
      %v2216 = vpop.f32.mrb[0].mxu0
      %v2217 = vpop.f32.mrb[0].mxu0
      %v2218 = vadd.f32 0.0, %v2217
      %v2219 = vpop.f32.mrb[0].mxu0
      %2220 = vmatprep.mubr.bf16.mxu0 0
      %2221 = vmatmul.mubr.bf16.gmra.mrb[0].mxu0 %v2093
      %v2222 = vpop.f32.mrb[0].mxu0
      %v2223 = vadd.f32 0.0, %v2222
      %v2224 = vpop.f32.mrb[0].mxu0
      %v2225 = vpop.f32.mrb[0].mxu0
      %v2226 = vadd.f32 0.0, %v2225
      %v2227 = vpop.f32.mrb[0].mxu0
      %2228 = vmatprep.mubr.bf16.mxu0 0
      %2229 = vmatmul.mubr.bf16.gmra.mrb[0].mxu0 %v2096
      %v2230 = vpop.f32.mrb[0].mxu0
      %v2231 = vadd.f32 0.0, %v2230
      %v2232 = vpop.f32.mrb[0].mxu0
      %v2233 = vpop.f32.mrb[0].mxu0
      %v2234 = vadd.f32 0.0, %v2233
      %v2235 = vpop.f32.mrb[0].mxu0
      %2236 = vmatprep.mubr.bf16.mxu0 0
      %2237 = vmatmul.mubr.bf16.gmra.mrb[0].mxu0 %v2099
      %v2238 = vpop.f32.mrb[0].mxu0
      %v2239 = vadd.f32 0.0, %v2238
      %v2240 = vpop.f32.mrb[0].mxu0
      %v2241 = vpop.f32.mrb[0].mxu0
      %v2242 = vadd.f32 0.0, %v2241
      %v2243 = vpop.f32.mrb[0].mxu0
      %2244 = vmatprep.mubr.bf16.mxu0 0
      %2245 = vmatmul.mubr.bf16.gmra.mrb[0].mxu0 %v2102
      %v2246 = vpop.f32.mrb[0].mxu0
      %v2247 = vadd.f32 0.0, %v2246
      %v2248 = vpop.f32.mrb[0].mxu0
      %v2249 = vpop.f32.mrb[0].mxu0
      %v2250 = vadd.f32 0.0, %v2249
      %v2251 = vpop.f32.mrb[0].mxu0
      %2252 = vmatprep.mubr.bf16.mxu0 0
      %2253 = vmatmul.mubr.bf16.gmra.mrb[0].mxu0 %v2105
      %v2254 = vpop.f32.mrb[0].mxu0
      %v2255 = vadd.f32 0.0, %v2254
      %v2256 = vpop.f32.mrb[0].mxu0
      %v2257 = vpop.f32.mrb[0].mxu0
      %v2258 = vadd.f32 0.0, %v2257
      %v2259 = vpop.f32.mrb[0].mxu0
      %2260 = vmatprep.mubr.bf16.mxu0 0
      %2261 = vmatmul.mubr.bf16.gmra.mrb[0].mxu0 %v2108
      %v2262 = vpop.f32.mrb[0].mxu0
      %v2263 = vadd.f32 0.0, %v2262
      %v2264 = vpop.f32.mrb[0].mxu0
      %v2265 = vpop.f32.mrb[0].mxu0
      %v2266 = vadd.f32 0.0, %v2265
      %v2267 = vpop.f32.mrb[0].mxu0
      %2268 = vmatprep.mubr.bf16.mxu0 0
      %2269 = vmatmul.mubr.bf16.gmra.mrb[0].mxu0 %v2111
      %v2270 = vpop.f32.mrb[0].mxu0
      %v2271 = vadd.f32 0.0, %v2270
      %v2272 = vpop.f32.mrb[0].mxu0
      %v2273 = vpop.f32.mrb[0].mxu0
      %v2274 = vadd.f32 0.0, %v2273
      %v2275 = vpop.f32.mrb[0].mxu0
      %2276 = vdwg.mxu0
      %v2277 = vadd.f32 %v1889, %v2151
      %v2278 = vadd.f32 %v1892, %v2154
      %v2279 = vadd.f32 %v1897, %v2159
      %v2280 = vadd.f32 %v1900, %v2162
      %v2281 = vadd.f32 %v1905, %v2167
      %v2282 = vadd.f32 %v1908, %v2170
      %v2283 = vadd.f32 %v1913, %v2175
      %v2284 = vadd.f32 %v1916, %v2178
      %v2285 = vadd.f32 %v1921, %v2183
      %v2286 = vadd.f32 %v1924, %v2186
      %v2287 = vadd.f32 %v1929, %v2191
      %v2288 = vadd.f32 %v1932, %v2194
      %v2289 = vadd.f32 %v1937, %v2199
      %v2290 = vadd.f32 %v1940, %v2202
      %v2291 = vadd.f32 %v1945, %v2207
      %v2292 = vadd.f32 %v1948, %v2210
      %v2293 = vadd.f32 %v1953, %v2215
      %v2294 = vadd.f32 %v1956, %v2218
      %v2295 = vadd.f32 %v1961, %v2223
      %v2296 = vadd.f32 %v1964, %v2226
      %v2297 = vadd.f32 %v1969, %v2231
      %v2298 = vadd.f32 %v1972, %v2234
      %v2299 = vadd.f32 %v1977, %v2239
      %v2300 = vadd.f32 %v1980, %v2242
      %v2301 = vadd.f32 %v1985, %v2247
      %v2302 = vadd.f32 %v1988, %v2250
      %v2303 = vadd.f32 %v1993, %v2255
      %v2304 = vadd.f32 %v1996, %v2258
      %v2305 = vadd.f32 %v2001, %v2263
      %v2306 = vadd.f32 %v2004, %v2266
      %v2307 = vadd.f32 %v2009, %v2271
      %v2308 = vadd.f32 %v2012, %v2274
      %v2309 = vld [vmem:[%s1459 + $0x7] sm:$0xff]
      %v2310 = vld [vmem:[%s1459 + $0xf] sm:$0xff]
      %v2311 = vld [vmem:[%s1459 + $0x27] sm:$0xff]
      %v2312 = vld [vmem:[%s1459 + $0x2f] sm:$0xff]
      %v2313 = vld [vmem:[%s1459 + $0x47] sm:$0xff]
      %v2314 = vld [vmem:[%s1459 + $0x4f] sm:$0xff]
      %v2315 = vld [vmem:[%s1459 + $0x67] sm:$0xff]
      %v2316 = vld [vmem:[%s1459 + $0x6f] sm:$0xff]
      %v2317 = vld [vmem:[%s1459 + $0x87] sm:$0xff]
      %v2318 = vld [vmem:[%s1459 + $0x8f] sm:$0xff]
      %v2319 = vld [vmem:[%s1459 + $0xa7] sm:$0xff]
      %v2320 = vld [vmem:[%s1459 + $0xaf] sm:$0xff]
      %v2321 = vld [vmem:[%s1459 + $0xc7] sm:$0xff]
      %v2322 = vld [vmem:[%s1459 + $0xcf] sm:$0xff]
      %v2323 = vld [vmem:[%s1459 + $0xe7] sm:$0xff]
      %v2324 = vld [vmem:[%s1459 + $0xef] sm:$0xff]
      %v2325 = vld [vmem:[%s1459 + $0x107] sm:$0xff]
      %v2326 = vld [vmem:[%s1459 + $0x10f] sm:$0xff]
      %v2327 = vld [vmem:[%s1459 + $0x127] sm:$0xff]
      %v2328 = vld [vmem:[%s1459 + $0x12f] sm:$0xff]
      %v2329 = vld [vmem:[%s1459 + $0x147] sm:$0xff]
      %v2330 = vld [vmem:[%s1459 + $0x14f] sm:$0xff]
      %v2331 = vld [vmem:[%s1459 + $0x167] sm:$0xff]
      %v2332 = vld [vmem:[%s1459 + $0x16f] sm:$0xff]
      %v2333 = vld [vmem:[%s1459 + $0x187] sm:$0xff]
      %v2334 = vld [vmem:[%s1459 + $0x18f] sm:$0xff]
      %v2335 = vld [vmem:[%s1459 + $0x1a7] sm:$0xff]
      %v2336 = vld [vmem:[%s1459 + $0x1af] sm:$0xff]
      %v2337 = vld [vmem:[%s1459 + $0x1c7] sm:$0xff]
      %v2338 = vld [vmem:[%s1459 + $0x1cf] sm:$0xff]
      %v2339 = vld [vmem:[%s1459 + $0x1e7] sm:$0xff]
      %v2340 = vld [vmem:[%s1459 + $0x1ef] sm:$0xff]
      %v2341 = vpack.c.bf16 %v2310, %v2309
      %v2342 = vpack.c.bf16 %v2312, %v2311
      %v2343 = vpack.c.bf16 %v2314, %v2313
      %v2344 = vpack.c.bf16 %v2316, %v2315
      %v2345 = vpack.c.bf16 %v2318, %v2317
      %v2346 = vpack.c.bf16 %v2320, %v2319
      %v2347 = vpack.c.bf16 %v2322, %v2321
      %v2348 = vpack.c.bf16 %v2324, %v2323
      %v2349 = vpack.c.bf16 %v2326, %v2325
      %v2350 = vpack.c.bf16 %v2328, %v2327
      %v2351 = vpack.c.bf16 %v2330, %v2329
      %v2352 = vpack.c.bf16 %v2332, %v2331
      %v2353 = vpack.c.bf16 %v2334, %v2333
      %v2354 = vpack.c.bf16 %v2336, %v2335
      %v2355 = vpack.c.bf16 %v2338, %v2337
      %v2356 = vpack.c.bf16 %v2340, %v2339
      %s2357 = scalar_lea.vmem %s5, 12
      %v2358 = vld [vmem:[%s2357] sm:$0xf]
      %v2360 = vsel %vm949, %v2341, 0
      %v2363 = vsel %vm949, %v2342, 0
      %v2366 = vsel %vm949, %v2343, 0
      %v2369 = vsel %vm949, %v2344, 0
      %v2372 = vsel %vm949, %v2345, 0
      %v2375 = vsel %vm949, %v2346, 0
      %v2378 = vsel %vm949, %v2347, 0
      %v2381 = vsel %vm949, %v2348, 0
      %v2384 = vsel %vm949, %v2349, 0
      %v2387 = vsel %vm949, %v2350, 0
      %v2390 = vsel %vm949, %v2351, 0
      %v2393 = vsel %vm949, %v2352, 0
      %v2396 = vsel %vm949, %v2353, 0
      %v2399 = vsel %vm949, %v2354, 0
      %v2402 = vsel %vm949, %v2355, 0
      %v2405 = vsel %vm949, %v2356, 0
      %v2408 = vsel %vm998, %v2358, 0
      %2410 = vmatprep.subr.bf16.mxu0 0
      %2411 = vmatpush1.bf16.msra.mxu0 %v2408
      %2412 = vmatprep.subr.bf16.mxu0 0
      %2413 = vmatpush1.bf16.msra.mxu0 0
      %2414 = vmatprep.subr.bf16.mxu0 0
      %2415 = vmatpush1.bf16.msra.mxu0 0
      %2416 = vmatprep.subr.bf16.mxu0 0
      %2417 = vmatpush1.bf16.msra.mxu0 0
      %2418 = vmatprep.subr.bf16.mxu0 0
      %2419 = vmatpush1.bf16.msra.mxu0 0
      %2420 = vmatprep.subr.bf16.mxu0 0
      %2421 = vmatpush1.bf16.msra.mxu0 0
      %2422 = vmatprep.subr.bf16.mxu0 0
      %2423 = vmatpush1.bf16.msra.mxu0 0
      %2424 = vmatprep.subr.bf16.mxu0 0
      %2425 = vmatpush1.bf16.msra.mxu0 0
      %2426 = vmatprep.subr.bf16.mxu0 0
      %2427 = vmatpush1.bf16.msra.mxu0 0
      %2428 = vmatprep.subr.bf16.mxu0 0
      %2429 = vmatpush1.bf16.msra.mxu0 0
      %2430 = vmatprep.subr.bf16.mxu0 0
      %2431 = vmatpush1.bf16.msra.mxu0 0
      %2432 = vmatprep.subr.bf16.mxu0 0
      %2433 = vmatpush1.bf16.msra.mxu0 0
      %2434 = vmatprep.subr.bf16.mxu0 0
      %2435 = vmatpush1.bf16.msra.mxu0 0
      %2436 = vmatprep.subr.bf16.mxu0 0
      %2437 = vmatpush1.bf16.msra.mxu0 0
      %2438 = vmatprep.subr.bf16.mxu0 0
      %2439 = vmatpush1.bf16.msra.mxu0 0
      %2440 = vmatprep.subr.bf16.mxu0 0
      %2441 = vmatpush1.bf16.msra.mxu0 0
      %2442 = vmatprep.mubr.bf16.mxu0 0
      %2443 = vmatmul.mubr.bf16.gmra.mrb[0].mxu0 %v2360
      %v2444 = vpop.f32.mrb[0].mxu0
      %v2445 = vadd.f32 0.0, %v2444
      %v2446 = vpop.f32.mrb[0].mxu0
      %v2447 = vpop.f32.mrb[0].mxu0
      %v2448 = vadd.f32 0.0, %v2447
      %v2449 = vpop.f32.mrb[0].mxu0
      %2450 = vmatprep.mubr.bf16.mxu0 0
      %2451 = vmatmul.mubr.bf16.gmra.mrb[0].mxu0 %v2363
      %v2452 = vpop.f32.mrb[0].mxu0
      %v2453 = vadd.f32 0.0, %v2452
      %v2454 = vpop.f32.mrb[0].mxu0
      %v2455 = vpop.f32.mrb[0].mxu0
      %v2456 = vadd.f32 0.0, %v2455
      %v2457 = vpop.f32.mrb[0].mxu0
      %2458 = vmatprep.mubr.bf16.mxu0 0
      %2459 = vmatmul.mubr.bf16.gmra.mrb[0].mxu0 %v2366
      %v2460 = vpop.f32.mrb[0].mxu0
      %v2461 = vadd.f32 0.0, %v2460
      %v2462 = vpop.f32.mrb[0].mxu0
      %v2463 = vpop.f32.mrb[0].mxu0
      %v2464 = vadd.f32 0.0, %v2463
      %v2465 = vpop.f32.mrb[0].mxu0
      %2466 = vmatprep.mubr.bf16.mxu0 0
      %2467 = vmatmul.mubr.bf16.gmra.mrb[0].mxu0 %v2369
      %v2468 = vpop.f32.mrb[0].mxu0
      %v2469 = vadd.f32 0.0, %v2468
      %v2470 = vpop.f32.mrb[0].mxu0
      %v2471 = vpop.f32.mrb[0].mxu0
      %v2472 = vadd.f32 0.0, %v2471
      %v2473 = vpop.f32.mrb[0].mxu0
      %2474 = vmatprep.mubr.bf16.mxu0 0
      %2475 = vmatmul.mubr.bf16.gmra.mrb[0].mxu0 %v2372
      %v2476 = vpop.f32.mrb[0].mxu0
      %v2477 = vadd.f32 0.0, %v2476
      %v2478 = vpop.f32.mrb[0].mxu0
      %v2479 = vpop.f32.mrb[0].mxu0
      %v2480 = vadd.f32 0.0, %v2479
      %v2481 = vpop.f32.mrb[0].mxu0
      %2482 = vmatprep.mubr.bf16.mxu0 0
      %2483 = vmatmul.mubr.bf16.gmra.mrb[0].mxu0 %v2375
      %v2484 = vpop.f32.mrb[0].mxu0
      %v2485 = vadd.f32 0.0, %v2484
      %v2486 = vpop.f32.mrb[0].mxu0
      %v2487 = vpop.f32.mrb[0].mxu0
      %v2488 = vadd.f32 0.0, %v2487
      %v2489 = vpop.f32.mrb[0].mxu0
      %2490 = vmatprep.mubr.bf16.mxu0 0
      %2491 = vmatmul.mubr.bf16.gmra.mrb[0].mxu0 %v2378
      %v2492 = vpop.f32.mrb[0].mxu0
      %v2493 = vadd.f32 0.0, %v2492
      %v2494 = vpop.f32.mrb[0].mxu0
      %v2495 = vpop.f32.mrb[0].mxu0
      %v2496 = vadd.f32 0.0, %v2495
      %v2497 = vpop.f32.mrb[0].mxu0
      %2498 = vmatprep.mubr.bf16.mxu0 0
      %2499 = vmatmul.mubr.bf16.gmra.mrb[0].mxu0 %v2381
      %v2500 = vpop.f32.mrb[0].mxu0
      %v2501 = vadd.f32 0.0, %v2500
      %v2502 = vpop.f32.mrb[0].mxu0
      %v2503 = vpop.f32.mrb[0].mxu0
      %v2504 = vadd.f32 0.0, %v2503
      %v2505 = vpop.f32.mrb[0].mxu0
      %2506 = vmatprep.mubr.bf16.mxu0 0
      %2507 = vmatmul.mubr.bf16.gmra.mrb[0].mxu0 %v2384
      %v2508 = vpop.f32.mrb[0].mxu0
      %v2509 = vadd.f32 0.0, %v2508
      %v2510 = vpop.f32.mrb[0].mxu0
      %v2511 = vpop.f32.mrb[0].mxu0
      %v2512 = vadd.f32 0.0, %v2511
      %v2513 = vpop.f32.mrb[0].mxu0
      %2514 = vmatprep.mubr.bf16.mxu0 0
      %2515 = vmatmul.mubr.bf16.gmra.mrb[0].mxu0 %v2387
      %v2516 = vpop.f32.mrb[0].mxu0
      %v2517 = vadd.f32 0.0, %v2516
      %v2518 = vpop.f32.mrb[0].mxu0
      %v2519 = vpop.f32.mrb[0].mxu0
      %v2520 = vadd.f32 0.0, %v2519
      %v2521 = vpop.f32.mrb[0].mxu0
      %2522 = vmatprep.mubr.bf16.mxu0 0
      %2523 = vmatmul.mubr.bf16.gmra.mrb[0].mxu0 %v2390
      %v2524 = vpop.f32.mrb[0].mxu0
      %v2525 = vadd.f32 0.0, %v2524
      %v2526 = vpop.f32.mrb[0].mxu0
      %v2527 = vpop.f32.mrb[0].mxu0
      %v2528 = vadd.f32 0.0, %v2527
      %v2529 = vpop.f32.mrb[0].mxu0
      %2530 = vmatprep.mubr.bf16.mxu0 0
      %2531 = vmatmul.mubr.bf16.gmra.mrb[0].mxu0 %v2393
      %v2532 = vpop.f32.mrb[0].mxu0
      %v2533 = vadd.f32 0.0, %v2532
      %v2534 = vpop.f32.mrb[0].mxu0
      %v2535 = vpop.f32.mrb[0].mxu0
      %v2536 = vadd.f32 0.0, %v2535
      %v2537 = vpop.f32.mrb[0].mxu0
      %2538 = vmatprep.mubr.bf16.mxu0 0
      %2539 = vmatmul.mubr.bf16.gmra.mrb[0].mxu0 %v2396
      %v2540 = vpop.f32.mrb[0].mxu0
      %v2541 = vadd.f32 0.0, %v2540
      %v2542 = vpop.f32.mrb[0].mxu0
      %v2543 = vpop.f32.mrb[0].mxu0
      %v2544 = vadd.f32 0.0, %v2543
      %v2545 = vpop.f32.mrb[0].mxu0
      %2546 = vmatprep.mubr.bf16.mxu0 0
      %2547 = vmatmul.mubr.bf16.gmra.mrb[0].mxu0 %v2399
      %v2548 = vpop.f32.mrb[0].mxu0
      %v2549 = vadd.f32 0.0, %v2548
      %v2550 = vpop.f32.mrb[0].mxu0
      %v2551 = vpop.f32.mrb[0].mxu0
      %v2552 = vadd.f32 0.0, %v2551
      %v2553 = vpop.f32.mrb[0].mxu0
      %2554 = vmatprep.mubr.bf16.mxu0 0
      %2555 = vmatmul.mubr.bf16.gmra.mrb[0].mxu0 %v2402
      %v2556 = vpop.f32.mrb[0].mxu0
      %v2557 = vadd.f32 0.0, %v2556
      %v2558 = vpop.f32.mrb[0].mxu0
      %v2559 = vpop.f32.mrb[0].mxu0
      %v2560 = vadd.f32 0.0, %v2559
      %v2561 = vpop.f32.mrb[0].mxu0
      %2562 = vmatprep.mubr.bf16.mxu0 0
      %2563 = vmatmul.mubr.bf16.gmra.mrb[0].mxu0 %v2405
      %v2564 = vpop.f32.mrb[0].mxu0
      %v2565 = vadd.f32 0.0, %v2564
      %v2566 = vpop.f32.mrb[0].mxu0
      %v2567 = vpop.f32.mrb[0].mxu0
      %v2568 = vadd.f32 0.0, %v2567
      %v2569 = vpop.f32.mrb[0].mxu0
      %2570 = vdwg.mxu0
      %v2571 = vadd.f32 %v2277, %v2445
      %v2572 = vadd.f32 %v2278, %v2448
      %v2573 = vadd.f32 %v2279, %v2453
      %v2574 = vadd.f32 %v2280, %v2456
      %v2575 = vadd.f32 %v2281, %v2461
      %v2576 = vadd.f32 %v2282, %v2464
      %v2577 = vadd.f32 %v2283, %v2469
      %v2578 = vadd.f32 %v2284, %v2472
      %v2579 = vadd.f32 %v2285, %v2477
      %v2580 = vadd.f32 %v2286, %v2480
      %v2581 = vadd.f32 %v2287, %v2485
      %v2582 = vadd.f32 %v2288, %v2488
      %v2583 = vadd.f32 %v2289, %v2493
      %v2584 = vadd.f32 %v2290, %v2496
      %v2585 = vadd.f32 %v2291, %v2501
      %v2586 = vadd.f32 %v2292, %v2504
      %v2587 = vadd.f32 %v2293, %v2509
      %v2588 = vadd.f32 %v2294, %v2512
      %v2589 = vadd.f32 %v2295, %v2517
      %v2590 = vadd.f32 %v2296, %v2520
      %v2591 = vadd.f32 %v2297, %v2525
      %v2592 = vadd.f32 %v2298, %v2528
      %v2593 = vadd.f32 %v2299, %v2533
      %v2594 = vadd.f32 %v2300, %v2536
      %v2595 = vadd.f32 %v2301, %v2541
      %v2596 = vadd.f32 %v2302, %v2544
      %v2597 = vadd.f32 %v2303, %v2549
      %v2598 = vadd.f32 %v2304, %v2552
      %v2599 = vadd.f32 %v2305, %v2557
      %v2600 = vadd.f32 %v2306, %v2560
      %v2601 = vadd.f32 %v2307, %v2565
      %v2602 = vadd.f32 %v2308, %v2568
      %v2603 = vld [vmem:[%s1459 + $0x8] sm:$0xff]
      %v2604 = vld [vmem:[%s1459 + $0x10] sm:$0xff]
      %v2605 = vld [vmem:[%s1459 + $0x28] sm:$0xff]
      %v2606 = vld [vmem:[%s1459 + $0x30] sm:$0xff]
      %v2607 = vld [vmem:[%s1459 + $0x48] sm:$0xff]
      %v2608 = vld [vmem:[%s1459 + $0x50] sm:$0xff]
      %v2609 = vld [vmem:[%s1459 + $0x68] sm:$0xff]
      %v2610 = vld [vmem:[%s1459 + $0x70] sm:$0xff]
      %v2611 = vld [vmem:[%s1459 + $0x88] sm:$0xff]
      %v2612 = vld [vmem:[%s1459 + $0x90] sm:$0xff]
      %v2613 = vld [vmem:[%s1459 + $0xa8] sm:$0xff]
      %v2614 = vld [vmem:[%s1459 + $0xb0] sm:$0xff]
      %v2615 = vld [vmem:[%s1459 + $0xc8] sm:$0xff]
      %v2616 = vld [vmem:[%s1459 + $0xd0] sm:$0xff]
      %v2617 = vld [vmem:[%s1459 + $0xe8] sm:$0xff]
      %v2618 = vld [vmem:[%s1459 + $0xf0] sm:$0xff]
      %v2619 = vld [vmem:[%s1459 + $0x108] sm:$0xff]
      %v2620 = vld [vmem:[%s1459 + $0x110] sm:$0xff]
      %v2621 = vld [vmem:[%s1459 + $0x128] sm:$0xff]
      %v2622 = vld [vmem:[%s1459 + $0x130] sm:$0xff]
      %v2623 = vld [vmem:[%s1459 + $0x148] sm:$0xff]
      %v2624 = vld [vmem:[%s1459 + $0x150] sm:$0xff]
      %v2625 = vld [vmem:[%s1459 + $0x168] sm:$0xff]
      %v2626 = vld [vmem:[%s1459 + $0x170] sm:$0xff]
      %v2627 = vld [vmem:[%s1459 + $0x188] sm:$0xff]
      %v2628 = vld [vmem:[%s1459 + $0x190] sm:$0xff]
      %v2629 = vld [vmem:[%s1459 + $0x1a8] sm:$0xff]
      %v2630 = vld [vmem:[%s1459 + $0x1b0] sm:$0xff]
      %v2631 = vld [vmem:[%s1459 + $0x1c8] sm:$0xff]
      %v2632 = vld [vmem:[%s1459 + $0x1d0] sm:$0xff]
      %v2633 = vld [vmem:[%s1459 + $0x1e8] sm:$0xff]
      %v2634 = vld [vmem:[%s1459 + $0x1f0] sm:$0xff]
      %v2635 = vpack.c.bf16 %v2604, %v2603
      %v2636 = vpack.c.bf16 %v2606, %v2605
      %v2637 = vpack.c.bf16 %v2608, %v2607
      %v2638 = vpack.c.bf16 %v2610, %v2609
      %v2639 = vpack.c.bf16 %v2612, %v2611
      %v2640 = vpack.c.bf16 %v2614, %v2613
      %v2641 = vpack.c.bf16 %v2616, %v2615
      %v2642 = vpack.c.bf16 %v2618, %v2617
      %v2643 = vpack.c.bf16 %v2620, %v2619
      %v2644 = vpack.c.bf16 %v2622, %v2621
      %v2645 = vpack.c.bf16 %v2624, %v2623
      %v2646 = vpack.c.bf16 %v2626, %v2625
      %v2647 = vpack.c.bf16 %v2628, %v2627
      %v2648 = vpack.c.bf16 %v2630, %v2629
      %v2649 = vpack.c.bf16 %v2632, %v2631
      %v2650 = vpack.c.bf16 %v2634, %v2633
      %s2651 = scalar_lea.vmem %s5, 16
      %v2652 = vld [vmem:[%s2651] sm:$0xf]
      %v2654 = vsel %vm949, %v2635, 0
      %v2657 = vsel %vm949, %v2636, 0
      %v2660 = vsel %vm949, %v2637, 0
      %v2663 = vsel %vm949, %v2638, 0
      %v2666 = vsel %vm949, %v2639, 0
      %v2669 = vsel %vm949, %v2640, 0
      %v2672 = vsel %vm949, %v2641, 0
      %v2675 = vsel %vm949, %v2642, 0
      %v2678 = vsel %vm949, %v2643, 0
      %v2681 = vsel %vm949, %v2644, 0
      %v2684 = vsel %vm949, %v2645, 0
      %v2687 = vsel %vm949, %v2646, 0
      %v2690 = vsel %vm949, %v2647, 0
      %v2693 = vsel %vm949, %v2648, 0
      %v2696 = vsel %vm949, %v2649, 0
      %v2699 = vsel %vm949, %v2650, 0
      %v2702 = vsel %vm998, %v2652, 0
      %2704 = vmatprep.subr.bf16.mxu0 0
      %2705 = vmatpush1.bf16.msra.mxu0 %v2702
      %2706 = vmatprep.subr.bf16.mxu0 0
      %2707 = vmatpush1.bf16.msra.mxu0 0
      %2708 = vmatprep.subr.bf16.mxu0 0
      %2709 = vmatpush1.bf16.msra.mxu0 0
      %2710 = vmatprep.subr.bf16.mxu0 0
      %2711 = vmatpush1.bf16.msra.mxu0 0
      %2712 = vmatprep.subr.bf16.mxu0 0
      %2713 = vmatpush1.bf16.msra.mxu0 0
      %2714 = vmatprep.subr.bf16.mxu0 0
      %2715 = vmatpush1.bf16.msra.mxu0 0
      %2716 = vmatprep.subr.bf16.mxu0 0
      %2717 = vmatpush1.bf16.msra.mxu0 0
      %2718 = vmatprep.subr.bf16.mxu0 0
      %2719 = vmatpush1.bf16.msra.mxu0 0
      %2720 = vmatprep.subr.bf16.mxu0 0
      %2721 = vmatpush1.bf16.msra.mxu0 0
      %2722 = vmatprep.subr.bf16.mxu0 0
      %2723 = vmatpush1.bf16.msra.mxu0 0
      %2724 = vmatprep.subr.bf16.mxu0 0
      %2725 = vmatpush1.bf16.msra.mxu0 0
      %2726 = vmatprep.subr.bf16.mxu0 0
      %2727 = vmatpush1.bf16.msra.mxu0 0
      %2728 = vmatprep.subr.bf16.mxu0 0
      %2729 = vmatpush1.bf16.msra.mxu0 0
      %2730 = vmatprep.subr.bf16.mxu0 0
      %2731 = vmatpush1.bf16.msra.mxu0 0
      %2732 = vmatprep.subr.bf16.mxu0 0
      %2733 = vmatpush1.bf16.msra.mxu0 0
      %2734 = vmatprep.subr.bf16.mxu0 0
      %2735 = vmatpush1.bf16.msra.mxu0 0
      %2736 = vmatprep.mubr.bf16.mxu0 0
      %2737 = vmatmul.mubr.bf16.gmra.mrb[0].mxu0 %v2654
      %v2738 = vpop.f32.mrb[0].mxu0
      %v2739 = vadd.f32 0.0, %v2738
      %v2740 = vpop.f32.mrb[0].mxu0
      %v2741 = vpop.f32.mrb[0].mxu0
      %v2742 = vadd.f32 0.0, %v2741
      %v2743 = vpop.f32.mrb[0].mxu0
      %2744 = vmatprep.mubr.bf16.mxu0 0
      %2745 = vmatmul.mubr.bf16.gmra.mrb[0].mxu0 %v2657
      %v2746 = vpop.f32.mrb[0].mxu0
      %v2747 = vadd.f32 0.0, %v2746
      %v2748 = vpop.f32.mrb[0].mxu0
      %v2749 = vpop.f32.mrb[0].mxu0
      %v2750 = vadd.f32 0.0, %v2749
      %v2751 = vpop.f32.mrb[0].mxu0
      %2752 = vmatprep.mubr.bf16.mxu0 0
      %2753 = vmatmul.mubr.bf16.gmra.mrb[0].mxu0 %v2660
      %v2754 = vpop.f32.mrb[0].mxu0
      %v2755 = vadd.f32 0.0, %v2754
      %v2756 = vpop.f32.mrb[0].mxu0
      %v2757 = vpop.f32.mrb[0].mxu0
      %v2758 = vadd.f32 0.0, %v2757
      %v2759 = vpop.f32.mrb[0].mxu0
      %2760 = vmatprep.mubr.bf16.mxu0 0
      %2761 = vmatmul.mubr.bf16.gmra.mrb[0].mxu0 %v2663
      %v2762 = vpop.f32.mrb[0].mxu0
      %v2763 = vadd.f32 0.0, %v2762
      %v2764 = vpop.f32.mrb[0].mxu0
      %v2765 = vpop.f32.mrb[0].mxu0
      %v2766 = vadd.f32 0.0, %v2765
      %v2767 = vpop.f32.mrb[0].mxu0
      %2768 = vmatprep.mubr.bf16.mxu0 0
      %2769 = vmatmul.mubr.bf16.gmra.mrb[0].mxu0 %v2666
      %v2770 = vpop.f32.mrb[0].mxu0
      %v2771 = vadd.f32 0.0, %v2770
      %v2772 = vpop.f32.mrb[0].mxu0
      %v2773 = vpop.f32.mrb[0].mxu0
      %v2774 = vadd.f32 0.0, %v2773
      %v2775 = vpop.f32.mrb[0].mxu0
      %2776 = vmatprep.mubr.bf16.mxu0 0
      %2777 = vmatmul.mubr.bf16.gmra.mrb[0].mxu0 %v2669
      %v2778 = vpop.f32.mrb[0].mxu0
      %v2779 = vadd.f32 0.0, %v2778
      %v2780 = vpop.f32.mrb[0].mxu0
      %v2781 = vpop.f32.mrb[0].mxu0
      %v2782 = vadd.f32 0.0, %v2781
      %v2783 = vpop.f32.mrb[0].mxu0
      %2784 = vmatprep.mubr.bf16.mxu0 0
      %2785 = vmatmul.mubr.bf16.gmra.mrb[0].mxu0 %v2672
      %v2786 = vpop.f32.mrb[0].mxu0
      %v2787 = vadd.f32 0.0, %v2786
      %v2788 = vpop.f32.mrb[0].mxu0
      %v2789 = vpop.f32.mrb[0].mxu0
      %v2790 = vadd.f32 0.0, %v2789
      %v2791 = vpop.f32.mrb[0].mxu0
      %2792 = vmatprep.mubr.bf16.mxu0 0
      %2793 = vmatmul.mubr.bf16.gmra.mrb[0].mxu0 %v2675
      %v2794 = vpop.f32.mrb[0].mxu0
      %v2795 = vadd.f32 0.0, %v2794
      %v2796 = vpop.f32.mrb[0].mxu0
      %v2797 = vpop.f32.mrb[0].mxu0
      %v2798 = vadd.f32 0.0, %v2797
      %v2799 = vpop.f32.mrb[0].mxu0
      %2800 = vmatprep.mubr.bf16.mxu0 0
      %2801 = vmatmul.mubr.bf16.gmra.mrb[0].mxu0 %v2678
      %v2802 = vpop.f32.mrb[0].mxu0
      %v2803 = vadd.f32 0.0, %v2802
      %v2804 = vpop.f32.mrb[0].mxu0
      %v2805 = vpop.f32.mrb[0].mxu0
      %v2806 = vadd.f32 0.0, %v2805
      %v2807 = vpop.f32.mrb[0].mxu0
      %2808 = vmatprep.mubr.bf16.mxu0 0
      %2809 = vmatmul.mubr.bf16.gmra.mrb[0].mxu0 %v2681
      %v2810 = vpop.f32.mrb[0].mxu0
      %v2811 = vadd.f32 0.0, %v2810
      %v2812 = vpop.f32.mrb[0].mxu0
      %v2813 = vpop.f32.mrb[0].mxu0
      %v2814 = vadd.f32 0.0, %v2813
      %v2815 = vpop.f32.mrb[0].mxu0
      %2816 = vmatprep.mubr.bf16.mxu0 0
      %2817 = vmatmul.mubr.bf16.gmra.mrb[0].mxu0 %v2684
      %v2818 = vpop.f32.mrb[0].mxu0
      %v2819 = vadd.f32 0.0, %v2818
      %v2820 = vpop.f32.mrb[0].mxu0
      %v2821 = vpop.f32.mrb[0].mxu0
      %v2822 = vadd.f32 0.0, %v2821
      %v2823 = vpop.f32.mrb[0].mxu0
      %2824 = vmatprep.mubr.bf16.mxu0 0
      %2825 = vmatmul.mubr.bf16.gmra.mrb[0].mxu0 %v2687
      %v2826 = vpop.f32.mrb[0].mxu0
      %v2827 = vadd.f32 0.0, %v2826
      %v2828 = vpop.f32.mrb[0].mxu0
      %v2829 = vpop.f32.mrb[0].mxu0
      %v2830 = vadd.f32 0.0, %v2829
      %v2831 = vpop.f32.mrb[0].mxu0
      %2832 = vmatprep.mubr.bf16.mxu0 0
      %2833 = vmatmul.mubr.bf16.gmra.mrb[0].mxu0 %v2690
      %v2834 = vpop.f32.mrb[0].mxu0
      %v2835 = vadd.f32 0.0, %v2834
      %v2836 = vpop.f32.mrb[0].mxu0
      %v2837 = vpop.f32.mrb[0].mxu0
      %v2838 = vadd.f32 0.0, %v2837
      %v2839 = vpop.f32.mrb[0].mxu0
      %2840 = vmatprep.mubr.bf16.mxu0 0
      %2841 = vmatmul.mubr.bf16.gmra.mrb[0].mxu0 %v2693
      %v2842 = vpop.f32.mrb[0].mxu0
      %v2843 = vadd.f32 0.0, %v2842
      %v2844 = vpop.f32.mrb[0].mxu0
      %v2845 = vpop.f32.mrb[0].mxu0
      %v2846 = vadd.f32 0.0, %v2845
      %v2847 = vpop.f32.mrb[0].mxu0
      %2848 = vmatprep.mubr.bf16.mxu0 0
      %2849 = vmatmul.mubr.bf16.gmra.mrb[0].mxu0 %v2696
      %v2850 = vpop.f32.mrb[0].mxu0
      %v2851 = vadd.f32 0.0, %v2850
      %v2852 = vpop.f32.mrb[0].mxu0
      %v2853 = vpop.f32.mrb[0].mxu0
      %v2854 = vadd.f32 0.0, %v2853
      %v2855 = vpop.f32.mrb[0].mxu0
      %2856 = vmatprep.mubr.bf16.mxu0 0
      %2857 = vmatmul.mubr.bf16.gmra.mrb[0].mxu0 %v2699
      %v2858 = vpop.f32.mrb[0].mxu0
      %v2859 = vadd.f32 0.0, %v2858
      %v2860 = vpop.f32.mrb[0].mxu0
      %v2861 = vpop.f32.mrb[0].mxu0
      %v2862 = vadd.f32 0.0, %v2861
      %v2863 = vpop.f32.mrb[0].mxu0
      %2864 = vdwg.mxu0
      %v2865 = vadd.f32 %v2571, %v2739
      %v2866 = vadd.f32 %v2572, %v2742
      %v2867 = vadd.f32 %v2573, %v2747
      %v2868 = vadd.f32 %v2574, %v2750
      %v2869 = vadd.f32 %v2575, %v2755
      %v2870 = vadd.f32 %v2576, %v2758
      %v2871 = vadd.f32 %v2577, %v2763
      %v2872 = vadd.f32 %v2578, %v2766
      %v2873 = vadd.f32 %v2579, %v2771
      %v2874 = vadd.f32 %v2580, %v2774
      %v2875 = vadd.f32 %v2581, %v2779
      %v2876 = vadd.f32 %v2582, %v2782
      %v2877 = vadd.f32 %v2583, %v2787
      %v2878 = vadd.f32 %v2584, %v2790
      %v2879 = vadd.f32 %v2585, %v2795
      %v2880 = vadd.f32 %v2586, %v2798
      %v2881 = vadd.f32 %v2587, %v2803
      %v2882 = vadd.f32 %v2588, %v2806
      %v2883 = vadd.f32 %v2589, %v2811
      %v2884 = vadd.f32 %v2590, %v2814
      %v2885 = vadd.f32 %v2591, %v2819
      %v2886 = vadd.f32 %v2592, %v2822
      %v2887 = vadd.f32 %v2593, %v2827
      %v2888 = vadd.f32 %v2594, %v2830
      %v2889 = vadd.f32 %v2595, %v2835
      %v2890 = vadd.f32 %v2596, %v2838
      %v2891 = vadd.f32 %v2597, %v2843
      %v2892 = vadd.f32 %v2598, %v2846
      %v2893 = vadd.f32 %v2599, %v2851
      %v2894 = vadd.f32 %v2600, %v2854
      %v2895 = vadd.f32 %v2601, %v2859
      %v2896 = vadd.f32 %v2602, %v2862
      %v2897 = vld [vmem:[%s1459 + $0x9] sm:$0xff]
      %v2898 = vld [vmem:[%s1459 + $0x11] sm:$0xff]
      %v2899 = vld [vmem:[%s1459 + $0x29] sm:$0xff]
      %v2900 = vld [vmem:[%s1459 + $0x31] sm:$0xff]
      %v2901 = vld [vmem:[%s1459 + $0x49] sm:$0xff]
      %v2902 = vld [vmem:[%s1459 + $0x51] sm:$0xff]
      %v2903 = vld [vmem:[%s1459 + $0x69] sm:$0xff]
      %v2904 = vld [vmem:[%s1459 + $0x71] sm:$0xff]
      %v2905 = vld [vmem:[%s1459 + $0x89] sm:$0xff]
      %v2906 = vld [vmem:[%s1459 + $0x91] sm:$0xff]
      %v2907 = vld [vmem:[%s1459 + $0xa9] sm:$0xff]
      %v2908 = vld [vmem:[%s1459 + $0xb1] sm:$0xff]
      %v2909 = vld [vmem:[%s1459 + $0xc9] sm:$0xff]
      %v2910 = vld [vmem:[%s1459 + $0xd1] sm:$0xff]
      %v2911 = vld [vmem:[%s1459 + $0xe9] sm:$0xff]
      %v2912 = vld [vmem:[%s1459 + $0xf1] sm:$0xff]
      %v2913 = vld [vmem:[%s1459 + $0x109] sm:$0xff]
      %v2914 = vld [vmem:[%s1459 + $0x111] sm:$0xff]
      %v2915 = vld [vmem:[%s1459 + $0x129] sm:$0xff]
      %v2916 = vld [vmem:[%s1459 + $0x131] sm:$0xff]
      %v2917 = vld [vmem:[%s1459 + $0x149] sm:$0xff]
      %v2918 = vld [vmem:[%s1459 + $0x151] sm:$0xff]
      %v2919 = vld [vmem:[%s1459 + $0x169] sm:$0xff]
      %v2920 = vld [vmem:[%s1459 + $0x171] sm:$0xff]
      %v2921 = vld [vmem:[%s1459 + $0x189] sm:$0xff]
      %v2922 = vld [vmem:[%s1459 + $0x191] sm:$0xff]
      %v2923 = vld [vmem:[%s1459 + $0x1a9] sm:$0xff]
      %v2924 = vld [vmem:[%s1459 + $0x1b1] sm:$0xff]
      %v2925 = vld [vmem:[%s1459 + $0x1c9] sm:$0xff]
      %v2926 = vld [vmem:[%s1459 + $0x1d1] sm:$0xff]
      %v2927 = vld [vmem:[%s1459 + $0x1e9] sm:$0xff]
      %v2928 = vld [vmem:[%s1459 + $0x1f1] sm:$0xff]
      %v2929 = vpack.c.bf16 %v2898, %v2897
      %v2930 = vpack.c.bf16 %v2900, %v2899
      %v2931 = vpack.c.bf16 %v2902, %v2901
      %v2932 = vpack.c.bf16 %v2904, %v2903
      %v2933 = vpack.c.bf16 %v2906, %v2905
      %v2934 = vpack.c.bf16 %v2908, %v2907
      %v2935 = vpack.c.bf16 %v2910, %v2909
      %v2936 = vpack.c.bf16 %v2912, %v2911
      %v2937 = vpack.c.bf16 %v2914, %v2913
      %v2938 = vpack.c.bf16 %v2916, %v2915
      %v2939 = vpack.c.bf16 %v2918, %v2917
      %v2940 = vpack.c.bf16 %v2920, %v2919
      %v2941 = vpack.c.bf16 %v2922, %v2921
      %v2942 = vpack.c.bf16 %v2924, %v2923
      %v2943 = vpack.c.bf16 %v2926, %v2925
      %v2944 = vpack.c.bf16 %v2928, %v2927
      %s2945 = scalar_lea.vmem %s5, 20
      %v2946 = vld [vmem:[%s2945] sm:$0xf]
      %v2948 = vsel %vm949, %v2929, 0
      %v2951 = vsel %vm949, %v2930, 0
      %v2954 = vsel %vm949, %v2931, 0
      %v2957 = vsel %vm949, %v2932, 0
      %v2960 = vsel %vm949, %v2933, 0
      %v2963 = vsel %vm949, %v2934, 0
      %v2966 = vsel %vm949, %v2935, 0
      %v2969 = vsel %vm949, %v2936, 0
      %v2972 = vsel %vm949, %v2937, 0
      %v2975 = vsel %vm949, %v2938, 0
      %v2978 = vsel %vm949, %v2939, 0
      %v2981 = vsel %vm949, %v2940, 0
      %v2984 = vsel %vm949, %v2941, 0
      %v2987 = vsel %vm949, %v2942, 0
      %v2990 = vsel %vm949, %v2943, 0
      %v2993 = vsel %vm949, %v2944, 0
      %v2996 = vsel %vm998, %v2946, 0
      %2998 = vmatprep.subr.bf16.mxu0 0
      %2999 = vmatpush1.bf16.msra.mxu0 %v2996
      %3000 = vmatprep.subr.bf16.mxu0 0
      %3001 = vmatpush1.bf16.msra.mxu0 0
      %3002 = vmatprep.subr.bf16.mxu0 0
      %3003 = vmatpush1.bf16.msra.mxu0 0
      %3004 = vmatprep.subr.bf16.mxu0 0
      %3005 = vmatpush1.bf16.msra.mxu0 0
      %3006 = vmatprep.subr.bf16.mxu0 0
      %3007 = vmatpush1.bf16.msra.mxu0 0
      %3008 = vmatprep.subr.bf16.mxu0 0
      %3009 = vmatpush1.bf16.msra.mxu0 0
      %3010 = vmatprep.subr.bf16.mxu0 0
      %3011 = vmatpush1.bf16.msra.mxu0 0
      %3012 = vmatprep.subr.bf16.mxu0 0
      %3013 = vmatpush1.bf16.msra.mxu0 0
      %3014 = vmatprep.subr.bf16.mxu0 0
      %3015 = vmatpush1.bf16.msra.mxu0 0
      %3016 = vmatprep.subr.bf16.mxu0 0
      %3017 = vmatpush1.bf16.msra.mxu0 0
      %3018 = vmatprep.subr.bf16.mxu0 0
      %3019 = vmatpush1.bf16.msra.mxu0 0
      %3020 = vmatprep.subr.bf16.mxu0 0
      %3021 = vmatpush1.bf16.msra.mxu0 0
      %3022 = vmatprep.subr.bf16.mxu0 0
      %3023 = vmatpush1.bf16.msra.mxu0 0
      %3024 = vmatprep.subr.bf16.mxu0 0
      %3025 = vmatpush1.bf16.msra.mxu0 0
      %3026 = vmatprep.subr.bf16.mxu0 0
      %3027 = vmatpush1.bf16.msra.mxu0 0
      %3028 = vmatprep.subr.bf16.mxu0 0
      %3029 = vmatpush1.bf16.msra.mxu0 0
      %3030 = vmatprep.mubr.bf16.mxu0 0
      %3031 = vmatmul.mubr.bf16.gmra.mrb[0].mxu0 %v2948
      %v3032 = vpop.f32.mrb[0].mxu0
      %v3033 = vadd.f32 0.0, %v3032
      %v3034 = vpop.f32.mrb[0].mxu0
      %v3035 = vpop.f32.mrb[0].mxu0
      %v3036 = vadd.f32 0.0, %v3035
      %v3037 = vpop.f32.mrb[0].mxu0
      %3038 = vmatprep.mubr.bf16.mxu0 0
      %3039 = vmatmul.mubr.bf16.gmra.mrb[0].mxu0 %v2951
      %v3040 = vpop.f32.mrb[0].mxu0
      %v3041 = vadd.f32 0.0, %v3040
      %v3042 = vpop.f32.mrb[0].mxu0
      %v3043 = vpop.f32.mrb[0].mxu0
      %v3044 = vadd.f32 0.0, %v3043
      %v3045 = vpop.f32.mrb[0].mxu0
      %3046 = vmatprep.mubr.bf16.mxu0 0
      %3047 = vmatmul.mubr.bf16.gmra.mrb[0].mxu0 %v2954
      %v3048 = vpop.f32.mrb[0].mxu0
      %v3049 = vadd.f32 0.0, %v3048
      %v3050 = vpop.f32.mrb[0].mxu0
      %v3051 = vpop.f32.mrb[0].mxu0
      %v3052 = vadd.f32 0.0, %v3051
      %v3053 = vpop.f32.mrb[0].mxu0
      %3054 = vmatprep.mubr.bf16.mxu0 0
      %3055 = vmatmul.mubr.bf16.gmra.mrb[0].mxu0 %v2957
      %v3056 = vpop.f32.mrb[0].mxu0
      %v3057 = vadd.f32 0.0, %v3056
      %v3058 = vpop.f32.mrb[0].mxu0
      %v3059 = vpop.f32.mrb[0].mxu0
      %v3060 = vadd.f32 0.0, %v3059
      %v3061 = vpop.f32.mrb[0].mxu0
      %3062 = vmatprep.mubr.bf16.mxu0 0
      %3063 = vmatmul.mubr.bf16.gmra.mrb[0].mxu0 %v2960
      %v3064 = vpop.f32.mrb[0].mxu0
      %v3065 = vadd.f32 0.0, %v3064
      %v3066 = vpop.f32.mrb[0].mxu0
      %v3067 = vpop.f32.mrb[0].mxu0
      %v3068 = vadd.f32 0.0, %v3067
      %v3069 = vpop.f32.mrb[0].mxu0
      %3070 = vmatprep.mubr.bf16.mxu0 0
      %3071 = vmatmul.mubr.bf16.gmra.mrb[0].mxu0 %v2963
      %v3072 = vpop.f32.mrb[0].mxu0
      %v3073 = vadd.f32 0.0, %v3072
      %v3074 = vpop.f32.mrb[0].mxu0
      %v3075 = vpop.f32.mrb[0].mxu0
      %v3076 = vadd.f32 0.0, %v3075
      %v3077 = vpop.f32.mrb[0].mxu0
      %3078 = vmatprep.mubr.bf16.mxu0 0
      %3079 = vmatmul.mubr.bf16.gmra.mrb[0].mxu0 %v2966
      %v3080 = vpop.f32.mrb[0].mxu0
      %v3081 = vadd.f32 0.0, %v3080
      %v3082 = vpop.f32.mrb[0].mxu0
      %v3083 = vpop.f32.mrb[0].mxu0
      %v3084 = vadd.f32 0.0, %v3083
      %v3085 = vpop.f32.mrb[0].mxu0
      %3086 = vmatprep.mubr.bf16.mxu0 0
      %3087 = vmatmul.mubr.bf16.gmra.mrb[0].mxu0 %v2969
      %v3088 = vpop.f32.mrb[0].mxu0
      %v3089 = vadd.f32 0.0, %v3088
      %v3090 = vpop.f32.mrb[0].mxu0
      %v3091 = vpop.f32.mrb[0].mxu0
      %v3092 = vadd.f32 0.0, %v3091
      %v3093 = vpop.f32.mrb[0].mxu0
      %3094 = vmatprep.mubr.bf16.mxu0 0
      %3095 = vmatmul.mubr.bf16.gmra.mrb[0].mxu0 %v2972
      %v3096 = vpop.f32.mrb[0].mxu0
      %v3097 = vadd.f32 0.0, %v3096
      %v3098 = vpop.f32.mrb[0].mxu0
      %v3099 = vpop.f32.mrb[0].mxu0
      %v3100 = vadd.f32 0.0, %v3099
      %v3101 = vpop.f32.mrb[0].mxu0
      %3102 = vmatprep.mubr.bf16.mxu0 0
      %3103 = vmatmul.mubr.bf16.gmra.mrb[0].mxu0 %v2975
      %v3104 = vpop.f32.mrb[0].mxu0
      %v3105 = vadd.f32 0.0, %v3104
      %v3106 = vpop.f32.mrb[0].mxu0
      %v3107 = vpop.f32.mrb[0].mxu0
      %v3108 = vadd.f32 0.0, %v3107
      %v3109 = vpop.f32.mrb[0].mxu0
      %3110 = vmatprep.mubr.bf16.mxu0 0
      %3111 = vmatmul.mubr.bf16.gmra.mrb[0].mxu0 %v2978
      %v3112 = vpop.f32.mrb[0].mxu0
      %v3113 = vadd.f32 0.0, %v3112
      %v3114 = vpop.f32.mrb[0].mxu0
      %v3115 = vpop.f32.mrb[0].mxu0
      %v3116 = vadd.f32 0.0, %v3115
      %v3117 = vpop.f32.mrb[0].mxu0
      %3118 = vmatprep.mubr.bf16.mxu0 0
      %3119 = vmatmul.mubr.bf16.gmra.mrb[0].mxu0 %v2981
      %v3120 = vpop.f32.mrb[0].mxu0
      %v3121 = vadd.f32 0.0, %v3120
      %v3122 = vpop.f32.mrb[0].mxu0
      %v3123 = vpop.f32.mrb[0].mxu0
      %v3124 = vadd.f32 0.0, %v3123
      %v3125 = vpop.f32.mrb[0].mxu0
      %3126 = vmatprep.mubr.bf16.mxu0 0
      %3127 = vmatmul.mubr.bf16.gmra.mrb[0].mxu0 %v2984
      %v3128 = vpop.f32.mrb[0].mxu0
      %v3129 = vadd.f32 0.0, %v3128
      %v3130 = vpop.f32.mrb[0].mxu0
      %v3131 = vpop.f32.mrb[0].mxu0
      %v3132 = vadd.f32 0.0, %v3131
      %v3133 = vpop.f32.mrb[0].mxu0
      %3134 = vmatprep.mubr.bf16.mxu0 0
      %3135 = vmatmul.mubr.bf16.gmra.mrb[0].mxu0 %v2987
      %v3136 = vpop.f32.mrb[0].mxu0
      %v3137 = vadd.f32 0.0, %v3136
      %v3138 = vpop.f32.mrb[0].mxu0
      %v3139 = vpop.f32.mrb[0].mxu0
      %v3140 = vadd.f32 0.0, %v3139
      %v3141 = vpop.f32.mrb[0].mxu0
      %3142 = vmatprep.mubr.bf16.mxu0 0
      %3143 = vmatmul.mubr.bf16.gmra.mrb[0].mxu0 %v2990
      %v3144 = vpop.f32.mrb[0].mxu0
      %v3145 = vadd.f32 0.0, %v3144
      %v3146 = vpop.f32.mrb[0].mxu0
      %v3147 = vpop.f32.mrb[0].mxu0
      %v3148 = vadd.f32 0.0, %v3147
      %v3149 = vpop.f32.mrb[0].mxu0
      %3150 = vmatprep.mubr.bf16.mxu0 0
      %3151 = vmatmul.mubr.bf16.gmra.mrb[0].mxu0 %v2993
      %v3152 = vpop.f32.mrb[0].mxu0
      %v3153 = vadd.f32 0.0, %v3152
      %v3154 = vpop.f32.mrb[0].mxu0
      %v3155 = vpop.f32.mrb[0].mxu0
      %v3156 = vadd.f32 0.0, %v3155
      %v3157 = vpop.f32.mrb[0].mxu0
      %3158 = vdwg.mxu0
      %v3159 = vadd.f32 %v2865, %v3033
      %v3160 = vadd.f32 %v2866, %v3036
      %v3161 = vadd.f32 %v2867, %v3041
      %v3162 = vadd.f32 %v2868, %v3044
      %v3163 = vadd.f32 %v2869, %v3049
      %v3164 = vadd.f32 %v2870, %v3052
      %v3165 = vadd.f32 %v2871, %v3057
      %v3166 = vadd.f32 %v2872, %v3060
      %v3167 = vadd.f32 %v2873, %v3065
      %v3168 = vadd.f32 %v2874, %v3068
      %v3169 = vadd.f32 %v2875, %v3073
      %v3170 = vadd.f32 %v2876, %v3076
      %v3171 = vadd.f32 %v2877, %v3081
      %v3172 = vadd.f32 %v2878, %v3084
      %v3173 = vadd.f32 %v2879, %v3089
      %v3174 = vadd.f32 %v2880, %v3092
      %v3175 = vadd.f32 %v2881, %v3097
      %v3176 = vadd.f32 %v2882, %v3100
      %v3177 = vadd.f32 %v2883, %v3105
      %v3178 = vadd.f32 %v2884, %v3108
      %v3179 = vadd.f32 %v2885, %v3113
      %v3180 = vadd.f32 %v2886, %v3116
      %v3181 = vadd.f32 %v2887, %v3121
      %v3182 = vadd.f32 %v2888, %v3124
      %v3183 = vadd.f32 %v2889, %v3129
      %v3184 = vadd.f32 %v2890, %v3132
      %v3185 = vadd.f32 %v2891, %v3137
      %v3186 = vadd.f32 %v2892, %v3140
      %v3187 = vadd.f32 %v2893, %v3145
      %v3188 = vadd.f32 %v2894, %v3148
      %v3189 = vadd.f32 %v2895, %v3153
      %v3190 = vadd.f32 %v2896, %v3156
      %s3191 = scalar_lea.vmem [#allocation2], 64
      %v3192 = vld [vmem:[%s3191 + $0x7] sm:$0xff]
      %v3193 = vld [vmem:[%s3191 + $0xf] sm:$0xff]
      %v3194 = vld [vmem:[%s3191 + $0x27] sm:$0xff]
      %v3195 = vld [vmem:[%s3191 + $0x2f] sm:$0xff]
      %v3196 = vld [vmem:[%s3191 + $0x47] sm:$0xff]
      %v3197 = vld [vmem:[%s3191 + $0x4f] sm:$0xff]
      %v3198 = vld [vmem:[%s3191 + $0x67] sm:$0xff]
      %v3199 = vld [vmem:[%s3191 + $0x6f] sm:$0xff]
      %v3200 = vld [vmem:[%s3191 + $0x87] sm:$0xff]
      %v3201 = vld [vmem:[%s3191 + $0x8f] sm:$0xff]
      %v3202 = vld [vmem:[%s3191 + $0xa7] sm:$0xff]
      %v3203 = vld [vmem:[%s3191 + $0xaf] sm:$0xff]
      %v3204 = vld [vmem:[%s3191 + $0xc7] sm:$0xff]
      %v3205 = vld [vmem:[%s3191 + $0xcf] sm:$0xff]
      %v3206 = vld [vmem:[%s3191 + $0xe7] sm:$0xff]
      %v3207 = vld [vmem:[%s3191 + $0xef] sm:$0xff]
      %v3208 = vld [vmem:[%s3191 + $0x107] sm:$0xff]
      %v3209 = vld [vmem:[%s3191 + $0x10f] sm:$0xff]
      %v3210 = vld [vmem:[%s3191 + $0x127] sm:$0xff]
      %v3211 = vld [vmem:[%s3191 + $0x12f] sm:$0xff]
      %v3212 = vld [vmem:[%s3191 + $0x147] sm:$0xff]
      %v3213 = vld [vmem:[%s3191 + $0x14f] sm:$0xff]
      %v3214 = vld [vmem:[%s3191 + $0x167] sm:$0xff]
      %v3215 = vld [vmem:[%s3191 + $0x16f] sm:$0xff]
      %v3216 = vld [vmem:[%s3191 + $0x187] sm:$0xff]
      %v3217 = vld [vmem:[%s3191 + $0x18f] sm:$0xff]
      %v3218 = vld [vmem:[%s3191 + $0x1a7] sm:$0xff]
      %v3219 = vld [vmem:[%s3191 + $0x1af] sm:$0xff]
      %v3220 = vld [vmem:[%s3191 + $0x1c7] sm:$0xff]
      %v3221 = vld [vmem:[%s3191 + $0x1cf] sm:$0xff]
      %v3222 = vld [vmem:[%s3191 + $0x1e7] sm:$0xff]
      %v3223 = vld [vmem:[%s3191 + $0x1ef] sm:$0xff]
      %v3224 = vpack.c.bf16 %v3193, %v3192
      %v3225 = vpack.c.bf16 %v3195, %v3194
      %v3226 = vpack.c.bf16 %v3197, %v3196
      %v3227 = vpack.c.bf16 %v3199, %v3198
      %v3228 = vpack.c.bf16 %v3201, %v3200
      %v3229 = vpack.c.bf16 %v3203, %v3202
      %v3230 = vpack.c.bf16 %v3205, %v3204
      %v3231 = vpack.c.bf16 %v3207, %v3206
      %v3232 = vpack.c.bf16 %v3209, %v3208
      %v3233 = vpack.c.bf16 %v3211, %v3210
      %v3234 = vpack.c.bf16 %v3213, %v3212
      %v3235 = vpack.c.bf16 %v3215, %v3214
      %v3236 = vpack.c.bf16 %v3217, %v3216
      %v3237 = vpack.c.bf16 %v3219, %v3218
      %v3238 = vpack.c.bf16 %v3221, %v3220
      %v3239 = vpack.c.bf16 %v3223, %v3222
      %s3240 = scalar_lea.vmem %s5, 24
      %v3241 = vld [vmem:[%s3240] sm:$0xf]
      %v3243 = vsel %vm949, %v3224, 0
      %v3246 = vsel %vm949, %v3225, 0
      %v3249 = vsel %vm949, %v3226, 0
      %v3252 = vsel %vm949, %v3227, 0
      %v3255 = vsel %vm949, %v3228, 0
      %v3258 = vsel %vm949, %v3229, 0
      %v3261 = vsel %vm949, %v3230, 0
      %v3264 = vsel %vm949, %v3231, 0
      %v3267 = vsel %vm949, %v3232, 0
      %v3270 = vsel %vm949, %v3233, 0
      %v3273 = vsel %vm949, %v3234, 0
      %v3276 = vsel %vm949, %v3235, 0
      %v3279 = vsel %vm949, %v3236, 0
      %v3282 = vsel %vm949, %v3237, 0
      %v3285 = vsel %vm949, %v3238, 0
      %v3288 = vsel %vm949, %v3239, 0
      %v3291 = vsel %vm998, %v3241, 0
      %3293 = vmatprep.subr.bf16.mxu0 0
      %3294 = vmatpush1.bf16.msra.mxu0 %v3291
      %3295 = vmatprep.subr.bf16.mxu0 0
      %3296 = vmatpush1.bf16.msra.mxu0 0
      %3297 = vmatprep.subr.bf16.mxu0 0
      %3298 = vmatpush1.bf16.msra.mxu0 0
      %3299 = vmatprep.subr.bf16.mxu0 0
      %3300 = vmatpush1.bf16.msra.mxu0 0
      %3301 = vmatprep.subr.bf16.mxu0 0
      %3302 = vmatpush1.bf16.msra.mxu0 0
      %3303 = vmatprep.subr.bf16.mxu0 0
      %3304 = vmatpush1.bf16.msra.mxu0 0
      %3305 = vmatprep.subr.bf16.mxu0 0
      %3306 = vmatpush1.bf16.msra.mxu0 0
      %3307 = vmatprep.subr.bf16.mxu0 0
      %3308 = vmatpush1.bf16.msra.mxu0 0
      %3309 = vmatprep.subr.bf16.mxu0 0
      %3310 = vmatpush1.bf16.msra.mxu0 0
      %3311 = vmatprep.subr.bf16.mxu0 0
      %3312 = vmatpush1.bf16.msra.mxu0 0
      %3313 = vmatprep.subr.bf16.mxu0 0
      %3314 = vmatpush1.bf16.msra.mxu0 0
      %3315 = vmatprep.subr.bf16.mxu0 0
      %3316 = vmatpush1.bf16.msra.mxu0 0
      %3317 = vmatprep.subr.bf16.mxu0 0
      %3318 = vmatpush1.bf16.msra.mxu0 0
      %3319 = vmatprep.subr.bf16.mxu0 0
      %3320 = vmatpush1.bf16.msra.mxu0 0
      %3321 = vmatprep.subr.bf16.mxu0 0
      %3322 = vmatpush1.bf16.msra.mxu0 0
      %3323 = vmatprep.subr.bf16.mxu0 0
      %3324 = vmatpush1.bf16.msra.mxu0 0
      %3325 = vmatprep.mubr.bf16.mxu0 0
      %3326 = vmatmul.mubr.bf16.gmra.mrb[0].mxu0 %v3243
      %v3327 = vpop.f32.mrb[0].mxu0
      %v3328 = vadd.f32 0.0, %v3327
      %v3329 = vpop.f32.mrb[0].mxu0
      %v3330 = vpop.f32.mrb[0].mxu0
      %v3331 = vadd.f32 0.0, %v3330
      %v3332 = vpop.f32.mrb[0].mxu0
      %3333 = vmatprep.mubr.bf16.mxu0 0
      %3334 = vmatmul.mubr.bf16.gmra.mrb[0].mxu0 %v3246
      %v3335 = vpop.f32.mrb[0].mxu0
      %v3336 = vadd.f32 0.0, %v3335
      %v3337 = vpop.f32.mrb[0].mxu0
      %v3338 = vpop.f32.mrb[0].mxu0
      %v3339 = vadd.f32 0.0, %v3338
      %v3340 = vpop.f32.mrb[0].mxu0
      %3341 = vmatprep.mubr.bf16.mxu0 0
      %3342 = vmatmul.mubr.bf16.gmra.mrb[0].mxu0 %v3249
      %v3343 = vpop.f32.mrb[0].mxu0
      %v3344 = vadd.f32 0.0, %v3343
      %v3345 = vpop.f32.mrb[0].mxu0
      %v3346 = vpop.f32.mrb[0].mxu0
      %v3347 = vadd.f32 0.0, %v3346
      %v3348 = vpop.f32.mrb[0].mxu0
      %3349 = vmatprep.mubr.bf16.mxu0 0
      %3350 = vmatmul.mubr.bf16.gmra.mrb[0].mxu0 %v3252
      %v3351 = vpop.f32.mrb[0].mxu0
      %v3352 = vadd.f32 0.0, %v3351
      %v3353 = vpop.f32.mrb[0].mxu0
      %v3354 = vpop.f32.mrb[0].mxu0
      %v3355 = vadd.f32 0.0, %v3354
      %v3356 = vpop.f32.mrb[0].mxu0
      %3357 = vmatprep.mubr.bf16.mxu0 0
      %3358 = vmatmul.mubr.bf16.gmra.mrb[0].mxu0 %v3255
      %v3359 = vpop.f32.mrb[0].mxu0
      %v3360 = vadd.f32 0.0, %v3359
      %v3361 = vpop.f32.mrb[0].mxu0
      %v3362 = vpop.f32.mrb[0].mxu0
      %v3363 = vadd.f32 0.0, %v3362
      %v3364 = vpop.f32.mrb[0].mxu0
      %3365 = vmatprep.mubr.bf16.mxu0 0
      %3366 = vmatmul.mubr.bf16.gmra.mrb[0].mxu0 %v3258
      %v3367 = vpop.f32.mrb[0].mxu0
      %v3368 = vadd.f32 0.0, %v3367
      %v3369 = vpop.f32.mrb[0].mxu0
      %v3370 = vpop.f32.mrb[0].mxu0
      %v3371 = vadd.f32 0.0, %v3370
      %v3372 = vpop.f32.mrb[0].mxu0
      %3373 = vmatprep.mubr.bf16.mxu0 0
      %3374 = vmatmul.mubr.bf16.gmra.mrb[0].mxu0 %v3261
      %v3375 = vpop.f32.mrb[0].mxu0
      %v3376 = vadd.f32 0.0, %v3375
      %v3377 = vpop.f32.mrb[0].mxu0
      %v3378 = vpop.f32.mrb[0].mxu0
      %v3379 = vadd.f32 0.0, %v3378
      %v3380 = vpop.f32.mrb[0].mxu0
      %3381 = vmatprep.mubr.bf16.mxu0 0
      %3382 = vmatmul.mubr.bf16.gmra.mrb[0].mxu0 %v3264
      %v3383 = vpop.f32.mrb[0].mxu0
      %v3384 = vadd.f32 0.0, %v3383
      %v3385 = vpop.f32.mrb[0].mxu0
      %v3386 = vpop.f32.mrb[0].mxu0
      %v3387 = vadd.f32 0.0, %v3386
      %v3388 = vpop.f32.mrb[0].mxu0
      %3389 = vmatprep.mubr.bf16.mxu0 0
      %3390 = vmatmul.mubr.bf16.gmra.mrb[0].mxu0 %v3267
      %v3391 = vpop.f32.mrb[0].mxu0
      %v3392 = vadd.f32 0.0, %v3391
      %v3393 = vpop.f32.mrb[0].mxu0
      %v3394 = vpop.f32.mrb[0].mxu0
      %v3395 = vadd.f32 0.0, %v3394
      %v3396 = vpop.f32.mrb[0].mxu0
      %3397 = vmatprep.mubr.bf16.mxu0 0
      %3398 = vmatmul.mubr.bf16.gmra.mrb[0].mxu0 %v3270
      %v3399 = vpop.f32.mrb[0].mxu0
      %v3400 = vadd.f32 0.0, %v3399
      %v3401 = vpop.f32.mrb[0].mxu0
      %v3402 = vpop.f32.mrb[0].mxu0
      %v3403 = vadd.f32 0.0, %v3402
      %v3404 = vpop.f32.mrb[0].mxu0
      %3405 = vmatprep.mubr.bf16.mxu0 0
      %3406 = vmatmul.mubr.bf16.gmra.mrb[0].mxu0 %v3273
      %v3407 = vpop.f32.mrb[0].mxu0
      %v3408 = vadd.f32 0.0, %v3407
      %v3409 = vpop.f32.mrb[0].mxu0
      %v3410 = vpop.f32.mrb[0].mxu0
      %v3411 = vadd.f32 0.0, %v3410
      %v3412 = vpop.f32.mrb[0].mxu0
      %3413 = vmatprep.mubr.bf16.mxu0 0
      %3414 = vmatmul.mubr.bf16.gmra.mrb[0].mxu0 %v3276
      %v3415 = vpop.f32.mrb[0].mxu0
      %v3416 = vadd.f32 0.0, %v3415
      %v3417 = vpop.f32.mrb[0].mxu0
      %v3418 = vpop.f32.mrb[0].mxu0
      %v3419 = vadd.f32 0.0, %v3418
      %v3420 = vpop.f32.mrb[0].mxu0
      %3421 = vmatprep.mubr.bf16.mxu0 0
      %3422 = vmatmul.mubr.bf16.gmra.mrb[0].mxu0 %v3279
      %v3423 = vpop.f32.mrb[0].mxu0
      %v3424 = vadd.f32 0.0, %v3423
      %v3425 = vpop.f32.mrb[0].mxu0
      %v3426 = vpop.f32.mrb[0].mxu0
      %v3427 = vadd.f32 0.0, %v3426
      %v3428 = vpop.f32.mrb[0].mxu0
      %3429 = vmatprep.mubr.bf16.mxu0 0
      %3430 = vmatmul.mubr.bf16.gmra.mrb[0].mxu0 %v3282
      %v3431 = vpop.f32.mrb[0].mxu0
      %v3432 = vadd.f32 0.0, %v3431
      %v3433 = vpop.f32.mrb[0].mxu0
      %v3434 = vpop.f32.mrb[0].mxu0
      %v3435 = vadd.f32 0.0, %v3434
      %v3436 = vpop.f32.mrb[0].mxu0
      %3437 = vmatprep.mubr.bf16.mxu0 0
      %3438 = vmatmul.mubr.bf16.gmra.mrb[0].mxu0 %v3285
      %v3439 = vpop.f32.mrb[0].mxu0
      %v3440 = vadd.f32 0.0, %v3439
      %v3441 = vpop.f32.mrb[0].mxu0
      %v3442 = vpop.f32.mrb[0].mxu0
      %v3443 = vadd.f32 0.0, %v3442
      %v3444 = vpop.f32.mrb[0].mxu0
      %3445 = vmatprep.mubr.bf16.mxu0 0
      %3446 = vmatmul.mubr.bf16.gmra.mrb[0].mxu0 %v3288
      %v3447 = vpop.f32.mrb[0].mxu0
      %v3448 = vadd.f32 0.0, %v3447
      %v3449 = vpop.f32.mrb[0].mxu0
      %v3450 = vpop.f32.mrb[0].mxu0
      %v3451 = vadd.f32 0.0, %v3450
      %v3452 = vpop.f32.mrb[0].mxu0
      %3453 = vdwg.mxu0
      %v3454 = vadd.f32 %v3159, %v3328
      %v3455 = vadd.f32 %v3160, %v3331
      %v3456 = vadd.f32 %v3161, %v3336
      %v3457 = vadd.f32 %v3162, %v3339
      %v3458 = vadd.f32 %v3163, %v3344
      %v3459 = vadd.f32 %v3164, %v3347
      %v3460 = vadd.f32 %v3165, %v3352
      %v3461 = vadd.f32 %v3166, %v3355
      %v3462 = vadd.f32 %v3167, %v3360
      %v3463 = vadd.f32 %v3168, %v3363
      %v3464 = vadd.f32 %v3169, %v3368
      %v3465 = vadd.f32 %v3170, %v3371
      %v3466 = vadd.f32 %v3171, %v3376
      %v3467 = vadd.f32 %v3172, %v3379
      %v3468 = vadd.f32 %v3173, %v3384
      %v3469 = vadd.f32 %v3174, %v3387
      %v3470 = vadd.f32 %v3175, %v3392
      %v3471 = vadd.f32 %v3176, %v3395
      %v3472 = vadd.f32 %v3177, %v3400
      %v3473 = vadd.f32 %v3178, %v3403
      %v3474 = vadd.f32 %v3179, %v3408
      %v3475 = vadd.f32 %v3180, %v3411
      %v3476 = vadd.f32 %v3181, %v3416
      %v3477 = vadd.f32 %v3182, %v3419
      %v3478 = vadd.f32 %v3183, %v3424
      %v3479 = vadd.f32 %v3184, %v3427
      %v3480 = vadd.f32 %v3185, %v3432
      %v3481 = vadd.f32 %v3186, %v3435
      %v3482 = vadd.f32 %v3187, %v3440
      %v3483 = vadd.f32 %v3188, %v3443
      %v3484 = vadd.f32 %v3189, %v3448
      %v3485 = vadd.f32 %v3190, %v3451
      %v3486 = vld [vmem:[%s3191 + $0x8] sm:$0xff]
      %v3487 = vld [vmem:[%s3191 + $0x10] sm:$0xff]
      %v3488 = vld [vmem:[%s3191 + $0x28] sm:$0xff]
      %v3489 = vld [vmem:[%s3191 + $0x30] sm:$0xff]
      %v3490 = vld [vmem:[%s3191 + $0x48] sm:$0xff]
      %v3491 = vld [vmem:[%s3191 + $0x50] sm:$0xff]
      %v3492 = vld [vmem:[%s3191 + $0x68] sm:$0xff]
      %v3493 = vld [vmem:[%s3191 + $0x70] sm:$0xff]
      %v3494 = vld [vmem:[%s3191 + $0x88] sm:$0xff]
      %v3495 = vld [vmem:[%s3191 + $0x90] sm:$0xff]
      %v3496 = vld [vmem:[%s3191 + $0xa8] sm:$0xff]
      %v3497 = vld [vmem:[%s3191 + $0xb0] sm:$0xff]
      %v3498 = vld [vmem:[%s3191 + $0xc8] sm:$0xff]
      %v3499 = vld [vmem:[%s3191 + $0xd0] sm:$0xff]
      %v3500 = vld [vmem:[%s3191 + $0xe8] sm:$0xff]
      %v3501 = vld [vmem:[%s3191 + $0xf0] sm:$0xff]
      %v3502 = vld [vmem:[%s3191 + $0x108] sm:$0xff]
      %v3503 = vld [vmem:[%s3191 + $0x110] sm:$0xff]
      %v3504 = vld [vmem:[%s3191 + $0x128] sm:$0xff]
      %v3505 = vld [vmem:[%s3191 + $0x130] sm:$0xff]
      %v3506 = vld [vmem:[%s3191 + $0x148] sm:$0xff]
      %v3507 = vld [vmem:[%s3191 + $0x150] sm:$0xff]
      %v3508 = vld [vmem:[%s3191 + $0x168] sm:$0xff]
      %v3509 = vld [vmem:[%s3191 + $0x170] sm:$0xff]
      %v3510 = vld [vmem:[%s3191 + $0x188] sm:$0xff]
      %v3511 = vld [vmem:[%s3191 + $0x190] sm:$0xff]
      %v3512 = vld [vmem:[%s3191 + $0x1a8] sm:$0xff]
      %v3513 = vld [vmem:[%s3191 + $0x1b0] sm:$0xff]
      %v3514 = vld [vmem:[%s3191 + $0x1c8] sm:$0xff]
      %v3515 = vld [vmem:[%s3191 + $0x1d0] sm:$0xff]
      %v3516 = vld [vmem:[%s3191 + $0x1e8] sm:$0xff]
      %v3517 = vld [vmem:[%s3191 + $0x1f0] sm:$0xff]
      %v3518 = vpack.c.bf16 %v3487, %v3486
      %v3519 = vpack.c.bf16 %v3489, %v3488
      %v3520 = vpack.c.bf16 %v3491, %v3490
      %v3521 = vpack.c.bf16 %v3493, %v3492
      %v3522 = vpack.c.bf16 %v3495, %v3494
      %v3523 = vpack.c.bf16 %v3497, %v3496
      %v3524 = vpack.c.bf16 %v3499, %v3498
      %v3525 = vpack.c.bf16 %v3501, %v3500
      %v3526 = vpack.c.bf16 %v3503, %v3502
      %v3527 = vpack.c.bf16 %v3505, %v3504
      %v3528 = vpack.c.bf16 %v3507, %v3506
      %v3529 = vpack.c.bf16 %v3509, %v3508
      %v3530 = vpack.c.bf16 %v3511, %v3510
      %v3531 = vpack.c.bf16 %v3513, %v3512
      %v3532 = vpack.c.bf16 %v3515, %v3514
      %v3533 = vpack.c.bf16 %v3517, %v3516
      %s3534 = scalar_lea.vmem %s5, 28
      %v3535 = vld [vmem:[%s3534] sm:$0xf]
      %v3537 = vsel %vm949, %v3518, 0
      %v3540 = vsel %vm949, %v3519, 0
      %v3543 = vsel %vm949, %v3520, 0
      %v3546 = vsel %vm949, %v3521, 0
      %v3549 = vsel %vm949, %v3522, 0
      %v3552 = vsel %vm949, %v3523, 0
      %v3555 = vsel %vm949, %v3524, 0
      %v3558 = vsel %vm949, %v3525, 0
      %v3561 = vsel %vm949, %v3526, 0
      %v3564 = vsel %vm949, %v3527, 0
      %v3567 = vsel %vm949, %v3528, 0
      %v3570 = vsel %vm949, %v3529, 0
      %v3573 = vsel %vm949, %v3530, 0
      %v3576 = vsel %vm949, %v3531, 0
      %v3579 = vsel %vm949, %v3532, 0
      %v3582 = vsel %vm949, %v3533, 0
      %v3585 = vsel %vm998, %v3535, 0
      %3587 = vmatprep.subr.bf16.mxu0 0
      %3588 = vmatpush1.bf16.msra.mxu0 %v3585
      %3589 = vmatprep.subr.bf16.mxu0 0
      %3590 = vmatpush1.bf16.msra.mxu0 0
      %3591 = vmatprep.subr.bf16.mxu0 0
      %3592 = vmatpush1.bf16.msra.mxu0 0
      %3593 = vmatprep.subr.bf16.mxu0 0
      %3594 = vmatpush1.bf16.msra.mxu0 0
      %3595 = vmatprep.subr.bf16.mxu0 0
      %3596 = vmatpush1.bf16.msra.mxu0 0
      %3597 = vmatprep.subr.bf16.mxu0 0
      %3598 = vmatpush1.bf16.msra.mxu0 0
      %3599 = vmatprep.subr.bf16.mxu0 0
      %3600 = vmatpush1.bf16.msra.mxu0 0
      %3601 = vmatprep.subr.bf16.mxu0 0
      %3602 = vmatpush1.bf16.msra.mxu0 0
      %3603 = vmatprep.subr.bf16.mxu0 0
      %3604 = vmatpush1.bf16.msra.mxu0 0
      %3605 = vmatprep.subr.bf16.mxu0 0
      %3606 = vmatpush1.bf16.msra.mxu0 0
      %3607 = vmatprep.subr.bf16.mxu0 0
      %3608 = vmatpush1.bf16.msra.mxu0 0
      %3609 = vmatprep.subr.bf16.mxu0 0
      %3610 = vmatpush1.bf16.msra.mxu0 0
      %3611 = vmatprep.subr.bf16.mxu0 0
      %3612 = vmatpush1.bf16.msra.mxu0 0
      %3613 = vmatprep.subr.bf16.mxu0 0
      %3614 = vmatpush1.bf16.msra.mxu0 0
      %3615 = vmatprep.subr.bf16.mxu0 0
      %3616 = vmatpush1.bf16.msra.mxu0 0
      %3617 = vmatprep.subr.bf16.mxu0 0
      %3618 = vmatpush1.bf16.msra.mxu0 0
      %3619 = vmatprep.mubr.bf16.mxu0 0
      %3620 = vmatmul.mubr.bf16.gmra.mrb[0].mxu0 %v3537
      %v3621 = vpop.f32.mrb[0].mxu0
      %v3622 = vadd.f32 0.0, %v3621
      %v3623 = vpop.f32.mrb[0].mxu0
      %v3624 = vpop.f32.mrb[0].mxu0
      %v3625 = vadd.f32 0.0, %v3624
      %v3626 = vpop.f32.mrb[0].mxu0
      %3627 = vmatprep.mubr.bf16.mxu0 0
      %3628 = vmatmul.mubr.bf16.gmra.mrb[0].mxu0 %v3540
      %v3629 = vpop.f32.mrb[0].mxu0
      %v3630 = vadd.f32 0.0, %v3629
      %v3631 = vpop.f32.mrb[0].mxu0
      %v3632 = vpop.f32.mrb[0].mxu0
      %v3633 = vadd.f32 0.0, %v3632
      %v3634 = vpop.f32.mrb[0].mxu0
      %3635 = vmatprep.mubr.bf16.mxu0 0
      %3636 = vmatmul.mubr.bf16.gmra.mrb[0].mxu0 %v3543
      %v3637 = vpop.f32.mrb[0].mxu0
      %v3638 = vadd.f32 0.0, %v3637
      %v3639 = vpop.f32.mrb[0].mxu0
      %v3640 = vpop.f32.mrb[0].mxu0
      %v3641 = vadd.f32 0.0, %v3640
      %v3642 = vpop.f32.mrb[0].mxu0
      %3643 = vmatprep.mubr.bf16.mxu0 0
      %3644 = vmatmul.mubr.bf16.gmra.mrb[0].mxu0 %v3546
      %v3645 = vpop.f32.mrb[0].mxu0
      %v3646 = vadd.f32 0.0, %v3645
      %v3647 = vpop.f32.mrb[0].mxu0
      %v3648 = vpop.f32.mrb[0].mxu0
      %v3649 = vadd.f32 0.0, %v3648
      %v3650 = vpop.f32.mrb[0].mxu0
      %3651 = vmatprep.mubr.bf16.mxu0 0
      %3652 = vmatmul.mubr.bf16.gmra.mrb[0].mxu0 %v3549
      %v3653 = vpop.f32.mrb[0].mxu0
      %v3654 = vadd.f32 0.0, %v3653
      %v3655 = vpop.f32.mrb[0].mxu0
      %v3656 = vpop.f32.mrb[0].mxu0
      %v3657 = vadd.f32 0.0, %v3656
      %v3658 = vpop.f32.mrb[0].mxu0
      %3659 = vmatprep.mubr.bf16.mxu0 0
      %3660 = vmatmul.mubr.bf16.gmra.mrb[0].mxu0 %v3552
      %v3661 = vpop.f32.mrb[0].mxu0
      %v3662 = vadd.f32 0.0, %v3661
      %v3663 = vpop.f32.mrb[0].mxu0
      %v3664 = vpop.f32.mrb[0].mxu0
      %v3665 = vadd.f32 0.0, %v3664
      %v3666 = vpop.f32.mrb[0].mxu0
      %3667 = vmatprep.mubr.bf16.mxu0 0
      %3668 = vmatmul.mubr.bf16.gmra.mrb[0].mxu0 %v3555
      %v3669 = vpop.f32.mrb[0].mxu0
      %v3670 = vadd.f32 0.0, %v3669
      %v3671 = vpop.f32.mrb[0].mxu0
      %v3672 = vpop.f32.mrb[0].mxu0
      %v3673 = vadd.f32 0.0, %v3672
      %v3674 = vpop.f32.mrb[0].mxu0
      %3675 = vmatprep.mubr.bf16.mxu0 0
      %3676 = vmatmul.mubr.bf16.gmra.mrb[0].mxu0 %v3558
      %v3677 = vpop.f32.mrb[0].mxu0
      %v3678 = vadd.f32 0.0, %v3677
      %v3679 = vpop.f32.mrb[0].mxu0
      %v3680 = vpop.f32.mrb[0].mxu0
      %v3681 = vadd.f32 0.0, %v3680
      %v3682 = vpop.f32.mrb[0].mxu0
      %3683 = vmatprep.mubr.bf16.mxu0 0
      %3684 = vmatmul.mubr.bf16.gmra.mrb[0].mxu0 %v3561
      %v3685 = vpop.f32.mrb[0].mxu0
      %v3686 = vadd.f32 0.0, %v3685
      %v3687 = vpop.f32.mrb[0].mxu0
      %v3688 = vpop.f32.mrb[0].mxu0
      %v3689 = vadd.f32 0.0, %v3688
      %v3690 = vpop.f32.mrb[0].mxu0
      %3691 = vmatprep.mubr.bf16.mxu0 0
      %3692 = vmatmul.mubr.bf16.gmra.mrb[0].mxu0 %v3564
      %v3693 = vpop.f32.mrb[0].mxu0
      %v3694 = vadd.f32 0.0, %v3693
      %v3695 = vpop.f32.mrb[0].mxu0
      %v3696 = vpop.f32.mrb[0].mxu0
      %v3697 = vadd.f32 0.0, %v3696
      %v3698 = vpop.f32.mrb[0].mxu0
      %3699 = vmatprep.mubr.bf16.mxu0 0
      %3700 = vmatmul.mubr.bf16.gmra.mrb[0].mxu0 %v3567
      %v3701 = vpop.f32.mrb[0].mxu0
      %v3702 = vadd.f32 0.0, %v3701
      %v3703 = vpop.f32.mrb[0].mxu0
      %v3704 = vpop.f32.mrb[0].mxu0
      %v3705 = vadd.f32 0.0, %v3704
      %v3706 = vpop.f32.mrb[0].mxu0
      %3707 = vmatprep.mubr.bf16.mxu0 0
      %3708 = vmatmul.mubr.bf16.gmra.mrb[0].mxu0 %v3570
      %v3709 = vpop.f32.mrb[0].mxu0
      %v3710 = vadd.f32 0.0, %v3709
      %v3711 = vpop.f32.mrb[0].mxu0
      %v3712 = vpop.f32.mrb[0].mxu0
      %v3713 = vadd.f32 0.0, %v3712
      %v3714 = vpop.f32.mrb[0].mxu0
      %3715 = vmatprep.mubr.bf16.mxu0 0
      %3716 = vmatmul.mubr.bf16.gmra.mrb[0].mxu0 %v3573
      %v3717 = vpop.f32.mrb[0].mxu0
      %v3718 = vadd.f32 0.0, %v3717
      %v3719 = vpop.f32.mrb[0].mxu0
      %v3720 = vpop.f32.mrb[0].mxu0
      %v3721 = vadd.f32 0.0, %v3720
      %v3722 = vpop.f32.mrb[0].mxu0
      %3723 = vmatprep.mubr.bf16.mxu0 0
      %3724 = vmatmul.mubr.bf16.gmra.mrb[0].mxu0 %v3576
      %v3725 = vpop.f32.mrb[0].mxu0
      %v3726 = vadd.f32 0.0, %v3725
      %v3727 = vpop.f32.mrb[0].mxu0
      %v3728 = vpop.f32.mrb[0].mxu0
      %v3729 = vadd.f32 0.0, %v3728
      %v3730 = vpop.f32.mrb[0].mxu0
      %3731 = vmatprep.mubr.bf16.mxu0 0
      %3732 = vmatmul.mubr.bf16.gmra.mrb[0].mxu0 %v3579
      %v3733 = vpop.f32.mrb[0].mxu0
      %v3734 = vadd.f32 0.0, %v3733
      %v3735 = vpop.f32.mrb[0].mxu0
      %v3736 = vpop.f32.mrb[0].mxu0
      %v3737 = vadd.f32 0.0, %v3736
      %v3738 = vpop.f32.mrb[0].mxu0
      %3739 = vmatprep.mubr.bf16.mxu0 0
      %3740 = vmatmul.mubr.bf16.gmra.mrb[0].mxu0 %v3582
      %v3741 = vpop.f32.mrb[0].mxu0
      %v3742 = vadd.f32 0.0, %v3741
      %v3743 = vpop.f32.mrb[0].mxu0
      %v3744 = vpop.f32.mrb[0].mxu0
      %v3745 = vadd.f32 0.0, %v3744
      %v3746 = vpop.f32.mrb[0].mxu0
      %3747 = vdwg.mxu0
      %v3748 = vadd.f32 %v3454, %v3622
      %v3749 = vadd.f32 %v3455, %v3625
      %v3750 = vadd.f32 %v3456, %v3630
      %v3751 = vadd.f32 %v3457, %v3633
      %v3752 = vadd.f32 %v3458, %v3638
      %v3753 = vadd.f32 %v3459, %v3641
      %v3754 = vadd.f32 %v3460, %v3646
      %v3755 = vadd.f32 %v3461, %v3649
      %v3756 = vadd.f32 %v3462, %v3654
      %v3757 = vadd.f32 %v3463, %v3657
      %v3758 = vadd.f32 %v3464, %v3662
      %v3759 = vadd.f32 %v3465, %v3665
      %v3760 = vadd.f32 %v3466, %v3670
      %v3761 = vadd.f32 %v3467, %v3673
      %v3762 = vadd.f32 %v3468, %v3678
      %v3763 = vadd.f32 %v3469, %v3681
      %v3764 = vadd.f32 %v3470, %v3686
      %v3765 = vadd.f32 %v3471, %v3689
      %v3766 = vadd.f32 %v3472, %v3694
      %v3767 = vadd.f32 %v3473, %v3697
      %v3768 = vadd.f32 %v3474, %v3702
      %v3769 = vadd.f32 %v3475, %v3705
      %v3770 = vadd.f32 %v3476, %v3710
      %v3771 = vadd.f32 %v3477, %v3713
      %v3772 = vadd.f32 %v3478, %v3718
      %v3773 = vadd.f32 %v3479, %v3721
      %v3774 = vadd.f32 %v3480, %v3726
      %v3775 = vadd.f32 %v3481, %v3729
      %v3776 = vadd.f32 %v3482, %v3734
      %v3777 = vadd.f32 %v3483, %v3737
      %v3778 = vadd.f32 %v3484, %v3742
      %v3779 = vadd.f32 %v3485, %v3745
      %v3780 = vld [vmem:[%s3191 + $0x9] sm:$0xff]
      %v3781 = vld [vmem:[%s3191 + $0x11] sm:$0xff]
      %v3782 = vld [vmem:[%s3191 + $0x29] sm:$0xff]
      %v3783 = vld [vmem:[%s3191 + $0x31] sm:$0xff]
      %v3784 = vld [vmem:[%s3191 + $0x49] sm:$0xff]
      %v3785 = vld [vmem:[%s3191 + $0x51] sm:$0xff]
      %v3786 = vld [vmem:[%s3191 + $0x69] sm:$0xff]
      %v3787 = vld [vmem:[%s3191 + $0x71] sm:$0xff]
      %v3788 = vld [vmem:[%s3191 + $0x89] sm:$0xff]
      %v3789 = vld [vmem:[%s3191 + $0x91] sm:$0xff]
      %v3790 = vld [vmem:[%s3191 + $0xa9] sm:$0xff]
      %v3791 = vld [vmem:[%s3191 + $0xb1] sm:$0xff]
      %v3792 = vld [vmem:[%s3191 + $0xc9] sm:$0xff]
      %v3793 = vld [vmem:[%s3191 + $0xd1] sm:$0xff]
      %v3794 = vld [vmem:[%s3191 + $0xe9] sm:$0xff]
      %v3795 = vld [vmem:[%s3191 + $0xf1] sm:$0xff]
      %v3796 = vld [vmem:[%s3191 + $0x109] sm:$0xff]
      %v3797 = vld [vmem:[%s3191 + $0x111] sm:$0xff]
      %v3798 = vld [vmem:[%s3191 + $0x129] sm:$0xff]
      %v3799 = vld [vmem:[%s3191 + $0x131] sm:$0xff]
      %v3800 = vld [vmem:[%s3191 + $0x149] sm:$0xff]
      %v3801 = vld [vmem:[%s3191 + $0x151] sm:$0xff]
      %v3802 = vld [vmem:[%s3191 + $0x169] sm:$0xff]
      %v3803 = vld [vmem:[%s3191 + $0x171] sm:$0xff]
      %v3804 = vld [vmem:[%s3191 + $0x189] sm:$0xff]
      %v3805 = vld [vmem:[%s3191 + $0x191] sm:$0xff]
      %v3806 = vld [vmem:[%s3191 + $0x1a9] sm:$0xff]
      %v3807 = vld [vmem:[%s3191 + $0x1b1] sm:$0xff]
      %v3808 = vld [vmem:[%s3191 + $0x1c9] sm:$0xff]
      %v3809 = vld [vmem:[%s3191 + $0x1d1] sm:$0xff]
      %v3810 = vld [vmem:[%s3191 + $0x1e9] sm:$0xff]
      %v3811 = vld [vmem:[%s3191 + $0x1f1] sm:$0xff]
      %v3812 = vpack.c.bf16 %v3781, %v3780
      %v3813 = vpack.c.bf16 %v3783, %v3782
      %v3814 = vpack.c.bf16 %v3785, %v3784
      %v3815 = vpack.c.bf16 %v3787, %v3786
      %v3816 = vpack.c.bf16 %v3789, %v3788
      %v3817 = vpack.c.bf16 %v3791, %v3790
      %v3818 = vpack.c.bf16 %v3793, %v3792
      %v3819 = vpack.c.bf16 %v3795, %v3794
      %v3820 = vpack.c.bf16 %v3797, %v3796
      %v3821 = vpack.c.bf16 %v3799, %v3798
      %v3822 = vpack.c.bf16 %v3801, %v3800
      %v3823 = vpack.c.bf16 %v3803, %v3802
      %v3824 = vpack.c.bf16 %v3805, %v3804
      %v3825 = vpack.c.bf16 %v3807, %v3806
      %v3826 = vpack.c.bf16 %v3809, %v3808
      %v3827 = vpack.c.bf16 %v3811, %v3810
      %s3828 = scalar_lea.vmem %s5, 32
      %v3829 = vld [vmem:[%s3828] sm:$0xf]
      %v3831 = vsel %vm949, %v3812, 0
      %v3834 = vsel %vm949, %v3813, 0
      %v3837 = vsel %vm949, %v3814, 0
      %v3840 = vsel %vm949, %v3815, 0
      %v3843 = vsel %vm949, %v3816, 0
      %v3846 = vsel %vm949, %v3817, 0
      %v3849 = vsel %vm949, %v3818, 0
      %v3852 = vsel %vm949, %v3819, 0
      %v3855 = vsel %vm949, %v3820, 0
      %v3858 = vsel %vm949, %v3821, 0
      %v3861 = vsel %vm949, %v3822, 0
      %v3864 = vsel %vm949, %v3823, 0
      %v3867 = vsel %vm949, %v3824, 0
      %v3870 = vsel %vm949, %v3825, 0
      %v3873 = vsel %vm949, %v3826, 0
      %v3876 = vsel %vm949, %v3827, 0
      %v3879 = vsel %vm998, %v3829, 0
      %3881 = vmatprep.subr.bf16.mxu0 0
      %3882 = vmatpush1.bf16.msra.mxu0 %v3879
      %3883 = vmatprep.subr.bf16.mxu0 0
      %3884 = vmatpush1.bf16.msra.mxu0 0
      %3885 = vmatprep.subr.bf16.mxu0 0
      %3886 = vmatpush1.bf16.msra.mxu0 0
      %3887 = vmatprep.subr.bf16.mxu0 0
      %3888 = vmatpush1.bf16.msra.mxu0 0
      %3889 = vmatprep.subr.bf16.mxu0 0
      %3890 = vmatpush1.bf16.msra.mxu0 0
      %3891 = vmatprep.subr.bf16.mxu0 0
      %3892 = vmatpush1.bf16.msra.mxu0 0
      %3893 = vmatprep.subr.bf16.mxu0 0
      %3894 = vmatpush1.bf16.msra.mxu0 0
      %3895 = vmatprep.subr.bf16.mxu0 0
      %3896 = vmatpush1.bf16.msra.mxu0 0
      %3897 = vmatprep.subr.bf16.mxu0 0
      %3898 = vmatpush1.bf16.msra.mxu0 0
      %3899 = vmatprep.subr.bf16.mxu0 0
      %3900 = vmatpush1.bf16.msra.mxu0 0
      %3901 = vmatprep.subr.bf16.mxu0 0
      %3902 = vmatpush1.bf16.msra.mxu0 0
      %3903 = vmatprep.subr.bf16.mxu0 0
      %3904 = vmatpush1.bf16.msra.mxu0 0
      %3905 = vmatprep.subr.bf16.mxu0 0
      %3906 = vmatpush1.bf16.msra.mxu0 0
      %3907 = vmatprep.subr.bf16.mxu0 0
      %3908 = vmatpush1.bf16.msra.mxu0 0
      %3909 = vmatprep.subr.bf16.mxu0 0
      %3910 = vmatpush1.bf16.msra.mxu0 0
      %3911 = vmatprep.subr.bf16.mxu0 0
      %3912 = vmatpush1.bf16.msra.mxu0 0
      %3913 = vmatprep.mubr.bf16.mxu0 0
      %3914 = vmatmul.mubr.bf16.gmra.mrb[0].mxu0 %v3831
      %v3915 = vpop.f32.mrb[0].mxu0
      %v3916 = vadd.f32 0.0, %v3915
      %v3917 = vpop.f32.mrb[0].mxu0
      %v3918 = vpop.f32.mrb[0].mxu0
      %v3919 = vadd.f32 0.0, %v3918
      %v3920 = vpop.f32.mrb[0].mxu0
      %3921 = vmatprep.mubr.bf16.mxu0 0
      %3922 = vmatmul.mubr.bf16.gmra.mrb[0].mxu0 %v3834
      %v3923 = vpop.f32.mrb[0].mxu0
      %v3924 = vadd.f32 0.0, %v3923
      %v3925 = vpop.f32.mrb[0].mxu0
      %v3926 = vpop.f32.mrb[0].mxu0
      %v3927 = vadd.f32 0.0, %v3926
      %v3928 = vpop.f32.mrb[0].mxu0
      %3929 = vmatprep.mubr.bf16.mxu0 0
      %3930 = vmatmul.mubr.bf16.gmra.mrb[0].mxu0 %v3837
      %v3931 = vpop.f32.mrb[0].mxu0
      %v3932 = vadd.f32 0.0, %v3931
      %v3933 = vpop.f32.mrb[0].mxu0
      %v3934 = vpop.f32.mrb[0].mxu0
      %v3935 = vadd.f32 0.0, %v3934
      %v3936 = vpop.f32.mrb[0].mxu0
      %3937 = vmatprep.mubr.bf16.mxu0 0
      %3938 = vmatmul.mubr.bf16.gmra.mrb[0].mxu0 %v3840
      %v3939 = vpop.f32.mrb[0].mxu0
      %v3940 = vadd.f32 0.0, %v3939
      %v3941 = vpop.f32.mrb[0].mxu0
      %v3942 = vpop.f32.mrb[0].mxu0
      %v3943 = vadd.f32 0.0, %v3942
      %v3944 = vpop.f32.mrb[0].mxu0
      %3945 = vmatprep.mubr.bf16.mxu0 0
      %3946 = vmatmul.mubr.bf16.gmra.mrb[0].mxu0 %v3843
      %v3947 = vpop.f32.mrb[0].mxu0
      %v3948 = vadd.f32 0.0, %v3947
      %v3949 = vpop.f32.mrb[0].mxu0
      %v3950 = vpop.f32.mrb[0].mxu0
      %v3951 = vadd.f32 0.0, %v3950
      %v3952 = vpop.f32.mrb[0].mxu0
      %3953 = vmatprep.mubr.bf16.mxu0 0
      %3954 = vmatmul.mubr.bf16.gmra.mrb[0].mxu0 %v3846
      %v3955 = vpop.f32.mrb[0].mxu0
      %v3956 = vadd.f32 0.0, %v3955
      %v3957 = vpop.f32.mrb[0].mxu0
      %v3958 = vpop.f32.mrb[0].mxu0
      %v3959 = vadd.f32 0.0, %v3958
      %v3960 = vpop.f32.mrb[0].mxu0
      %3961 = vmatprep.mubr.bf16.mxu0 0
      %3962 = vmatmul.mubr.bf16.gmra.mrb[0].mxu0 %v3849
      %v3963 = vpop.f32.mrb[0].mxu0
      %v3964 = vadd.f32 0.0, %v3963
      %v3965 = vpop.f32.mrb[0].mxu0
      %v3966 = vpop.f32.mrb[0].mxu0
      %v3967 = vadd.f32 0.0, %v3966
      %v3968 = vpop.f32.mrb[0].mxu0
      %3969 = vmatprep.mubr.bf16.mxu0 0
      %3970 = vmatmul.mubr.bf16.gmra.mrb[0].mxu0 %v3852
      %v3971 = vpop.f32.mrb[0].mxu0
      %v3972 = vadd.f32 0.0, %v3971
      %v3973 = vpop.f32.mrb[0].mxu0
      %v3974 = vpop.f32.mrb[0].mxu0
      %v3975 = vadd.f32 0.0, %v3974
      %v3976 = vpop.f32.mrb[0].mxu0
      %3977 = vmatprep.mubr.bf16.mxu0 0
      %3978 = vmatmul.mubr.bf16.gmra.mrb[0].mxu0 %v3855
      %v3979 = vpop.f32.mrb[0].mxu0
      %v3980 = vadd.f32 0.0, %v3979
      %v3981 = vpop.f32.mrb[0].mxu0
      %v3982 = vpop.f32.mrb[0].mxu0
      %v3983 = vadd.f32 0.0, %v3982
      %v3984 = vpop.f32.mrb[0].mxu0
      %3985 = vmatprep.mubr.bf16.mxu0 0
      %3986 = vmatmul.mubr.bf16.gmra.mrb[0].mxu0 %v3858
      %v3987 = vpop.f32.mrb[0].mxu0
      %v3988 = vadd.f32 0.0, %v3987
      %v3989 = vpop.f32.mrb[0].mxu0
      %v3990 = vpop.f32.mrb[0].mxu0
      %v3991 = vadd.f32 0.0, %v3990
      %v3992 = vpop.f32.mrb[0].mxu0
      %3993 = vmatprep.mubr.bf16.mxu0 0
      %3994 = vmatmul.mubr.bf16.gmra.mrb[0].mxu0 %v3861
      %v3995 = vpop.f32.mrb[0].mxu0
      %v3996 = vadd.f32 0.0, %v3995
      %v3997 = vpop.f32.mrb[0].mxu0
      %v3998 = vpop.f32.mrb[0].mxu0
      %v3999 = vadd.f32 0.0, %v3998
      %v4000 = vpop.f32.mrb[0].mxu0
      %4001 = vmatprep.mubr.bf16.mxu0 0
      %4002 = vmatmul.mubr.bf16.gmra.mrb[0].mxu0 %v3864
      %v4003 = vpop.f32.mrb[0].mxu0
      %v4004 = vadd.f32 0.0, %v4003
      %v4005 = vpop.f32.mrb[0].mxu0
      %v4006 = vpop.f32.mrb[0].mxu0
      %v4007 = vadd.f32 0.0, %v4006
      %v4008 = vpop.f32.mrb[0].mxu0
      %4009 = vmatprep.mubr.bf16.mxu0 0
      %4010 = vmatmul.mubr.bf16.gmra.mrb[0].mxu0 %v3867
      %v4011 = vpop.f32.mrb[0].mxu0
      %v4012 = vadd.f32 0.0, %v4011
      %v4013 = vpop.f32.mrb[0].mxu0
      %v4014 = vpop.f32.mrb[0].mxu0
      %v4015 = vadd.f32 0.0, %v4014
      %v4016 = vpop.f32.mrb[0].mxu0
      %4017 = vmatprep.mubr.bf16.mxu0 0
      %4018 = vmatmul.mubr.bf16.gmra.mrb[0].mxu0 %v3870
      %v4019 = vpop.f32.mrb[0].mxu0
      %v4020 = vadd.f32 0.0, %v4019
      %v4021 = vpop.f32.mrb[0].mxu0
      %v4022 = vpop.f32.mrb[0].mxu0
      %v4023 = vadd.f32 0.0, %v4022
      %v4024 = vpop.f32.mrb[0].mxu0
      %4025 = vmatprep.mubr.bf16.mxu0 0
      %4026 = vmatmul.mubr.bf16.gmra.mrb[0].mxu0 %v3873
      %v4027 = vpop.f32.mrb[0].mxu0
      %v4028 = vadd.f32 0.0, %v4027
      %v4029 = vpop.f32.mrb[0].mxu0
      %v4030 = vpop.f32.mrb[0].mxu0
      %v4031 = vadd.f32 0.0, %v4030
      %v4032 = vpop.f32.mrb[0].mxu0
      %4033 = vmatprep.mubr.bf16.mxu0 0
      %4034 = vmatmul.mubr.bf16.gmra.mrb[0].mxu0 %v3876
      %v4035 = vpop.f32.mrb[0].mxu0
      %v4036 = vadd.f32 0.0, %v4035
      %v4037 = vpop.f32.mrb[0].mxu0
      %v4038 = vpop.f32.mrb[0].mxu0
      %v4039 = vadd.f32 0.0, %v4038
      %v4040 = vpop.f32.mrb[0].mxu0
      %4041 = vdwg.mxu0
      %v4042 = vadd.f32 %v3748, %v3916
      %v4043 = vadd.f32 %v3749, %v3919
      %v4044 = vadd.f32 %v3750, %v3924
      %v4045 = vadd.f32 %v3751, %v3927
      %v4046 = vadd.f32 %v3752, %v3932
      %v4047 = vadd.f32 %v3753, %v3935
      %v4048 = vadd.f32 %v3754, %v3940
      %v4049 = vadd.f32 %v3755, %v3943
      %v4050 = vadd.f32 %v3756, %v3948
      %v4051 = vadd.f32 %v3757, %v3951
      %v4052 = vadd.f32 %v3758, %v3956
      %v4053 = vadd.f32 %v3759, %v3959
      %v4054 = vadd.f32 %v3760, %v3964
      %v4055 = vadd.f32 %v3761, %v3967
      %v4056 = vadd.f32 %v3762, %v3972
      %v4057 = vadd.f32 %v3763, %v3975
      %v4058 = vadd.f32 %v3764, %v3980
      %v4059 = vadd.f32 %v3765, %v3983
      %v4060 = vadd.f32 %v3766, %v3988
      %v4061 = vadd.f32 %v3767, %v3991
      %v4062 = vadd.f32 %v3768, %v3996
      %v4063 = vadd.f32 %v3769, %v3999
      %v4064 = vadd.f32 %v3770, %v4004
      %v4065 = vadd.f32 %v3771, %v4007
      %v4066 = vadd.f32 %v3772, %v4012
      %v4067 = vadd.f32 %v3773, %v4015
      %v4068 = vadd.f32 %v3774, %v4020
      %v4069 = vadd.f32 %v3775, %v4023
      %v4070 = vadd.f32 %v3776, %v4028
      %v4071 = vadd.f32 %v3777, %v4031
      %v4072 = vadd.f32 %v3778, %v4036
      %v4073 = vadd.f32 %v3779, %v4039
      %v4074 = vld [vmem:[%s6] sm:$0x1]
      %v4076 = vlaneseq
      %v4077 = vshrl.u32 %v4076, 7
      %v4078 = vsub.s32 0, %v4077
      %v4079 = vrot.slane %v4074, %v4078
      %v4081 = vadd.f32 %v4042, %v4079
      %v4082 = vadd.f32 %v4043, %v4079
      %v4083 = vadd.f32 %v4044, %v4079
      %v4084 = vadd.f32 %v4045, %v4079
      %v4085 = vadd.f32 %v4046, %v4079
      %v4086 = vadd.f32 %v4047, %v4079
      %v4087 = vadd.f32 %v4048, %v4079
      %v4088 = vadd.f32 %v4049, %v4079
      %v4089 = vadd.f32 %v4050, %v4079
      %v4090 = vadd.f32 %v4051, %v4079
      %v4091 = vadd.f32 %v4052, %v4079
      %v4092 = vadd.f32 %v4053, %v4079
      %v4093 = vadd.f32 %v4054, %v4079
      %v4094 = vadd.f32 %v4055, %v4079
      %v4095 = vadd.f32 %v4056, %v4079
      %v4096 = vadd.f32 %v4057, %v4079
      %v4097 = vadd.f32 %v4058, %v4079
      %v4098 = vadd.f32 %v4059, %v4079
      %v4099 = vadd.f32 %v4060, %v4079
      %v4100 = vadd.f32 %v4061, %v4079
      %v4101 = vadd.f32 %v4062, %v4079
      %v4102 = vadd.f32 %v4063, %v4079
      %v4103 = vadd.f32 %v4064, %v4079
      %v4104 = vadd.f32 %v4065, %v4079
      %v4105 = vadd.f32 %v4066, %v4079
      %v4106 = vadd.f32 %v4067, %v4079
      %v4107 = vadd.f32 %v4068, %v4079
      %v4108 = vadd.f32 %v4069, %v4079
      %v4109 = vadd.f32 %v4070, %v4079
      %v4110 = vadd.f32 %v4071, %v4079
      %v4111 = vadd.f32 %v4072, %v4079
      %v4112 = vadd.f32 %v4073, %v4079
      %v4113 = vxor.u32 %v4081, 2147483648
      %v4114 = vxor.u32 %v4082, 2147483648
      %v4115 = vxor.u32 %v4083, 2147483648
      %v4116 = vxor.u32 %v4084, 2147483648
      %v4117 = vxor.u32 %v4085, 2147483648
      %v4118 = vxor.u32 %v4086, 2147483648
      %v4119 = vxor.u32 %v4087, 2147483648
      %v4120 = vxor.u32 %v4088, 2147483648
      %v4121 = vxor.u32 %v4089, 2147483648
      %v4122 = vxor.u32 %v4090, 2147483648
      %v4123 = vxor.u32 %v4091, 2147483648
      %v4124 = vxor.u32 %v4092, 2147483648
      %v4125 = vxor.u32 %v4093, 2147483648
      %v4126 = vxor.u32 %v4094, 2147483648
      %v4127 = vxor.u32 %v4095, 2147483648
      %v4128 = vxor.u32 %v4096, 2147483648
      %v4129 = vxor.u32 %v4097, 2147483648
      %v4130 = vxor.u32 %v4098, 2147483648
      %v4131 = vxor.u32 %v4099, 2147483648
      %v4132 = vxor.u32 %v4100, 2147483648
      %v4133 = vxor.u32 %v4101, 2147483648
      %v4134 = vxor.u32 %v4102, 2147483648
      %v4135 = vxor.u32 %v4103, 2147483648
      %v4136 = vxor.u32 %v4104, 2147483648
      %v4137 = vxor.u32 %v4105, 2147483648
      %v4138 = vxor.u32 %v4106, 2147483648
      %v4139 = vxor.u32 %v4107, 2147483648
      %v4140 = vxor.u32 %v4108, 2147483648
      %v4141 = vxor.u32 %v4109, 2147483648
      %v4142 = vxor.u32 %v4110, 2147483648
      %v4143 = vxor.u32 %v4111, 2147483648
      %v4144 = vxor.u32 %v4112, 2147483648
      %v4145 = vmul.f32 %v4113, 1.442695
      %v4146 = vpow.pop %v4145
      %v4147 = vmul.f32 %v4114, 1.442695
      %v4148 = vpow.pop %v4147
      %v4149 = vmul.f32 %v4115, 1.442695
      %v4150 = vpow.pop %v4149
      %v4151 = vmul.f32 %v4116, 1.442695
      %v4152 = vpow.pop %v4151
      %v4153 = vmul.f32 %v4117, 1.442695
      %v4154 = vpow.pop %v4153
      %v4155 = vmul.f32 %v4118, 1.442695
      %v4156 = vpow.pop %v4155
      %v4157 = vmul.f32 %v4119, 1.442695
      %v4158 = vpow.pop %v4157
      %v4159 = vmul.f32 %v4120, 1.442695
      %v4160 = vpow.pop %v4159
      %v4161 = vmul.f32 %v4121, 1.442695
      %v4162 = vpow.pop %v4161
      %v4163 = vmul.f32 %v4122, 1.442695
      %v4164 = vpow.pop %v4163
      %v4165 = vmul.f32 %v4123, 1.442695
      %v4166 = vpow.pop %v4165
      %v4167 = vmul.f32 %v4124, 1.442695
      %v4168 = vpow.pop %v4167
      %v4169 = vmul.f32 %v4125, 1.442695
      %v4170 = vpow.pop %v4169
      %v4171 = vmul.f32 %v4126, 1.442695
      %v4172 = vpow.pop %v4171
      %v4173 = vmul.f32 %v4127, 1.442695
      %v4174 = vpow.pop %v4173
      %v4175 = vmul.f32 %v4128, 1.442695
      %v4176 = vpow.pop %v4175
      %v4177 = vmul.f32 %v4129, 1.442695
      %v4178 = vpow.pop %v4177
      %v4179 = vmul.f32 %v4130, 1.442695
      %v4180 = vpow.pop %v4179
      %v4181 = vmul.f32 %v4131, 1.442695
      %v4182 = vpow.pop %v4181
      %v4183 = vmul.f32 %v4132, 1.442695
      %v4184 = vpow.pop %v4183
      %v4185 = vmul.f32 %v4133, 1.442695
      %v4186 = vpow.pop %v4185
      %v4187 = vmul.f32 %v4134, 1.442695
      %v4188 = vpow.pop %v4187
      %v4189 = vmul.f32 %v4135, 1.442695
      %v4190 = vpow.pop %v4189
      %v4191 = vmul.f32 %v4136, 1.442695
      %v4192 = vpow.pop %v4191
      %v4193 = vmul.f32 %v4137, 1.442695
      %v4194 = vpow.pop %v4193
      %v4195 = vmul.f32 %v4138, 1.442695
      %v4196 = vpow.pop %v4195
      %v4197 = vmul.f32 %v4139, 1.442695
      %v4198 = vpow.pop %v4197
      %v4199 = vmul.f32 %v4140, 1.442695
      %v4200 = vpow.pop %v4199
      %v4201 = vmul.f32 %v4141, 1.442695
      %v4202 = vpow.pop %v4201
      %v4203 = vmul.f32 %v4142, 1.442695
      %v4204 = vpow.pop %v4203
      %v4205 = vmul.f32 %v4143, 1.442695
      %v4206 = vpow.pop %v4205
      %v4207 = vmul.f32 %v4144, 1.442695
      %v4208 = vpow.pop %v4207
      %v4209 = vadd.f32 %v4146, 1.0
      %v4210 = vadd.f32 %v4148, 1.0
      %v4211 = vadd.f32 %v4150, 1.0
      %v4212 = vadd.f32 %v4152, 1.0
      %v4213 = vadd.f32 %v4154, 1.0
      %v4214 = vadd.f32 %v4156, 1.0
      %v4215 = vadd.f32 %v4158, 1.0
      %v4216 = vadd.f32 %v4160, 1.0
      %v4217 = vadd.f32 %v4162, 1.0
      %v4218 = vadd.f32 %v4164, 1.0
      %v4219 = vadd.f32 %v4166, 1.0
      %v4220 = vadd.f32 %v4168, 1.0
      %v4221 = vadd.f32 %v4170, 1.0
      %v4222 = vadd.f32 %v4172, 1.0
      %v4223 = vadd.f32 %v4174, 1.0
      %v4224 = vadd.f32 %v4176, 1.0
      %v4225 = vadd.f32 %v4178, 1.0
      %v4226 = vadd.f32 %v4180, 1.0
      %v4227 = vadd.f32 %v4182, 1.0
      %v4228 = vadd.f32 %v4184, 1.0
      %v4229 = vadd.f32 %v4186, 1.0
      %v4230 = vadd.f32 %v4188, 1.0
      %v4231 = vadd.f32 %v4190, 1.0
      %v4232 = vadd.f32 %v4192, 1.0
      %v4233 = vadd.f32 %v4194, 1.0
      %v4234 = vadd.f32 %v4196, 1.0
      %v4235 = vadd.f32 %v4198, 1.0
      %v4236 = vadd.f32 %v4200, 1.0
      %v4237 = vadd.f32 %v4202, 1.0
      %v4238 = vadd.f32 %v4204, 1.0
      %v4239 = vadd.f32 %v4206, 1.0
      %v4240 = vadd.f32 %v4208, 1.0
      %v4241 = vrcp.pop %v4209
      %v4242 = vmul.f32 1.0, %v4241
      %v4243 = vrcp.pop %v4210
      %v4244 = vmul.f32 1.0, %v4243
      %v4245 = vrcp.pop %v4211
      %v4246 = vmul.f32 1.0, %v4245
      %v4247 = vrcp.pop %v4212
      %v4248 = vmul.f32 1.0, %v4247
      %v4249 = vrcp.pop %v4213
      %v4250 = vmul.f32 1.0, %v4249
      %v4251 = vrcp.pop %v4214
      %v4252 = vmul.f32 1.0, %v4251
      %v4253 = vrcp.pop %v4215
      %v4254 = vmul.f32 1.0, %v4253
      %v4255 = vrcp.pop %v4216
      %v4256 = vmul.f32 1.0, %v4255
      %v4257 = vrcp.pop %v4217
      %v4258 = vmul.f32 1.0, %v4257
      %v4259 = vrcp.pop %v4218
      %v4260 = vmul.f32 1.0, %v4259
      %v4261 = vrcp.pop %v4219
      %v4262 = vmul.f32 1.0, %v4261
      %v4263 = vrcp.pop %v4220
      %v4264 = vmul.f32 1.0, %v4263
      %v4265 = vrcp.pop %v4221
      %v4266 = vmul.f32 1.0, %v4265
      %v4267 = vrcp.pop %v4222
      %v4268 = vmul.f32 1.0, %v4267
      %v4269 = vrcp.pop %v4223
      %v4270 = vmul.f32 1.0, %v4269
      %v4271 = vrcp.pop %v4224
      %v4272 = vmul.f32 1.0, %v4271
      %v4273 = vrcp.pop %v4225
      %v4274 = vmul.f32 1.0, %v4273
      %v4275 = vrcp.pop %v4226
      %v4276 = vmul.f32 1.0, %v4275
      %v4277 = vrcp.pop %v4227
      %v4278 = vmul.f32 1.0, %v4277
      %v4279 = vrcp.pop %v4228
      %v4280 = vmul.f32 1.0, %v4279
      %v4281 = vrcp.pop %v4229
      %v4282 = vmul.f32 1.0, %v4281
      %v4283 = vrcp.pop %v4230
      %v4284 = vmul.f32 1.0, %v4283
      %v4285 = vrcp.pop %v4231
      %v4286 = vmul.f32 1.0, %v4285
      %v4287 = vrcp.pop %v4232
      %v4288 = vmul.f32 1.0, %v4287
      %v4289 = vrcp.pop %v4233
      %v4290 = vmul.f32 1.0, %v4289
      %v4291 = vrcp.pop %v4234
      %v4292 = vmul.f32 1.0, %v4291
      %v4293 = vrcp.pop %v4235
      %v4294 = vmul.f32 1.0, %v4293
      %v4295 = vrcp.pop %v4236
      %v4296 = vmul.f32 1.0, %v4295
      %v4297 = vrcp.pop %v4237
      %v4298 = vmul.f32 1.0, %v4297
      %v4299 = vrcp.pop %v4238
      %v4300 = vmul.f32 1.0, %v4299
      %v4301 = vrcp.pop %v4239
      %v4302 = vmul.f32 1.0, %v4301
      %v4303 = vrcp.pop %v4240
      %v4304 = vmul.f32 1.0, %v4303
      %v4305 = vmul.f32 %v4081, %v4242
      %v4306 = vmul.f32 %v4082, %v4244
      %v4307 = vmul.f32 %v4083, %v4246
      %v4308 = vmul.f32 %v4084, %v4248
      %v4309 = vmul.f32 %v4085, %v4250
      %v4310 = vmul.f32 %v4086, %v4252
      %v4311 = vmul.f32 %v4087, %v4254
      %v4312 = vmul.f32 %v4088, %v4256
      %v4313 = vmul.f32 %v4089, %v4258
      %v4314 = vmul.f32 %v4090, %v4260
      %v4315 = vmul.f32 %v4091, %v4262
      %v4316 = vmul.f32 %v4092, %v4264
      %v4317 = vmul.f32 %v4093, %v4266
      %v4318 = vmul.f32 %v4094, %v4268
      %v4319 = vmul.f32 %v4095, %v4270
      %v4320 = vmul.f32 %v4096, %v4272
      %v4321 = vmul.f32 %v4097, %v4274
      %v4322 = vmul.f32 %v4098, %v4276
      %v4323 = vmul.f32 %v4099, %v4278
      %v4324 = vmul.f32 %v4100, %v4280
      %v4325 = vmul.f32 %v4101, %v4282
      %v4326 = vmul.f32 %v4102, %v4284
      %v4327 = vmul.f32 %v4103, %v4286
      %v4328 = vmul.f32 %v4104, %v4288
      %v4329 = vmul.f32 %v4105, %v4290
      %v4330 = vmul.f32 %v4106, %v4292
      %v4331 = vmul.f32 %v4107, %v4294
      %v4332 = vmul.f32 %v4108, %v4296
      %v4333 = vmul.f32 %v4109, %v4298
      %v4334 = vmul.f32 %v4110, %v4300
      %v4335 = vmul.f32 %v4111, %v4302
      %v4336 = vmul.f32 %v4112, %v4304
      %v4337 = vadd.f32 %v4305, %v893
      %v4338 = vadd.f32 %v4306, %v894
      %v4339 = vadd.f32 %v4307, %v895
      %v4340 = vadd.f32 %v4308, %v896
      %v4341 = vadd.f32 %v4309, %v897
      %v4342 = vadd.f32 %v4310, %v898
      %v4343 = vadd.f32 %v4311, %v899
      %v4344 = vadd.f32 %v4312, %v900
      %v4345 = vadd.f32 %v4313, %v901
      %v4346 = vadd.f32 %v4314, %v902
      %v4347 = vadd.f32 %v4315, %v903
      %v4348 = vadd.f32 %v4316, %v904
      %v4349 = vadd.f32 %v4317, %v905
      %v4350 = vadd.f32 %v4318, %v906
      %v4351 = vadd.f32 %v4319, %v907
      %v4352 = vadd.f32 %v4320, %v908
      %v4353 = vadd.f32 %v4321, %v909
      %v4354 = vadd.f32 %v4322, %v910
      %v4355 = vadd.f32 %v4323, %v911
      %v4356 = vadd.f32 %v4324, %v912
      %v4357 = vadd.f32 %v4325, %v913
      %v4358 = vadd.f32 %v4326, %v914
      %v4359 = vadd.f32 %v4327, %v915
      %v4360 = vadd.f32 %v4328, %v916
      %v4361 = vadd.f32 %v4329, %v917
      %v4362 = vadd.f32 %v4330, %v918
      %v4363 = vadd.f32 %v4331, %v919
      %v4364 = vadd.f32 %v4332, %v920
      %v4365 = vadd.f32 %v4333, %v921
      %v4366 = vadd.f32 %v4334, %v922
      %v4367 = vadd.f32 %v4335, %v923
      %v4368 = vadd.f32 %v4336, %v924
      %v4369 = vpack.c.bf16 %v4338, %v4337
      %v4370 = vpack.c.bf16 %v4340, %v4339
      %v4371 = vpack.c.bf16 %v4342, %v4341
      %v4372 = vpack.c.bf16 %v4344, %v4343
      %v4373 = vpack.c.bf16 %v4346, %v4345
      %v4374 = vpack.c.bf16 %v4348, %v4347
      %v4375 = vpack.c.bf16 %v4350, %v4349
      %v4376 = vpack.c.bf16 %v4352, %v4351
      %v4377 = vpack.c.bf16 %v4354, %v4353
      %v4378 = vpack.c.bf16 %v4356, %v4355
      %v4379 = vpack.c.bf16 %v4358, %v4357
      %v4380 = vpack.c.bf16 %v4360, %v4359
      %v4381 = vpack.c.bf16 %v4362, %v4361
      %v4382 = vpack.c.bf16 %v4364, %v4363
      %v4383 = vpack.c.bf16 %v4366, %v4365
      %v4384 = vpack.c.bf16 %v4368, %v4367
      %v4385 = vld [vmem:[%s7] sm:$0xf]
      %v4386 = vld [vmem:[%s8] sm:$0xf]
      %4403 = vrot.lane.b32.xlu0 %v925, 120
      %v4404 = vpop.permute.xlu0 %4403
      %4405 = vrot.lane.b32.xlu0 %v926, 120
      %v4406 = vpop.permute.xlu0 %4405
      %4407 = vrot.lane.b32.xlu0 %v927, 120
      %v4408 = vpop.permute.xlu0 %4407
      %4409 = vrot.lane.b32.xlu0 %v928, 120
      %v4410 = vpop.permute.xlu0 %4409
      %4411 = vrot.lane.b32.xlu0 %v929, 120
      %v4412 = vpop.permute.xlu0 %4411
      %4413 = vrot.lane.b32.xlu0 %v930, 120
      %v4414 = vpop.permute.xlu0 %4413
      %4415 = vrot.lane.b32.xlu0 %v931, 120
      %v4416 = vpop.permute.xlu0 %4415
      %4417 = vrot.lane.b32.xlu0 %v932, 120
      %v4418 = vpop.permute.xlu0 %4417
      %4419 = vrot.lane.b32.xlu0 %v933, 120
      %v4420 = vpop.permute.xlu0 %4419
      %4421 = vrot.lane.b32.xlu0 %v934, 120
      %v4422 = vpop.permute.xlu0 %4421
      %4423 = vrot.lane.b32.xlu0 %v935, 120
      %v4424 = vpop.permute.xlu0 %4423
      %4425 = vrot.lane.b32.xlu0 %v936, 120
      %v4426 = vpop.permute.xlu0 %4425
      %4427 = vrot.lane.b32.xlu0 %v937, 120
      %v4428 = vpop.permute.xlu0 %4427
      %4429 = vrot.lane.b32.xlu0 %v938, 120
      %v4430 = vpop.permute.xlu0 %4429
      %4431 = vrot.lane.b32.xlu0 %v939, 120
      %v4432 = vpop.permute.xlu0 %4431
      %4433 = vrot.lane.b32.xlu0 %v940, 120
      %v4434 = vpop.permute.xlu0 %4433
      %v4436 = vsel %vm949, %v4404, 0
      %v4439 = vsel %vm949, %v4406, 0
      %v4442 = vsel %vm949, %v4408, 0
      %v4445 = vsel %vm949, %v4410, 0
      %v4448 = vsel %vm949, %v4412, 0
      %v4451 = vsel %vm949, %v4414, 0
      %v4454 = vsel %vm949, %v4416, 0
      %v4457 = vsel %vm949, %v4418, 0
      %v4460 = vsel %vm949, %v4420, 0
      %v4463 = vsel %vm949, %v4422, 0
      %v4466 = vsel %vm949, %v4424, 0
      %v4469 = vsel %vm949, %v4426, 0
      %v4472 = vsel %vm949, %v4428, 0
      %v4475 = vsel %vm949, %v4430, 0
      %v4478 = vsel %vm949, %v4432, 0
      %v4481 = vsel %vm949, %v4434, 0
      %v4484 = vsel %vm998, %v4386, 0
      %4486 = vmatprep.subr.bf16.mxu0 0
      %4487 = vmatpush1.bf16.msra.mxu0 %v4484
      %4488 = vmatprep.subr.bf16.mxu0 0
      %4489 = vmatpush1.bf16.msra.mxu0 0
      %4490 = vmatprep.subr.bf16.mxu0 0
      %4491 = vmatpush1.bf16.msra.mxu0 0
      %4492 = vmatprep.subr.bf16.mxu0 0
      %4493 = vmatpush1.bf16.msra.mxu0 0
      %4494 = vmatprep.subr.bf16.mxu0 0
      %4495 = vmatpush1.bf16.msra.mxu0 0
      %4496 = vmatprep.subr.bf16.mxu0 0
      %4497 = vmatpush1.bf16.msra.mxu0 0
      %4498 = vmatprep.subr.bf16.mxu0 0
      %4499 = vmatpush1.bf16.msra.mxu0 0
      %4500 = vmatprep.subr.bf16.mxu0 0
      %4501 = vmatpush1.bf16.msra.mxu0 0
      %4502 = vmatprep.subr.bf16.mxu0 0
      %4503 = vmatpush1.bf16.msra.mxu0 0
      %4504 = vmatprep.subr.bf16.mxu0 0
      %4505 = vmatpush1.bf16.msra.mxu0 0
      %4506 = vmatprep.subr.bf16.mxu0 0
      %4507 = vmatpush1.bf16.msra.mxu0 0
      %4508 = vmatprep.subr.bf16.mxu0 0
      %4509 = vmatpush1.bf16.msra.mxu0 0
      %4510 = vmatprep.subr.bf16.mxu0 0
      %4511 = vmatpush1.bf16.msra.mxu0 0
      %4512 = vmatprep.subr.bf16.mxu0 0
      %4513 = vmatpush1.bf16.msra.mxu0 0
      %4514 = vmatprep.subr.bf16.mxu0 0
      %4515 = vmatpush1.bf16.msra.mxu0 0
      %4516 = vmatprep.subr.bf16.mxu0 0
      %4517 = vmatpush1.bf16.msra.mxu0 0
      %4518 = vmatprep.mubr.bf16.mxu0 0
      %4519 = vmatmul.mubr.bf16.gmra.mrb[0].mxu0 %v4436
      %v4520 = vpop.f32.mrb[0].mxu0
      %v4521 = vadd.f32 0.0, %v4520
      %v4522 = vpop.f32.mrb[0].mxu0
      %v4523 = vpop.f32.mrb[0].mxu0
      %v4524 = vadd.f32 0.0, %v4523
      %v4525 = vpop.f32.mrb[0].mxu0
      %4526 = vmatprep.mubr.bf16.mxu0 0
      %4527 = vmatmul.mubr.bf16.gmra.mrb[0].mxu0 %v4439
      %v4528 = vpop.f32.mrb[0].mxu0
      %v4529 = vadd.f32 0.0, %v4528
      %v4530 = vpop.f32.mrb[0].mxu0
      %v4531 = vpop.f32.mrb[0].mxu0
      %v4532 = vadd.f32 0.0, %v4531
      %v4533 = vpop.f32.mrb[0].mxu0
      %4534 = vmatprep.mubr.bf16.mxu0 0
      %4535 = vmatmul.mubr.bf16.gmra.mrb[0].mxu0 %v4442
      %v4536 = vpop.f32.mrb[0].mxu0
      %v4537 = vadd.f32 0.0, %v4536
      %v4538 = vpop.f32.mrb[0].mxu0
      %v4539 = vpop.f32.mrb[0].mxu0
      %v4540 = vadd.f32 0.0, %v4539
      %v4541 = vpop.f32.mrb[0].mxu0
      %4542 = vmatprep.mubr.bf16.mxu0 0
      %4543 = vmatmul.mubr.bf16.gmra.mrb[0].mxu0 %v4445
      %v4544 = vpop.f32.mrb[0].mxu0
      %v4545 = vadd.f32 0.0, %v4544
      %v4546 = vpop.f32.mrb[0].mxu0
      %v4547 = vpop.f32.mrb[0].mxu0
      %v4548 = vadd.f32 0.0, %v4547
      %v4549 = vpop.f32.mrb[0].mxu0
      %4550 = vmatprep.mubr.bf16.mxu0 0
      %4551 = vmatmul.mubr.bf16.gmra.mrb[0].mxu0 %v4448
      %v4552 = vpop.f32.mrb[0].mxu0
      %v4553 = vadd.f32 0.0, %v4552
      %v4554 = vpop.f32.mrb[0].mxu0
      %v4555 = vpop.f32.mrb[0].mxu0
      %v4556 = vadd.f32 0.0, %v4555
      %v4557 = vpop.f32.mrb[0].mxu0
      %4558 = vmatprep.mubr.bf16.mxu0 0
      %4559 = vmatmul.mubr.bf16.gmra.mrb[0].mxu0 %v4451
      %v4560 = vpop.f32.mrb[0].mxu0
      %v4561 = vadd.f32 0.0, %v4560
      %v4562 = vpop.f32.mrb[0].mxu0
      %v4563 = vpop.f32.mrb[0].mxu0
      %v4564 = vadd.f32 0.0, %v4563
      %v4565 = vpop.f32.mrb[0].mxu0
      %4566 = vmatprep.mubr.bf16.mxu0 0
      %4567 = vmatmul.mubr.bf16.gmra.mrb[0].mxu0 %v4454
      %v4568 = vpop.f32.mrb[0].mxu0
      %v4569 = vadd.f32 0.0, %v4568
      %v4570 = vpop.f32.mrb[0].mxu0
      %v4571 = vpop.f32.mrb[0].mxu0
      %v4572 = vadd.f32 0.0, %v4571
      %v4573 = vpop.f32.mrb[0].mxu0
      %4574 = vmatprep.mubr.bf16.mxu0 0
      %4575 = vmatmul.mubr.bf16.gmra.mrb[0].mxu0 %v4457
      %v4576 = vpop.f32.mrb[0].mxu0
      %v4577 = vadd.f32 0.0, %v4576
      %v4578 = vpop.f32.mrb[0].mxu0
      %v4579 = vpop.f32.mrb[0].mxu0
      %v4580 = vadd.f32 0.0, %v4579
      %v4581 = vpop.f32.mrb[0].mxu0
      %4582 = vmatprep.mubr.bf16.mxu0 0
      %4583 = vmatmul.mubr.bf16.gmra.mrb[0].mxu0 %v4460
      %v4584 = vpop.f32.mrb[0].mxu0
      %v4585 = vadd.f32 0.0, %v4584
      %v4586 = vpop.f32.mrb[0].mxu0
      %v4587 = vpop.f32.mrb[0].mxu0
      %v4588 = vadd.f32 0.0, %v4587
      %v4589 = vpop.f32.mrb[0].mxu0
      %4590 = vmatprep.mubr.bf16.mxu0 0
      %4591 = vmatmul.mubr.bf16.gmra.mrb[0].mxu0 %v4463
      %v4592 = vpop.f32.mrb[0].mxu0
      %v4593 = vadd.f32 0.0, %v4592
      %v4594 = vpop.f32.mrb[0].mxu0
      %v4595 = vpop.f32.mrb[0].mxu0
      %v4596 = vadd.f32 0.0, %v4595
      %v4597 = vpop.f32.mrb[0].mxu0
      %4598 = vmatprep.mubr.bf16.mxu0 0
      %4599 = vmatmul.mubr.bf16.gmra.mrb[0].mxu0 %v4466
      %v4600 = vpop.f32.mrb[0].mxu0
      %v4601 = vadd.f32 0.0, %v4600
      %v4602 = vpop.f32.mrb[0].mxu0
      %v4603 = vpop.f32.mrb[0].mxu0
      %v4604 = vadd.f32 0.0, %v4603
      %v4605 = vpop.f32.mrb[0].mxu0
      %4606 = vmatprep.mubr.bf16.mxu0 0
      %4607 = vmatmul.mubr.bf16.gmra.mrb[0].mxu0 %v4469
      %v4608 = vpop.f32.mrb[0].mxu0
      %v4609 = vadd.f32 0.0, %v4608
      %v4610 = vpop.f32.mrb[0].mxu0
      %v4611 = vpop.f32.mrb[0].mxu0
      %v4612 = vadd.f32 0.0, %v4611
      %v4613 = vpop.f32.mrb[0].mxu0
      %4614 = vmatprep.mubr.bf16.mxu0 0
      %4615 = vmatmul.mubr.bf16.gmra.mrb[0].mxu0 %v4472
      %v4616 = vpop.f32.mrb[0].mxu0
      %v4617 = vadd.f32 0.0, %v4616
      %v4618 = vpop.f32.mrb[0].mxu0
      %v4619 = vpop.f32.mrb[0].mxu0
      %v4620 = vadd.f32 0.0, %v4619
      %v4621 = vpop.f32.mrb[0].mxu0
      %4622 = vmatprep.mubr.bf16.mxu0 0
      %4623 = vmatmul.mubr.bf16.gmra.mrb[0].mxu0 %v4475
      %v4624 = vpop.f32.mrb[0].mxu0
      %v4625 = vadd.f32 0.0, %v4624
      %v4626 = vpop.f32.mrb[0].mxu0
      %v4627 = vpop.f32.mrb[0].mxu0
      %v4628 = vadd.f32 0.0, %v4627
      %v4629 = vpop.f32.mrb[0].mxu0
      %4630 = vmatprep.mubr.bf16.mxu0 0
      %4631 = vmatmul.mubr.bf16.gmra.mrb[0].mxu0 %v4478
      %v4632 = vpop.f32.mrb[0].mxu0
      %v4633 = vadd.f32 0.0, %v4632
      %v4634 = vpop.f32.mrb[0].mxu0
      %v4635 = vpop.f32.mrb[0].mxu0
      %v4636 = vadd.f32 0.0, %v4635
      %v4637 = vpop.f32.mrb[0].mxu0
      %4638 = vmatprep.mubr.bf16.mxu0 0
      %4639 = vmatmul.mubr.bf16.gmra.mrb[0].mxu0 %v4481
      %v4640 = vpop.f32.mrb[0].mxu0
      %v4641 = vadd.f32 0.0, %v4640
      %v4642 = vpop.f32.mrb[0].mxu0
      %v4643 = vpop.f32.mrb[0].mxu0
      %v4644 = vadd.f32 0.0, %v4643
      %v4645 = vpop.f32.mrb[0].mxu0
      %4646 = vdwg.mxu0
      %v4648 = vsel %vm949, %v4369, 0
      %v4651 = vsel %vm949, %v4370, 0
      %v4654 = vsel %vm949, %v4371, 0
      %v4657 = vsel %vm949, %v4372, 0
      %v4660 = vsel %vm949, %v4373, 0
      %v4663 = vsel %vm949, %v4374, 0
      %v4666 = vsel %vm949, %v4375, 0
      %v4669 = vsel %vm949, %v4376, 0
      %v4672 = vsel %vm949, %v4377, 0
      %v4675 = vsel %vm949, %v4378, 0
      %v4678 = vsel %vm949, %v4379, 0
      %v4681 = vsel %vm949, %v4380, 0
      %v4684 = vsel %vm949, %v4381, 0
      %v4687 = vsel %vm949, %v4382, 0
      %v4690 = vsel %vm949, %v4383, 0
      %v4693 = vsel %vm949, %v4384, 0
      %v4696 = vsel %vm998, %v4385, 0
      %4698 = vmatprep.subr.bf16.mxu0 0
      %4699 = vmatpush1.bf16.msra.mxu0 %v4696
      %4700 = vmatprep.subr.bf16.mxu0 0
      %4701 = vmatpush1.bf16.msra.mxu0 0
      %4702 = vmatprep.subr.bf16.mxu0 0
      %4703 = vmatpush1.bf16.msra.mxu0 0
      %4704 = vmatprep.subr.bf16.mxu0 0
      %4705 = vmatpush1.bf16.msra.mxu0 0
      %4706 = vmatprep.subr.bf16.mxu0 0
      %4707 = vmatpush1.bf16.msra.mxu0 0
      %4708 = vmatprep.subr.bf16.mxu0 0
      %4709 = vmatpush1.bf16.msra.mxu0 0
      %4710 = vmatprep.subr.bf16.mxu0 0
      %4711 = vmatpush1.bf16.msra.mxu0 0
      %4712 = vmatprep.subr.bf16.mxu0 0
      %4713 = vmatpush1.bf16.msra.mxu0 0
      %4714 = vmatprep.subr.bf16.mxu0 0
      %4715 = vmatpush1.bf16.msra.mxu0 0
      %4716 = vmatprep.subr.bf16.mxu0 0
      %4717 = vmatpush1.bf16.msra.mxu0 0
      %4718 = vmatprep.subr.bf16.mxu0 0
      %4719 = vmatpush1.bf16.msra.mxu0 0
      %4720 = vmatprep.subr.bf16.mxu0 0
      %4721 = vmatpush1.bf16.msra.mxu0 0
      %4722 = vmatprep.subr.bf16.mxu0 0
      %4723 = vmatpush1.bf16.msra.mxu0 0
      %4724 = vmatprep.subr.bf16.mxu0 0
      %4725 = vmatpush1.bf16.msra.mxu0 0
      %4726 = vmatprep.subr.bf16.mxu0 0
      %4727 = vmatpush1.bf16.msra.mxu0 0
      %4728 = vmatprep.subr.bf16.mxu0 0
      %4729 = vmatpush1.bf16.msra.mxu0 0
      %4730 = vmatprep.mubr.bf16.mxu0 0
      %4731 = vmatmul.mubr.bf16.gmra.mrb[0].mxu0 %v4648
      %v4732 = vpop.f32.mrb[0].mxu0
      %v4733 = vadd.f32 %v4521, %v4732
      %v4734 = vpop.f32.mrb[0].mxu0
      %v4735 = vpop.f32.mrb[0].mxu0
      %v4736 = vadd.f32 %v4524, %v4735
      %v4737 = vpop.f32.mrb[0].mxu0
      %4738 = vmatprep.mubr.bf16.mxu0 0
      %4739 = vmatmul.mubr.bf16.gmra.mrb[0].mxu0 %v4651
      %v4740 = vpop.f32.mrb[0].mxu0
      %v4741 = vadd.f32 %v4529, %v4740
      %v4742 = vpop.f32.mrb[0].mxu0
      %v4743 = vpop.f32.mrb[0].mxu0
      %v4744 = vadd.f32 %v4532, %v4743
      %v4745 = vpop.f32.mrb[0].mxu0
      %4746 = vmatprep.mubr.bf16.mxu0 0
      %4747 = vmatmul.mubr.bf16.gmra.mrb[0].mxu0 %v4654
      %v4748 = vpop.f32.mrb[0].mxu0
      %v4749 = vadd.f32 %v4537, %v4748
      %v4750 = vpop.f32.mrb[0].mxu0
      %v4751 = vpop.f32.mrb[0].mxu0
      %v4752 = vadd.f32 %v4540, %v4751
      %v4753 = vpop.f32.mrb[0].mxu0
      %4754 = vmatprep.mubr.bf16.mxu0 0
      %4755 = vmatmul.mubr.bf16.gmra.mrb[0].mxu0 %v4657
      %v4756 = vpop.f32.mrb[0].mxu0
      %v4757 = vadd.f32 %v4545, %v4756
      %v4758 = vpop.f32.mrb[0].mxu0
      %v4759 = vpop.f32.mrb[0].mxu0
      %v4760 = vadd.f32 %v4548, %v4759
      %v4761 = vpop.f32.mrb[0].mxu0
      %4762 = vmatprep.mubr.bf16.mxu0 0
      %4763 = vmatmul.mubr.bf16.gmra.mrb[0].mxu0 %v4660
      %v4764 = vpop.f32.mrb[0].mxu0
      %v4765 = vadd.f32 %v4553, %v4764
      %v4766 = vpop.f32.mrb[0].mxu0
      %v4767 = vpop.f32.mrb[0].mxu0
      %v4768 = vadd.f32 %v4556, %v4767
      %v4769 = vpop.f32.mrb[0].mxu0
      %4770 = vmatprep.mubr.bf16.mxu0 0
      %4771 = vmatmul.mubr.bf16.gmra.mrb[0].mxu0 %v4663
      %v4772 = vpop.f32.mrb[0].mxu0
      %v4773 = vadd.f32 %v4561, %v4772
      %v4774 = vpop.f32.mrb[0].mxu0
      %v4775 = vpop.f32.mrb[0].mxu0
      %v4776 = vadd.f32 %v4564, %v4775
      %v4777 = vpop.f32.mrb[0].mxu0
      %4778 = vmatprep.mubr.bf16.mxu0 0
      %4779 = vmatmul.mubr.bf16.gmra.mrb[0].mxu0 %v4666
      %v4780 = vpop.f32.mrb[0].mxu0
      %v4781 = vadd.f32 %v4569, %v4780
      %v4782 = vpop.f32.mrb[0].mxu0
      %v4783 = vpop.f32.mrb[0].mxu0
      %v4784 = vadd.f32 %v4572, %v4783
      %v4785 = vpop.f32.mrb[0].mxu0
      %4786 = vmatprep.mubr.bf16.mxu0 0
      %4787 = vmatmul.mubr.bf16.gmra.mrb[0].mxu0 %v4669
      %v4788 = vpop.f32.mrb[0].mxu0
      %v4789 = vadd.f32 %v4577, %v4788
      %v4790 = vpop.f32.mrb[0].mxu0
      %v4791 = vpop.f32.mrb[0].mxu0
      %v4792 = vadd.f32 %v4580, %v4791
      %v4793 = vpop.f32.mrb[0].mxu0
      %4794 = vmatprep.mubr.bf16.mxu0 0
      %4795 = vmatmul.mubr.bf16.gmra.mrb[0].mxu0 %v4672
      %v4796 = vpop.f32.mrb[0].mxu0
      %v4797 = vadd.f32 %v4585, %v4796
      %v4798 = vpop.f32.mrb[0].mxu0
      %v4799 = vpop.f32.mrb[0].mxu0
      %v4800 = vadd.f32 %v4588, %v4799
      %v4801 = vpop.f32.mrb[0].mxu0
      %4802 = vmatprep.mubr.bf16.mxu0 0
      %4803 = vmatmul.mubr.bf16.gmra.mrb[0].mxu0 %v4675
      %v4804 = vpop.f32.mrb[0].mxu0
      %v4805 = vadd.f32 %v4593, %v4804
      %v4806 = vpop.f32.mrb[0].mxu0
      %v4807 = vpop.f32.mrb[0].mxu0
      %v4808 = vadd.f32 %v4596, %v4807
      %v4809 = vpop.f32.mrb[0].mxu0
      %4810 = vmatprep.mubr.bf16.mxu0 0
      %4811 = vmatmul.mubr.bf16.gmra.mrb[0].mxu0 %v4678
      %v4812 = vpop.f32.mrb[0].mxu0
      %v4813 = vadd.f32 %v4601, %v4812
      %v4814 = vpop.f32.mrb[0].mxu0
      %v4815 = vpop.f32.mrb[0].mxu0
      %v4816 = vadd.f32 %v4604, %v4815
      %v4817 = vpop.f32.mrb[0].mxu0
      %4818 = vmatprep.mubr.bf16.mxu0 0
      %4819 = vmatmul.mubr.bf16.gmra.mrb[0].mxu0 %v4681
      %v4820 = vpop.f32.mrb[0].mxu0
      %v4821 = vadd.f32 %v4609, %v4820
      %v4822 = vpop.f32.mrb[0].mxu0
      %v4823 = vpop.f32.mrb[0].mxu0
      %v4824 = vadd.f32 %v4612, %v4823
      %v4825 = vpop.f32.mrb[0].mxu0
      %4826 = vmatprep.mubr.bf16.mxu0 0
      %4827 = vmatmul.mubr.bf16.gmra.mrb[0].mxu0 %v4684
      %v4828 = vpop.f32.mrb[0].mxu0
      %v4829 = vadd.f32 %v4617, %v4828
      %v4830 = vpop.f32.mrb[0].mxu0
      %v4831 = vpop.f32.mrb[0].mxu0
      %v4832 = vadd.f32 %v4620, %v4831
      %v4833 = vpop.f32.mrb[0].mxu0
      %4834 = vmatprep.mubr.bf16.mxu0 0
      %4835 = vmatmul.mubr.bf16.gmra.mrb[0].mxu0 %v4687
      %v4836 = vpop.f32.mrb[0].mxu0
      %v4837 = vadd.f32 %v4625, %v4836
      %v4838 = vpop.f32.mrb[0].mxu0
      %v4839 = vpop.f32.mrb[0].mxu0
      %v4840 = vadd.f32 %v4628, %v4839
      %v4841 = vpop.f32.mrb[0].mxu0
      %4842 = vmatprep.mubr.bf16.mxu0 0
      %4843 = vmatmul.mubr.bf16.gmra.mrb[0].mxu0 %v4690
      %v4844 = vpop.f32.mrb[0].mxu0
      %v4845 = vadd.f32 %v4633, %v4844
      %v4846 = vpop.f32.mrb[0].mxu0
      %v4847 = vpop.f32.mrb[0].mxu0
      %v4848 = vadd.f32 %v4636, %v4847
      %v4849 = vpop.f32.mrb[0].mxu0
      %4850 = vmatprep.mubr.bf16.mxu0 0
      %4851 = vmatmul.mubr.bf16.gmra.mrb[0].mxu0 %v4693
      %v4852 = vpop.f32.mrb[0].mxu0
      %v4853 = vadd.f32 %v4641, %v4852
      %v4854 = vpop.f32.mrb[0].mxu0
      %v4855 = vpop.f32.mrb[0].mxu0
      %v4856 = vadd.f32 %v4644, %v4855
      %v4857 = vpop.f32.mrb[0].mxu0
      %4858 = vdwg.mxu0
      %v4859 = vld [vmem:[%s9] sm:$0x1]
      %v4861 = vlaneseq
      %v4862 = vshrl.u32 %v4861, 7
      %v4863 = vsub.s32 0, %v4862
      %v4864 = vrot.slane %v4859, %v4863
      %v4866 = vadd.f32 %v4733, %v4864
      %v4867 = vadd.f32 %v4736, %v4864
      %v4868 = vadd.f32 %v4741, %v4864
      %v4869 = vadd.f32 %v4744, %v4864
      %v4870 = vadd.f32 %v4749, %v4864
      %v4871 = vadd.f32 %v4752, %v4864
      %v4872 = vadd.f32 %v4757, %v4864
      %v4873 = vadd.f32 %v4760, %v4864
      %v4874 = vadd.f32 %v4765, %v4864
      %v4875 = vadd.f32 %v4768, %v4864
      %v4876 = vadd.f32 %v4773, %v4864
      %v4877 = vadd.f32 %v4776, %v4864
      %v4878 = vadd.f32 %v4781, %v4864
      %v4879 = vadd.f32 %v4784, %v4864
      %v4880 = vadd.f32 %v4789, %v4864
      %v4881 = vadd.f32 %v4792, %v4864
      %v4882 = vadd.f32 %v4797, %v4864
      %v4883 = vadd.f32 %v4800, %v4864
      %v4884 = vadd.f32 %v4805, %v4864
      %v4885 = vadd.f32 %v4808, %v4864
      %v4886 = vadd.f32 %v4813, %v4864
      %v4887 = vadd.f32 %v4816, %v4864
      %v4888 = vadd.f32 %v4821, %v4864
      %v4889 = vadd.f32 %v4824, %v4864
      %v4890 = vadd.f32 %v4829, %v4864
      %v4891 = vadd.f32 %v4832, %v4864
      %v4892 = vadd.f32 %v4837, %v4864
      %v4893 = vadd.f32 %v4840, %v4864
      %v4894 = vadd.f32 %v4845, %v4864
      %v4895 = vadd.f32 %v4848, %v4864
      %v4896 = vadd.f32 %v4853, %v4864
      %v4897 = vadd.f32 %v4856, %v4864
      %v4898 = vxor.u32 %v4866, 2147483648
      %v4899 = vxor.u32 %v4867, 2147483648
      %v4900 = vxor.u32 %v4868, 2147483648
      %v4901 = vxor.u32 %v4869, 2147483648
      %v4902 = vxor.u32 %v4870, 2147483648
      %v4903 = vxor.u32 %v4871, 2147483648
      %v4904 = vxor.u32 %v4872, 2147483648
      %v4905 = vxor.u32 %v4873, 2147483648
      %v4906 = vxor.u32 %v4874, 2147483648
      %v4907 = vxor.u32 %v4875, 2147483648
      %v4908 = vxor.u32 %v4876, 2147483648
      %v4909 = vxor.u32 %v4877, 2147483648
      %v4910 = vxor.u32 %v4878, 2147483648
      %v4911 = vxor.u32 %v4879, 2147483648
      %v4912 = vxor.u32 %v4880, 2147483648
      %v4913 = vxor.u32 %v4881, 2147483648
      %v4914 = vxor.u32 %v4882, 2147483648
      %v4915 = vxor.u32 %v4883, 2147483648
      %v4916 = vxor.u32 %v4884, 2147483648
      %v4917 = vxor.u32 %v4885, 2147483648
      %v4918 = vxor.u32 %v4886, 2147483648
      %v4919 = vxor.u32 %v4887, 2147483648
      %v4920 = vxor.u32 %v4888, 2147483648
      %v4921 = vxor.u32 %v4889, 2147483648
      %v4922 = vxor.u32 %v4890, 2147483648
      %v4923 = vxor.u32 %v4891, 2147483648
      %v4924 = vxor.u32 %v4892, 2147483648
      %v4925 = vxor.u32 %v4893, 2147483648
      %v4926 = vxor.u32 %v4894, 2147483648
      %v4927 = vxor.u32 %v4895, 2147483648
      %v4928 = vxor.u32 %v4896, 2147483648
      %v4929 = vxor.u32 %v4897, 2147483648
      %v4930 = vmul.f32 %v4898, 1.442695
      %v4931 = vpow.pop %v4930
      %v4932 = vmul.f32 %v4899, 1.442695
      %v4933 = vpow.pop %v4932
      %v4934 = vmul.f32 %v4900, 1.442695
      %v4935 = vpow.pop %v4934
      %v4936 = vmul.f32 %v4901, 1.442695
      %v4937 = vpow.pop %v4936
      %v4938 = vmul.f32 %v4902, 1.442695
      %v4939 = vpow.pop %v4938
      %v4940 = vmul.f32 %v4903, 1.442695
      %v4941 = vpow.pop %v4940
      %v4942 = vmul.f32 %v4904, 1.442695
      %v4943 = vpow.pop %v4942
      %v4944 = vmul.f32 %v4905, 1.442695
      %v4945 = vpow.pop %v4944
      %v4946 = vmul.f32 %v4906, 1.442695
      %v4947 = vpow.pop %v4946
      %v4948 = vmul.f32 %v4907, 1.442695
      %v4949 = vpow.pop %v4948
      %v4950 = vmul.f32 %v4908, 1.442695
      %v4951 = vpow.pop %v4950
      %v4952 = vmul.f32 %v4909, 1.442695
      %v4953 = vpow.pop %v4952
      %v4954 = vmul.f32 %v4910, 1.442695
      %v4955 = vpow.pop %v4954
      %v4956 = vmul.f32 %v4911, 1.442695
      %v4957 = vpow.pop %v4956
      %v4958 = vmul.f32 %v4912, 1.442695
      %v4959 = vpow.pop %v4958
      %v4960 = vmul.f32 %v4913, 1.442695
      %v4961 = vpow.pop %v4960
      %v4962 = vmul.f32 %v4914, 1.442695
      %v4963 = vpow.pop %v4962
      %v4964 = vmul.f32 %v4915, 1.442695
      %v4965 = vpow.pop %v4964
      %v4966 = vmul.f32 %v4916, 1.442695
      %v4967 = vpow.pop %v4966
      %v4968 = vmul.f32 %v4917, 1.442695
      %v4969 = vpow.pop %v4968
      %v4970 = vmul.f32 %v4918, 1.442695
      %v4971 = vpow.pop %v4970
      %v4972 = vmul.f32 %v4919, 1.442695
      %v4973 = vpow.pop %v4972
      %v4974 = vmul.f32 %v4920, 1.442695
      %v4975 = vpow.pop %v4974
      %v4976 = vmul.f32 %v4921, 1.442695
      %v4977 = vpow.pop %v4976
      %v4978 = vmul.f32 %v4922, 1.442695
      %v4979 = vpow.pop %v4978
      %v4980 = vmul.f32 %v4923, 1.442695
      %v4981 = vpow.pop %v4980
      %v4982 = vmul.f32 %v4924, 1.442695
      %v4983 = vpow.pop %v4982
      %v4984 = vmul.f32 %v4925, 1.442695
      %v4985 = vpow.pop %v4984
      %v4986 = vmul.f32 %v4926, 1.442695
      %v4987 = vpow.pop %v4986
      %v4988 = vmul.f32 %v4927, 1.442695
      %v4989 = vpow.pop %v4988
      %v4990 = vmul.f32 %v4928, 1.442695
      %v4991 = vpow.pop %v4990
      %v4992 = vmul.f32 %v4929, 1.442695
      %v4993 = vpow.pop %v4992
      %v4994 = vadd.f32 %v4931, 1.0
      %v4995 = vadd.f32 %v4933, 1.0
      %v4996 = vadd.f32 %v4935, 1.0
      %v4997 = vadd.f32 %v4937, 1.0
      %v4998 = vadd.f32 %v4939, 1.0
      %v4999 = vadd.f32 %v4941, 1.0
      %v5000 = vadd.f32 %v4943, 1.0
      %v5001 = vadd.f32 %v4945, 1.0
      %v5002 = vadd.f32 %v4947, 1.0
      %v5003 = vadd.f32 %v4949, 1.0
      %v5004 = vadd.f32 %v4951, 1.0
      %v5005 = vadd.f32 %v4953, 1.0
      %v5006 = vadd.f32 %v4955, 1.0
      %v5007 = vadd.f32 %v4957, 1.0
      %v5008 = vadd.f32 %v4959, 1.0
      %v5009 = vadd.f32 %v4961, 1.0
      %v5010 = vadd.f32 %v4963, 1.0
      %v5011 = vadd.f32 %v4965, 1.0
      %v5012 = vadd.f32 %v4967, 1.0
      %v5013 = vadd.f32 %v4969, 1.0
      %v5014 = vadd.f32 %v4971, 1.0
      %v5015 = vadd.f32 %v4973, 1.0
      %v5016 = vadd.f32 %v4975, 1.0
      %v5017 = vadd.f32 %v4977, 1.0
      %v5018 = vadd.f32 %v4979, 1.0
      %v5019 = vadd.f32 %v4981, 1.0
      %v5020 = vadd.f32 %v4983, 1.0
      %v5021 = vadd.f32 %v4985, 1.0
      %v5022 = vadd.f32 %v4987, 1.0
      %v5023 = vadd.f32 %v4989, 1.0
      %v5024 = vadd.f32 %v4991, 1.0
      %v5025 = vadd.f32 %v4993, 1.0
      %v5026 = vrcp.pop %v4994
      %v5027 = vmul.f32 1.0, %v5026
      %v5028 = vrcp.pop %v4995
      %v5029 = vmul.f32 1.0, %v5028
      %v5030 = vrcp.pop %v4996
      %v5031 = vmul.f32 1.0, %v5030
      %v5032 = vrcp.pop %v4997
      %v5033 = vmul.f32 1.0, %v5032
      %v5034 = vrcp.pop %v4998
      %v5035 = vmul.f32 1.0, %v5034
      %v5036 = vrcp.pop %v4999
      %v5037 = vmul.f32 1.0, %v5036
      %v5038 = vrcp.pop %v5000
      %v5039 = vmul.f32 1.0, %v5038
      %v5040 = vrcp.pop %v5001
      %v5041 = vmul.f32 1.0, %v5040
      %v5042 = vrcp.pop %v5002
      %v5043 = vmul.f32 1.0, %v5042
      %v5044 = vrcp.pop %v5003
      %v5045 = vmul.f32 1.0, %v5044
      %v5046 = vrcp.pop %v5004
      %v5047 = vmul.f32 1.0, %v5046
      %v5048 = vrcp.pop %v5005
      %v5049 = vmul.f32 1.0, %v5048
      %v5050 = vrcp.pop %v5006
      %v5051 = vmul.f32 1.0, %v5050
      %v5052 = vrcp.pop %v5007
      %v5053 = vmul.f32 1.0, %v5052
      %v5054 = vrcp.pop %v5008
      %v5055 = vmul.f32 1.0, %v5054
      %v5056 = vrcp.pop %v5009
      %v5057 = vmul.f32 1.0, %v5056
      %v5058 = vrcp.pop %v5010
      %v5059 = vmul.f32 1.0, %v5058
      %v5060 = vrcp.pop %v5011
      %v5061 = vmul.f32 1.0, %v5060
      %v5062 = vrcp.pop %v5012
      %v5063 = vmul.f32 1.0, %v5062
      %v5064 = vrcp.pop %v5013
      %v5065 = vmul.f32 1.0, %v5064
      %v5066 = vrcp.pop %v5014
      %v5067 = vmul.f32 1.0, %v5066
      %v5068 = vrcp.pop %v5015
      %v5069 = vmul.f32 1.0, %v5068
      %v5070 = vrcp.pop %v5016
      %v5071 = vmul.f32 1.0, %v5070
      %v5072 = vrcp.pop %v5017
      %v5073 = vmul.f32 1.0, %v5072
      %v5074 = vrcp.pop %v5018
      %v5075 = vmul.f32 1.0, %v5074
      %v5076 = vrcp.pop %v5019
      %v5077 = vmul.f32 1.0, %v5076
      %v5078 = vrcp.pop %v5020
      %v5079 = vmul.f32 1.0, %v5078
      %v5080 = vrcp.pop %v5021
      %v5081 = vmul.f32 1.0, %v5080
      %v5082 = vrcp.pop %v5022
      %v5083 = vmul.f32 1.0, %v5082
      %v5084 = vrcp.pop %v5023
      %v5085 = vmul.f32 1.0, %v5084
      %v5086 = vrcp.pop %v5024
      %v5087 = vmul.f32 1.0, %v5086
      %v5088 = vrcp.pop %v5025
      %v5089 = vmul.f32 1.0, %v5088
      %v5090 = vmul.f32 %v4866, %v5027
      %v5091 = vmul.f32 %v4867, %v5029
      %v5092 = vmul.f32 %v4868, %v5031
      %v5093 = vmul.f32 %v4869, %v5033
      %v5094 = vmul.f32 %v4870, %v5035
      %v5095 = vmul.f32 %v4871, %v5037
      %v5096 = vmul.f32 %v4872, %v5039
      %v5097 = vmul.f32 %v4873, %v5041
      %v5098 = vmul.f32 %v4874, %v5043
      %v5099 = vmul.f32 %v4875, %v5045
      %v5100 = vmul.f32 %v4876, %v5047
      %v5101 = vmul.f32 %v4877, %v5049
      %v5102 = vmul.f32 %v4878, %v5051
      %v5103 = vmul.f32 %v4879, %v5053
      %v5104 = vmul.f32 %v4880, %v5055
      %v5105 = vmul.f32 %v4881, %v5057
      %v5106 = vmul.f32 %v4882, %v5059
      %v5107 = vmul.f32 %v4883, %v5061
      %v5108 = vmul.f32 %v4884, %v5063
      %v5109 = vmul.f32 %v4885, %v5065
      %v5110 = vmul.f32 %v4886, %v5067
      %v5111 = vmul.f32 %v4887, %v5069
      %v5112 = vmul.f32 %v4888, %v5071
      %v5113 = vmul.f32 %v4889, %v5073
      %v5114 = vmul.f32 %v4890, %v5075
      %v5115 = vmul.f32 %v4891, %v5077
      %v5116 = vmul.f32 %v4892, %v5079
      %v5117 = vmul.f32 %v4893, %v5081
      %v5118 = vmul.f32 %v4894, %v5083
      %v5119 = vmul.f32 %v4895, %v5085
      %v5120 = vmul.f32 %v4896, %v5087
      %v5121 = vmul.f32 %v4897, %v5089
      %5122 = vst.msk [vmem:[%s361] sm:$0xff] %vm491, %v5090
      %5123 = vst.msk [vmem:[%s361 + $0x8] sm:$0xff] %vm491, %v5091
      %5124 = vst.msk [vmem:[%s361 + $0x10] sm:$0xff] %vm491, %v5092
      %5125 = vst.msk [vmem:[%s361 + $0x18] sm:$0xff] %vm491, %v5093
      %5126 = vst.msk [vmem:[%s361 + $0x20] sm:$0xff] %vm491, %v5094
      %5127 = vst.msk [vmem:[%s361 + $0x28] sm:$0xff] %vm491, %v5095
      %5128 = vst.msk [vmem:[%s361 + $0x30] sm:$0xff] %vm491, %v5096
      %5129 = vst.msk [vmem:[%s361 + $0x38] sm:$0xff] %vm491, %v5097
      %5130 = vst.msk [vmem:[%s361 + $0x40] sm:$0xff] %vm491, %v5098
      %5131 = vst.msk [vmem:[%s361 + $0x48] sm:$0xff] %vm491, %v5099
      %5132 = vst.msk [vmem:[%s361 + $0x50] sm:$0xff] %vm491, %v5100
      %5133 = vst.msk [vmem:[%s361 + $0x58] sm:$0xff] %vm491, %v5101
      %5134 = vst.msk [vmem:[%s361 + $0x60] sm:$0xff] %vm491, %v5102
      %5135 = vst.msk [vmem:[%s361 + $0x68] sm:$0xff] %vm491, %v5103
      %5136 = vst.msk [vmem:[%s361 + $0x70] sm:$0xff] %vm491, %v5104
      %5137 = vst.msk [vmem:[%s361 + $0x78] sm:$0xff] %vm491, %v5105
      %5138 = vst.msk [vmem:[%s361 + $0x80] sm:$0xff] %vm491, %v5106
      %5139 = vst.msk [vmem:[%s361 + $0x88] sm:$0xff] %vm491, %v5107
      %5140 = vst.msk [vmem:[%s361 + $0x90] sm:$0xff] %vm491, %v5108
      %5141 = vst.msk [vmem:[%s361 + $0x98] sm:$0xff] %vm491, %v5109
      %5142 = vst.msk [vmem:[%s361 + $0xa0] sm:$0xff] %vm491, %v5110
      %5143 = vst.msk [vmem:[%s361 + $0xa8] sm:$0xff] %vm491, %v5111
      %5144 = vst.msk [vmem:[%s361 + $0xb0] sm:$0xff] %vm491, %v5112
      %5145 = vst.msk [vmem:[%s361 + $0xb8] sm:$0xff] %vm491, %v5113
      %5146 = vst.msk [vmem:[%s361 + $0xc0] sm:$0xff] %vm491, %v5114
      %5147 = vst.msk [vmem:[%s361 + $0xc8] sm:$0xff] %vm491, %v5115
      %5148 = vst.msk [vmem:[%s361 + $0xd0] sm:$0xff] %vm491, %v5116
      %5149 = vst.msk [vmem:[%s361 + $0xd8] sm:$0xff] %vm491, %v5117
      %5150 = vst.msk [vmem:[%s361 + $0xe0] sm:$0xff] %vm491, %v5118
      %5151 = vst.msk [vmem:[%s361 + $0xe8] sm:$0xff] %vm491, %v5119
      %5152 = vst.msk [vmem:[%s361 + $0xf0] sm:$0xff] %vm491, %v5120
      %5153 = vst.msk [vmem:[%s361 + $0xf8] sm:$0xff] %vm491, %v5121
      %s5154 = smul.u32 32, %s21
      %p5155 = scmp.lt.s32.totalorder %s5154, 63
      %s5156 = scalar_select %p5155, %s5154, 63
      %s5157 = smul.addr %s5156, 8
      %s5158 = scalar_lea.vmem %s10, %s5157
      // Predicated region
      $region61: #{tpu_custom_call.1} parent=59 // pred_check
        %p5159 = pneg %p254
      $region62: #{tpu_custom_call.1} parent=59 // pred_check_branch
        %5161 = sbr.rel (%p5159) target = $region64
      $region63: #{tpu_custom_call.1} parent=59 // pred_region
        %s5162 = smul.u32 32, %s21
      $region64: #{tpu_custom_call.1} parent=59 // pred_fallthru
        _
    $region60: #{tpu_custom_call.1} parent=5 // pred_fallthru
      _
    %p5163 = scmp.le.s32.totalorder 2, %s16
    // Predicated region
    $region65: #{tpu_custom_call.1} parent=5 // pred_check
      %p5164 = pneg %p5163
    $region66: #{tpu_custom_call.1} parent=5 // pred_check_branch
      %5166 = sbr.rel (%p5164) target = $region68
    $region67: #{tpu_custom_call.1} parent=5 // pred_region
      %s5167 = ssub.s32 %s16, 2
      // Predicated region
      $region69: #{tpu_custom_call.1} parent=67 // pred_check
        %p5168 = pneg %p260
      $region70: #{tpu_custom_call.1} parent=67 // pred_check_branch
        %5170 = sbr.rel (%p5168) target = $region72
      $region71: #{tpu_custom_call.1} parent=67 // pred_region
        %s5171 = smul.u32 32, %s22
        %p5172 = scmp.lt.s32.totalorder %s5171, 63
        %s5173 = scalar_select %p5172, %s5171, 63
        %s5174 = smul.addr %s5173, 8
        %s5175 = scalar_lea.vmem %s10, %s5174
      $region72: #{tpu_custom_call.1} parent=67 // pred_fallthru
        _
    $region68: #{tpu_custom_call.1} parent=5 // pred_fallthru
      _
  $region6: #{tpu_custom_call.1} parent=0 // loop_footer
    %s20 = sadd.s32 1, %s16
  $region7: #{tpu_custom_call.1} parent=0 // loop_footer_branch
    %15 = sbr.rel target = $region3
  $region8: #{tpu_custom_call.1} parent=0 // loop_exit
    _

</llo_original>
